<compile_context>
chip_gen: v7x
topology: tpu7x:2x2x1
jax: 0.10.0
libtpu: 0.0.40
codegen_flags: <defaults>
</compile_context>

<pallas_src>
import functools
import math

import jax
import jax.numpy as jnp
from jax.experimental import pallas as pl
from jax.experimental.pallas import tpu as pltpu

OUTPUT_DIM = 1
# (kernel_size, stride, padding, Cin, Cout, use_bn, use_leaky_relu)
# mirrors:
#   Conv2d(3,32,3,p=1)+LReLU | Conv2d(32,32,4,2) | Conv2d(32,64,3,p=1)+BN+LReLU
#   Conv2d(64,64,4,2) | Conv2d(64,128,3,p=1)+BN+LReLU | Conv2d(128,1,3)
LAYERS = [
    (3, 1, 1, 3,   32,         False, True),
    (4, 2, 0, 32,  32,         False, False),
    (3, 1, 1, 32,  64,         True,  True),
    (4, 2, 0, 64,  64,         False, False),
    (3, 1, 1, 64,  128,        True,  True),
    (3, 1, 0, 128, OUTPUT_DIM, False, False),
]

NEG_SLOPE = 0.2
BN_EPS = 1e-5
TILE_M_MAX = 512                       # max rows per tile (multiple of 16)
TILE_M_MIN = 128                       # smallest divisor tile we accept
FUSED_BN_VMEM_BUDGET = 12 * 1024 * 1024   # resident + streamed bytes cap
GAP_VMEM_BUDGET = 4 * 1024 * 1024         # per-chunk patch bytes for final GAP


def _round_up(x, m):
    return (x + m - 1) // m * m


def _choose_tile(m):
    """Pick (tile_m, m_pad).  Prefers zero padding.

    * If M fits in one tile, use the full (untiled) M -> no pad, no slice.
    * Else, if M is 16-aligned, use its largest multiple-of-16 divisor in
      [TILE_M_MIN, TILE_M_MAX] -> no pad, no slice.
    * Else fall back to tile=TILE_M_MAX with a padded tail (rare).
    """
    if m <= TILE_M_MAX:
        return m, m
    if m % 16 == 0:
        for t in range(TILE_M_MAX, TILE_M_MIN - 1, -16):
            if m % t == 0:
                return t, m
    return TILE_M_MAX, _round_up(m, TILE_M_MAX)


# ----------------------------------------------------------------------------
# Pallas kernels
# ----------------------------------------------------------------------------
def conv_bias_act_kernel(p_ref, w_ref, b_ref, o_ref, *, use_act):
    """bf16 MXU matmul tile + bias + optional LeakyReLU(0.2); f32 math."""
    acc = jnp.dot(p_ref[...], w_ref[...], preferred_element_type=jnp.float32)
    acc = acc + b_ref[...]
    if use_act:
        acc = jnp.where(acc >= 0.0, acc, NEG_SLOPE * acc)
    o_ref[...] = acc.astype(o_ref.dtype)


def conv_bn_act_fused_kernel(p_ref, w_ref, g_ref, bt_ref, o_ref, acc_ref, *,
                             m_real, tile_m, ntiles):
    """Single-pass conv + training-mode BatchNorm + LeakyReLU.

    The f32 conv output for the whole layer lives in a VMEM scratch across the
    M-tile grid; the last tile computes batch mean, centered variance,
    per-channel scale/shift, and writes the bf16 result once (resident output).
    The conv bias is omitted — it cancels inside BatchNorm."""
    i = pl.program_id(0)
    acc = jnp.dot(p_ref[...], w_ref[...], preferred_element_type=jnp.float32)
    if ntiles == 1:
        acc_ref[...] = acc
    else:
        row0 = pl.multiple_of(i * tile_m, tile_m)
        acc_ref[pl.ds(row0, tile_m), :] = acc

    @pl.when(i == ntiles - 1)
    def _finalize():
        x = acc_ref[...]                                   # (m_pad, cout) f32
        m_pad = x.shape[0]
        inv_m = 1.0 / float(m_real)
        if m_pad != m_real:
            valid = jax.lax.broadcasted_iota(jnp.int32, (m_pad, 1), 0) < m_real
            mean = jnp.sum(jnp.where(valid, x, 0.0), axis=0,
                           keepdims=True) * inv_m
            diff = jnp.where(valid, x - mean, 0.0)
        else:
            mean = jnp.sum(x, axis=0, keepdims=True) * inv_m
            diff = x - mean
        var = jnp.sum(diff * diff, axis=0, keepdims=True) * inv_m
        scale = g_ref[...] * jax.lax.rsqrt(var + BN_EPS)   # per-channel, once
        shift = bt_ref[...] - mean * scale
        y = x * scale + shift
        y = jnp.where(y >= 0.0, y, NEG_SLOPE * y)
        o_ref[...] = y.astype(o_ref.dtype)


# --- two-pass fallback (only for M x Cout too large to keep VMEM-resident) ---
def _conv_stats_kernel(p_ref, w_ref, o_ref, s_ref):
    @pl.when(pl.program_id(0) == 0)
    def _init():
        s_ref[...] = jnp.zeros_like(s_ref)
    acc = jnp.dot(p_ref[...], w_ref[...], preferred_element_type=jnp.float32)
    o_ref[...] = acc.astype(o_ref.dtype)                   # bf16 intermediate
    s_ref[...] += jnp.concatenate(
        [jnp.sum(acc, axis=0, keepdims=True),
         jnp.sum(acc * acc, axis=0, keepdims=True)], axis=0)


def _bn_apply_kernel(x_ref, s_ref, g_ref, bt_ref, o_ref, *, m_real):
    stats = s_ref[...]
    inv_m = 1.0 / float(m_real)
    mean = stats[0:1, :] * inv_m
    var = jnp.maximum(stats[1:2, :] * inv_m - mean * mean, 0.0)
    scale = g_ref[...] * jax.lax.rsqrt(var + BN_EPS)
    shift = bt_ref[...] - mean * scale
    y = x_ref[...].astype(jnp.float32) * scale + shift
    y = jnp.where(y >= 0.0, y, NEG_SLOPE * y)
    o_ref[...] = y.astype(o_ref.dtype)


def final_conv_gap_kernel(p_ref, w_ref, b_ref, o_ref, *, inv_s):
    """Fused last conv (Cout=1) + AdaptiveAvgPool2d((1,1)), all-f32 math.

    GAP(conv(x))[n] = mean_s(patches[n,s] @ W + b)
                    = (sum_s patches[n,s]) @ W * (1/S) + b
    """
    ssum = jnp.sum(p_ref[...].astype(jnp.float32), axis=1)      # (N, fan_in)
    acc = jnp.dot(ssum, w_ref[...].astype(jnp.float32),
                  preferred_element_type=jnp.float32)
    o_ref[...] = acc * inv_s + b_ref[...]


# ----------------------------------------------------------------------------
# Wrappers around pallas_call
# ----------------------------------------------------------------------------
_VMEM_SPEC = pl.BlockSpec(memory_space=pltpu.MemorySpace.VMEM)


def conv_bias_act(patches, w, b, *, use_act):
    m, fan_in = patches.shape
    cout = w.shape[1]
    tile_m, m_pad = _choose_tile(m)
    if m_pad != m:
        patches = jnp.pad(patches, ((0, m_pad - m), (0, 0)))
    ntiles = m_pad // tile_m
    cost = pl.CostEstimate(
        flops=2 * m_pad * fan_in * cout, transcendentals=0,
        bytes_accessed=2 * m_pad * fan_in + 2 * fan_in * cout + 2 * m_pad * cout)
    out = pl.pallas_call(
        functools.partial(conv_bias_act_kernel, use_act=use_act),
        out_shape=jax.ShapeDtypeStruct((m_pad, cout), jnp.bfloat16),
        grid=(ntiles,),
        in_specs=[pl.BlockSpec((tile_m, fan_in), lambda i: (i, 0)),
                  pl.BlockSpec((fan_in, cout), lambda i: (0, 0)),   # resident
                  pl.BlockSpec((1, cout), lambda i: (0, 0))],       # resident
        out_specs=pl.BlockSpec((tile_m, cout), lambda i: (i, 0)),
        compiler_params=pltpu.CompilerParams(dimension_semantics=("parallel",)),
        cost_estimate=cost,
    )(patches, w, b)
    return out if m_pad == m else out[:m]


def _conv_bn_act_two_pass(patches, w, gamma, beta, *, m_real, tile_m, ntiles):
    m_pad, fan_in = patches.shape
    cout = w.shape[1]
    conv_out, stats = pl.pallas_call(
        _conv_stats_kernel,
        out_shape=(jax.ShapeDtypeStruct((m_pad, cout), jnp.bfloat16),
                   jax.ShapeDtypeStruct((2, cout), jnp.float32)),
        grid=(ntiles,),
        in_specs=[pl.BlockSpec((tile_m, fan_in), lambda i: (i, 0)),
                  pl.BlockSpec((fan_in, cout), lambda i: (0, 0))],
        out_specs=(pl.BlockSpec((tile_m, cout), lambda i: (i, 0)),
                   pl.BlockSpec((2, cout), lambda i: (0, 0))),      # accumulator
        compiler_params=pltpu.CompilerParams(dimension_semantics=("arbitrary",)),
    )(patches, w)
    return pl.pallas_call(
        functools.partial(_bn_apply_kernel, m_real=m_real),
        out_shape=jax.ShapeDtypeStruct((m_pad, cout), jnp.bfloat16),
        grid=(ntiles,),
        in_specs=[pl.BlockSpec((tile_m, cout), lambda i: (i, 0)),
                  pl.BlockSpec((2, cout), lambda i: (0, 0)),
                  pl.BlockSpec((1, cout), lambda i: (0, 0)),
                  pl.BlockSpec((1, cout), lambda i: (0, 0))],
        out_specs=pl.BlockSpec((tile_m, cout), lambda i: (i, 0)),
        compiler_params=pltpu.CompilerParams(dimension_semantics=("parallel",)),
    )(conv_out, stats, gamma, beta)


def conv_bn_act(patches, w, gamma, beta):
    m, fan_in = patches.shape
    cout = w.shape[1]
    tile_m, m_pad = _choose_tile(m)
    if m_pad != m:
        patches = jnp.pad(patches, ((0, m_pad - m), (0, 0)))
    ntiles = m_pad // tile_m

    resident = m_pad * cout * 6                     # f32 scratch + bf16 output
    streamed = 2 * tile_m * fan_in * 2 + 2 * fan_in * cout * 2
    if resident + streamed <= FUSED_BN_VMEM_BUDGET:
        cost = pl.CostEstimate(
            flops=2 * m_pad * fan_in * cout, transcendentals=cout,
            bytes_accessed=2 * m_pad * fan_in + 2 * fan_in * cout
                           + 2 * m_pad * cout)
        out = pl.pallas_call(
            functools.partial(conv_bn_act_fused_kernel,
                              m_real=m, tile_m=tile_m, ntiles=ntiles),
            out_shape=jax.ShapeDtypeStruct((m_pad, cout), jnp.bfloat16),
            grid=(ntiles,),
            in_specs=[pl.BlockSpec((tile_m, fan_in), lambda i: (i, 0)),
                      pl.BlockSpec((fan_in, cout), lambda i: (0, 0)),
                      pl.BlockSpec((1, cout), lambda i: (0, 0)),
                      pl.BlockSpec((1, cout), lambda i: (0, 0))],
            # Resident output: written once on the last grid step.
            out_specs=pl.BlockSpec((m_pad, cout), lambda i: (0, 0)),
            scratch_shapes=[pltpu.VMEM((m_pad, cout), jnp.float32)],
            compiler_params=pltpu.CompilerParams(
                dimension_semantics=("arbitrary",)),
            cost_estimate=cost,
        )(patches, w, gamma, beta)
    else:
        out = _conv_bn_act_two_pass(patches, w, gamma, beta,
                                    m_real=m, tile_m=tile_m, ntiles=ntiles)
    return out if m_pad == m else out[:m]


def final_conv_gap(patches_nsf, w, b):
    n, s, fan_in = patches_nsf.shape
    cout = w.shape[1]
    bytes_per_image = s * fan_in * 2
    chunk = max(1, min(n, GAP_VMEM_BUDGET // max(bytes_per_image, 1)))
    outs = []
    for i0 in range(0, n, chunk):
        pc = patches_nsf[i0:i0 + chunk]
        outs.append(pl.pallas_call(
            functools.partial(final_conv_gap_kernel, inv_s=1.0 / s),
            out_shape=jax.ShapeDtypeStruct((pc.shape[0], cout), jnp.float32),
            in_specs=[_VMEM_SPEC, _VMEM_SPEC, _VMEM_SPEC],
            out_specs=_VMEM_SPEC,
        )(pc, w, b))
    return outs[0] if len(outs) == 1 else jnp.concatenate(outs, axis=0)


# ----------------------------------------------------------------------------
# Glue: padding / im2col patch extraction (data movement only, bf16)
# TODO(synk): implicit-GEMM kernel to avoid materializing the K*K*C patch
#             matrix in HBM (largest remaining bandwidth lever).
# ----------------------------------------------------------------------------
def im2col(x_nhwc, k, stride, padding):
    if padding:
        x_nhwc = jnp.pad(
            x_nhwc, ((0, 0), (padding, padding), (padding, padding), (0, 0)))
    n, hp, wp, c = x_nhwc.shape
    ho = (hp - k) // stride + 1
    wo = (wp - k) // stride + 1
    cols = []
    for ky in range(k):
        for kx in range(k):
            cols.append(
                x_nhwc[:,
                       ky:ky + (ho - 1) * stride + 1:stride,
                       kx:kx + (wo - 1) * stride + 1:stride,
                       :])
    patches = jnp.concatenate(cols, axis=-1)          # (N, Ho, Wo, K*K*C)
    return patches.reshape(n * ho * wo, k * k * c), (n, ho, wo)


# ----------------------------------------------------------------------------
# Parameters (deterministic synthetic init; shapes from the nn.Module __init__)
# ----------------------------------------------------------------------------
def init_params(key):
    params = []
    for (k, _s, _p, cin, cout, _bn, _act) in LAYERS:
        key, kw, kb = jax.random.split(key, 3)
        fan_in = k * k * cin
        # NOTE: weight rows are ordered (ky, kx, cin) to match im2col's
        # channel-last patch layout.  Real PyTorch weights (Cout, Cin, kH, kW)
        # must be permuted to (kH, kW, Cin, Cout) before reshaping.
        w = (jax.random.normal(kw, (fan_in, cout), jnp.float32)
             / math.sqrt(fan_in)).astype(jnp.bfloat16)
        b = jax.random.normal(kb, (1, cout), jnp.float32) * 0.01
        gamma = jnp.ones((1, cout), jnp.float32)   # BatchNorm weight init
        beta = jnp.zeros((1, cout), jnp.float32)   # BatchNorm bias init
        params.append(dict(w=w, b=b, gamma=gamma, beta=beta))
    return params


# ----------------------------------------------------------------------------
# Forward pass (matches Discriminator.forward, training-mode BatchNorm)
# ----------------------------------------------------------------------------
@jax.jit
def discriminator_forward(x_nchw, params):
    # NCHW -> NHWC; bf16 activations between layers halve im2col HBM traffic.
    x = jnp.transpose(x_nchw, (0, 2, 3, 1)).astype(jnp.bfloat16)
    n_layers = len(LAYERS)
    for li, ((k, s, p, _cin, cout, use_bn, use_act), layer) in enumerate(
            zip(LAYERS, params)):
        patches, (n, ho, wo) = im2col(x, k, s, p)
        if li == n_layers - 1:
            # Last conv fused with global average pooling -> (N, output_dim).
            pooled = final_conv_gap(patches.reshape(n, ho * wo, -1),
                                    layer["w"], layer["b"])
            return pooled.reshape(-1, OUTPUT_DIM)      # x.view(-1, output_dim)
        if use_bn:
            out = conv_bn_act(patches, layer["w"], layer["gamma"],
                              layer["beta"])
        else:
            out = conv_bias_act(patches, layer["w"], layer["b"],
                                use_act=use_act)
        x = out.reshape(n, ho, wo, cout)
    raise AssertionError("unreachable")


if __name__ == "__main__":
    key = jax.random.PRNGKey(0)
    kp, kx = jax.random.split(key)
    params = init_params(kp)
    # NCHW input, small spatial size that survives the two stride-2 convs
    # and the final unpadded 3x3 conv: 24 -> 24 -> 11 -> 11 -> 4 -> 4 -> 2.
    x = jax.random.normal(kx, (2, 3, 24, 24), jnp.float32)
    out = discriminator_forward(x, params)
    out = jax.block_until_ready(out)
    assert out.shape == (2, OUTPUT_DIM), out.shape
    assert jnp.all(jnp.isfinite(out))
    print("KERNEL_OK")
</pallas_src>

<mosaic_0001>
module attributes {stable_mosaic.version = 11 : i64} {
  func.func @conv_bias_act_kernel(%arg0: i32, %arg1: memref<384x27xbf16, #tpu.memory_space<vmem>>, %arg2: memref<27x32xbf16, #tpu.memory_space<vmem>>, %arg3: memref<1x32xf32, #tpu.memory_space<vmem>>, %arg4: memref<384x32xbf16, #tpu.memory_space<vmem>>) attributes {dimension_semantics = [#tpu.dimension_semantics<parallel>], iteration_bounds = array<i64: 3>, scalar_prefetch = 0 : i64, scratch_operands = 0 : i64, tpu.core_type = #tpu.core_type<tc>, window_params = [{transform_indices = @transform_0, window_bounds = array<i64: 384, 27>}, {pipeline_mode = #tpu.pipeline_mode<synchronous>, transform_indices = @transform_1, window_bounds = array<i64: 27, 32>}, {pipeline_mode = #tpu.pipeline_mode<synchronous>, transform_indices = @transform_2, window_bounds = array<i64: 1, 32>}, {transform_indices = @transform_3, window_bounds = array<i64: 384, 32>}]} {
    %c0 = arith.constant 0 : index
    %c0_0 = arith.constant 0 : index
    %0 = vector.load %arg1[%c0, %c0_0] : memref<384x27xbf16, #tpu.memory_space<vmem>>, vector<384x27xbf16>
    %c0_1 = arith.constant 0 : index
    %c0_2 = arith.constant 0 : index
    %1 = vector.load %arg2[%c0_1, %c0_2] : memref<27x32xbf16, #tpu.memory_space<vmem>>, vector<27x32xbf16>
    %cst = arith.constant dense<0.000000e+00> : vector<384x32xf32>
    %2 = tpu.matmul %0, %1, %cst {dimension_numbers = #tpu.dot_dimension_numbers<[1], [0], [0], [1], [0, 0, 1, 1], [], []>} : vector<384x27xbf16>, vector<27x32xbf16>, vector<384x32xf32> -> vector<384x32xf32>
    %c0_3 = arith.constant 0 : index
    %c0_4 = arith.constant 0 : index
    %3 = vector.load %arg3[%c0_3, %c0_4] : memref<1x32xf32, #tpu.memory_space<vmem>>, vector<1x32xf32>
    %4 = vector.broadcast %3 : vector<1x32xf32> to vector<384x32xf32>
    %5 = arith.addf %2, %4 : vector<384x32xf32>
    %cst_5 = arith.constant 0.000000e+00 : f32
    %6 = vector.broadcast %cst_5 : f32 to vector<384x32xf32>
    %7 = arith.cmpf oge, %5, %6 : vector<384x32xf32>
    %cst_6 = arith.constant 2.000000e-01 : f32
    %8 = vector.broadcast %cst_6 : f32 to vector<384x32xf32>
    %9 = arith.mulf %8, %5 : vector<384x32xf32>
    %10 = arith.select %7, %5, %9 : vector<384x32xi1>, vector<384x32xf32>
    %11 = arith.truncf %10 : vector<384x32xf32> to vector<384x32xbf16>
    %c0_7 = arith.constant 0 : index
    %c0_8 = arith.constant 0 : index
    %12 = vector.load %arg4[%c0_7, %c0_8] : memref<384x32xbf16, #tpu.memory_space<vmem>>, vector<384x32xbf16>
    tpu.vector_store %arg4[%c0_7, %c0_8], %11 {strides = array<i32>} : memref<384x32xbf16, #tpu.memory_space<vmem>>, vector<384x32xbf16>,
    return
  }
  func.func @transform_0(%arg0: i32) -> (i32, i32) {
    %c0_i32 = arith.constant 0 : i32
    %c0_i32_0 = arith.constant 0 : i32
    return %arg0, %c0_i32 : i32, i32
  }
  func.func @transform_1(%arg0: i32) -> (i32, i32) {
    %c0_i32 = arith.constant 0 : i32
    %c0_i32_0 = arith.constant 0 : i32
    %c0_i32_1 = arith.constant 0 : i32
    return %c0_i32, %c0_i32_0 : i32, i32
  }
  func.func @transform_2(%arg0: i32) -> (i32, i32) {
    %c0_i32 = arith.constant 0 : i32
    %c0_i32_0 = arith.constant 0 : i32
    %c0_i32_1 = arith.constant 0 : i32
    return %c0_i32, %c0_i32_0 : i32, i32
  }
  func.func @transform_3(%arg0: i32) -> (i32, i32) {
    %c0_i32 = arith.constant 0 : i32
    %c0_i32_0 = arith.constant 0 : i32
    return %arg0, %c0_i32 : i32, i32
  }
}

module attributes {stable_mosaic.version = 11 : i64} {
  func.func @conv_bias_act_kernel(%arg0: i32, %arg1: memref<242x512xbf16, #tpu.memory_space<vmem>>, %arg2: memref<512x32xbf16, #tpu.memory_space<vmem>>, %arg3: memref<1x32xf32, #tpu.memory_space<vmem>>, %arg4: memref<242x32xbf16, #tpu.memory_space<vmem>>) attributes {dimension_semantics = [#tpu.dimension_semantics<parallel>], iteration_bounds = array<i64: 1>, scalar_prefetch = 0 : i64, scratch_operands = 0 : i64, tpu.core_type = #tpu.core_type<tc>, window_params = [{transform_indices = @transform_0, window_bounds = array<i64: 242, 512>}, {pipeline_mode = #tpu.pipeline_mode<synchronous>, transform_indices = @transform_1, window_bounds = array<i64: 512, 32>}, {pipeline_mode = #tpu.pipeline_mode<synchronous>, transform_indices = @transform_2, window_bounds = array<i64: 1, 32>}, {transform_indices = @transform_3, window_bounds = array<i64: 242, 32>}]} {
    %c0 = arith.constant 0 : index
    %c0_0 = arith.constant 0 : index
    %0 = vector.load %arg1[%c0, %c0_0] : memref<242x512xbf16, #tpu.memory_space<vmem>>, vector<242x512xbf16>
    %c0_1 = arith.constant 0 : index
    %c0_2 = arith.constant 0 : index
    %1 = vector.load %arg2[%c0_1, %c0_2] : memref<512x32xbf16, #tpu.memory_space<vmem>>, vector<512x32xbf16>
    %cst = arith.constant dense<0.000000e+00> : vector<242x32xf32>
    %2 = tpu.matmul %0, %1, %cst {dimension_numbers = #tpu.dot_dimension_numbers<[1], [0], [0], [1], [0, 0, 1, 1], [], []>} : vector<242x512xbf16>, vector<512x32xbf16>, vector<242x32xf32> -> vector<242x32xf32>
    %c0_3 = arith.constant 0 : index
    %c0_4 = arith.constant 0 : index
    %3 = vector.load %arg3[%c0_3, %c0_4] : memref<1x32xf32, #tpu.memory_space<vmem>>, vector<1x32xf32>
    %4 = vector.broadcast %3 : vector<1x32xf32> to vector<242x32xf32>
    %5 = arith.addf %2, %4 : vector<242x32xf32>
    %6 = arith.truncf %5 : vector<242x32xf32> to vector<242x32xbf16>
    %c0_5 = arith.constant 0 : index
    %c0_6 = arith.constant 0 : index
    %7 = vector.load %arg4[%c0_5, %c0_6] : memref<242x32xbf16, #tpu.memory_space<vmem>>, vector<242x32xbf16>
    tpu.vector_store %arg4[%c0_5, %c0_6], %6 {strides = array<i32>} : memref<242x32xbf16, #tpu.memory_space<vmem>>, vector<242x32xbf16>,
    return
  }
  func.func @transform_0(%arg0: i32) -> (i32, i32) {
    %c0_i32 = arith.constant 0 : i32
    %c0_i32_0 = arith.constant 0 : i32
    return %arg0, %c0_i32 : i32, i32
  }
  func.func @transform_1(%arg0: i32) -> (i32, i32) {
    %c0_i32 = arith.constant 0 : i32
    %c0_i32_0 = arith.constant 0 : i32
    %c0_i32_1 = arith.constant 0 : i32
    return %c0_i32, %c0_i32_0 : i32, i32
  }
  func.func @transform_2(%arg0: i32) -> (i32, i32) {
    %c0_i32 = arith.constant 0 : i32
    %c0_i32_0 = arith.constant 0 : i32
    %c0_i32_1 = arith.constant 0 : i32
    return %c0_i32, %c0_i32_0 : i32, i32
  }
  func.func @transform_3(%arg0: i32) -> (i32, i32) {
    %c0_i32 = arith.constant 0 : i32
    %c0_i32_0 = arith.constant 0 : i32
    return %arg0, %c0_i32 : i32, i32
  }
}

module attributes {stable_mosaic.version = 11 : i64} {
  func.func @conv_bn_act_fused_kernel(%arg0: i32, %arg1: memref<242x288xbf16, #tpu.memory_space<vmem>>, %arg2: memref<288x64xbf16, #tpu.memory_space<vmem>>, %arg3: memref<1x64xf32, #tpu.memory_space<vmem>>, %arg4: memref<1x64xf32, #tpu.memory_space<vmem>>, %arg5: memref<242x64xbf16, #tpu.memory_space<vmem>>, %arg6: memref<242x64xf32, #tpu.memory_space<vmem>>) attributes {dimension_semantics = [#tpu.dimension_semantics<arbitrary>], iteration_bounds = array<i64: 1>, scalar_prefetch = 0 : i64, scratch_operands = 1 : i64, tpu.core_type = #tpu.core_type<tc>, window_params = [{transform_indices = @transform_0, window_bounds = array<i64: 242, 288>}, {pipeline_mode = #tpu.pipeline_mode<synchronous>, transform_indices = @transform_1, window_bounds = array<i64: 288, 64>}, {pipeline_mode = #tpu.pipeline_mode<synchronous>, transform_indices = @transform_2, window_bounds = array<i64: 1, 64>}, {pipeline_mode = #tpu.pipeline_mode<synchronous>, transform_indices = @transform_3, window_bounds = array<i64: 1, 64>}, {pipeline_mode = #tpu.pipeline_mode<synchronous>, transform_indices = @transform_4, window_bounds = array<i64: 242, 64>}]} {
    %c0 = arith.constant 0 : index
    %c0_0 = arith.constant 0 : index
    %0 = vector.load %arg1[%c0, %c0_0] : memref<242x288xbf16, #tpu.memory_space<vmem>>, vector<242x288xbf16>
    %c0_1 = arith.constant 0 : index
    %c0_2 = arith.constant 0 : index
    %1 = vector.load %arg2[%c0_1, %c0_2] : memref<288x64xbf16, #tpu.memory_space<vmem>>, vector<288x64xbf16>
    %cst = arith.constant dense<0.000000e+00> : vector<242x64xf32>
    %2 = tpu.matmul %0, %1, %cst {dimension_numbers = #tpu.dot_dimension_numbers<[1], [0], [0], [1], [0, 0, 1, 1], [], []>} : vector<242x288xbf16>, vector<288x64xbf16>, vector<242x64xf32> -> vector<242x64xf32>
    %c0_3 = arith.constant 0 : index
    %c0_4 = arith.constant 0 : index
    %3 = vector.load %arg6[%c0_3, %c0_4] : memref<242x64xf32, #tpu.memory_space<vmem>>, vector<242x64xf32>
    tpu.vector_store %arg6[%c0_3, %c0_4], %2 {strides = array<i32>} : memref<242x64xf32, #tpu.memory_space<vmem>>, vector<242x64xf32>,
    %c0_i32 = arith.constant 0 : i32
    %4 = arith.cmpi eq, %arg0, %c0_i32 : i32
    %5 = arith.extui %4 : i1 to i32
    %c0_i32_5 = arith.constant 0 : i32
    %6 = arith.cmpi ne, %5, %c0_i32_5 : i32
    scf.if %6 {
      %c0_6 = arith.constant 0 : index
      %c0_7 = arith.constant 0 : index
      %7 = vector.load %arg6[%c0_6, %c0_7] : memref<242x64xf32, #tpu.memory_space<vmem>>, vector<242x64xf32>
      %cst_8 = arith.constant dense<0.000000e+00> : vector<64xf32>
      %8 = vector.multi_reduction <add>, %7, %cst_8 [0] : vector<242x64xf32> to vector<64xf32>
      %9 = vector.shape_cast %8 : vector<64xf32> to vector<1x64xf32>
      %cst_9 = arith.constant 0.00413223123 : f32
      %10 = vector.broadcast %cst_9 : f32 to vector<1x64xf32>
      %11 = arith.mulf %9, %10 : vector<1x64xf32>
      %12 = vector.broadcast %11 : vector<1x64xf32> to vector<242x64xf32>
      %13 = arith.subf %7, %12 : vector<242x64xf32>
      %14 = arith.mulf %13, %13 : vector<242x64xf32>
      %cst_10 = arith.constant dense<0.000000e+00> : vector<64xf32>
      %15 = vector.multi_reduction <add>, %14, %cst_10 [0] : vector<242x64xf32> to vector<64xf32>
      %16 = vector.shape_cast %15 : vector<64xf32> to vector<1x64xf32>
      %cst_11 = arith.constant 0.00413223123 : f32
      %17 = vector.broadcast %cst_11 : f32 to vector<1x64xf32>
      %18 = arith.mulf %16, %17 : vector<1x64xf32>
      %c0_12 = arith.constant 0 : index
      %c0_13 = arith.constant 0 : index
      %19 = vector.load %arg3[%c0_12, %c0_13] : memref<1x64xf32, #tpu.memory_space<vmem>>, vector<1x64xf32>
      %cst_14 = arith.constant 9.99999974E-6 : f32
      %20 = vector.broadcast %cst_14 : f32 to vector<1x64xf32>
      %21 = arith.addf %18, %20 : vector<1x64xf32>
      %22 = math.rsqrt %21 : vector<1x64xf32>
      %23 = arith.mulf %19, %22 : vector<1x64xf32>
      %c0_15 = arith.constant 0 : index
      %c0_16 = arith.constant 0 : index
      %24 = vector.load %arg4[%c0_15, %c0_16] : memref<1x64xf32, #tpu.memory_space<vmem>>, vector<1x64xf32>
      %25 = arith.mulf %11, %23 : vector<1x64xf32>
      %26 = arith.subf %24, %25 : vector<1x64xf32>
      %27 = vector.broadcast %23 : vector<1x64xf32> to vector<242x64xf32>
      %28 = arith.mulf %7, %27 : vector<242x64xf32>
      %29 = vector.broadcast %26 : vector<1x64xf32> to vector<242x64xf32>
      %30 = arith.addf %28, %29 : vector<242x64xf32>
      %cst_17 = arith.constant 0.000000e+00 : f32
      %31 = vector.broadcast %cst_17 : f32 to vector<242x64xf32>
      %32 = arith.cmpf oge, %30, %31 : vector<242x64xf32>
      %cst_18 = arith.constant 2.000000e-01 : f32
      %33 = vector.broadcast %cst_18 : f32 to vector<242x64xf32>
      %34 = arith.mulf %33, %30 : vector<242x64xf32>
      %35 = arith.select %32, %30, %34 : vector<242x64xi1>, vector<242x64xf32>
      %36 = arith.truncf %35 : vector<242x64xf32> to vector<242x64xbf16>
      %c0_19 = arith.constant 0 : index
      %c0_20 = arith.constant 0 : index
      %37 = vector.load %arg5[%c0_19, %c0_20] : memref<242x64xbf16, #tpu.memory_space<vmem>>, vector<242x64xbf16>
      tpu.vector_store %arg5[%c0_19, %c0_20], %36 {strides = array<i32>} : memref<242x64xbf16, #tpu.memory_space<vmem>>, vector<242x64xbf16>,
    } else {
    }
    return
  }
  func.func @transform_0(%arg0: i32) -> (i32, i32) {
    %c0_i32 = arith.constant 0 : i32
    %c0_i32_0 = arith.constant 0 : i32
    return %arg0, %c0_i32 : i32, i32
  }
  func.func @transform_1(%arg0: i32) -> (i32, i32) {
    %c0_i32 = arith.constant 0 : i32
    %c0_i32_0 = arith.constant 0 : i32
    %c0_i32_1 = arith.constant 0 : i32
    return %c0_i32, %c0_i32_0 : i32, i32
  }
  func.func @transform_2(%arg0: i32) -> (i32, i32) {
    %c0_i32 = arith.constant 0 : i32
    %c0_i32_0 = arith.constant 0 : i32
    %c0_i32_1 = arith.constant 0 : i32
    return %c0_i32, %c0_i32_0 : i32, i32
  }
  func.func @transform_3(%arg0: i32) -> (i32, i32) {
    %c0_i32 = arith.constant 0 : i32
    %c0_i32_0 = arith.constant 0 : i32
    %c0_i32_1 = arith.constant 0 : i32
    return %c0_i32, %c0_i32_0 : i32, i32
  }
  func.func @transform_4(%arg0: i32) -> (i32, i32) {
    %c0_i32 = arith.constant 0 : i32
    %c0_i32_0 = arith.constant 0 : i32
    %c0_i32_1 = arith.constant 0 : i32
    return %c0_i32, %c0_i32_0 : i32, i32
  }
}

module attributes {stable_mosaic.version = 11 : i64} {
  func.func @conv_bias_act_kernel(%arg0: i32, %arg1: memref<32x1024xbf16, #tpu.memory_space<vmem>>, %arg2: memref<1024x64xbf16, #tpu.memory_space<vmem>>, %arg3: memref<1x64xf32, #tpu.memory_space<vmem>>, %arg4: memref<32x64xbf16, #tpu.memory_space<vmem>>) attributes {dimension_semantics = [#tpu.dimension_semantics<parallel>], iteration_bounds = array<i64: 1>, scalar_prefetch = 0 : i64, scratch_operands = 0 : i64, tpu.core_type = #tpu.core_type<tc>, window_params = [{transform_indices = @transform_0, window_bounds = array<i64: 32, 1024>}, {pipeline_mode = #tpu.pipeline_mode<synchronous>, transform_indices = @transform_1, window_bounds = array<i64: 1024, 64>}, {pipeline_mode = #tpu.pipeline_mode<synchronous>, transform_indices = @transform_2, window_bounds = array<i64: 1, 64>}, {transform_indices = @transform_3, window_bounds = array<i64: 32, 64>}]} {
    %c0 = arith.constant 0 : index
    %c0_0 = arith.constant 0 : index
    %0 = vector.load %arg1[%c0, %c0_0] : memref<32x1024xbf16, #tpu.memory_space<vmem>>, vector<32x1024xbf16>
    %c0_1 = arith.constant 0 : index
    %c0_2 = arith.constant 0 : index
    %1 = vector.load %arg2[%c0_1, %c0_2] : memref<1024x64xbf16, #tpu.memory_space<vmem>>, vector<1024x64xbf16>
    %cst = arith.constant dense<0.000000e+00> : vector<32x64xf32>
    %2 = tpu.matmul %0, %1, %cst {dimension_numbers = #tpu.dot_dimension_numbers<[1], [0], [0], [1], [0, 0, 1, 1], [], []>} : vector<32x1024xbf16>, vector<1024x64xbf16>, vector<32x64xf32> -> vector<32x64xf32>
    %c0_3 = arith.constant 0 : index
    %c0_4 = arith.constant 0 : index
    %3 = vector.load %arg3[%c0_3, %c0_4] : memref<1x64xf32, #tpu.memory_space<vmem>>, vector<1x64xf32>
    %4 = vector.broadcast %3 : vector<1x64xf32> to vector<32x64xf32>
    %5 = arith.addf %2, %4 : vector<32x64xf32>
    %6 = arith.truncf %5 : vector<32x64xf32> to vector<32x64xbf16>
    %c0_5 = arith.constant 0 : index
    %c0_6 = arith.constant 0 : index
    %7 = vector.load %arg4[%c0_5, %c0_6] : memref<32x64xbf16, #tpu.memory_space<vmem>>, vector<32x64xbf16>
    tpu.vector_store %arg4[%c0_5, %c0_6], %6 {strides = array<i32>} : memref<32x64xbf16, #tpu.memory_space<vmem>>, vector<32x64xbf16>,
    return
  }
  func.func @transform_0(%arg0: i32) -> (i32, i32) {
    %c0_i32 = arith.constant 0 : i32
    %c0_i32_0 = arith.constant 0 : i32
    return %arg0, %c0_i32 : i32, i32
  }
  func.func @transform_1(%arg0: i32) -> (i32, i32) {
    %c0_i32 = arith.constant 0 : i32
    %c0_i32_0 = arith.constant 0 : i32
    %c0_i32_1 = arith.constant 0 : i32
    return %c0_i32, %c0_i32_0 : i32, i32
  }
  func.func @transform_2(%arg0: i32) -> (i32, i32) {
    %c0_i32 = arith.constant 0 : i32
    %c0_i32_0 = arith.constant 0 : i32
    %c0_i32_1 = arith.constant 0 : i32
    return %c0_i32, %c0_i32_0 : i32, i32
  }
  func.func @transform_3(%arg0: i32) -> (i32, i32) {
    %c0_i32 = arith.constant 0 : i32
    %c0_i32_0 = arith.constant 0 : i32
    return %arg0, %c0_i32 : i32, i32
  }
}

module attributes {stable_mosaic.version = 11 : i64} {
  func.func @conv_bn_act_fused_kernel(%arg0: i32, %arg1: memref<32x576xbf16, #tpu.memory_space<vmem>>, %arg2: memref<576x128xbf16, #tpu.memory_space<vmem>>, %arg3: memref<1x128xf32, #tpu.memory_space<vmem>>, %arg4: memref<1x128xf32, #tpu.memory_space<vmem>>, %arg5: memref<32x128xbf16, #tpu.memory_space<vmem>>, %arg6: memref<32x128xf32, #tpu.memory_space<vmem>>) attributes {dimension_semantics = [#tpu.dimension_semantics<arbitrary>], iteration_bounds = array<i64: 1>, scalar_prefetch = 0 : i64, scratch_operands = 1 : i64, tpu.core_type = #tpu.core_type<tc>, window_params = [{transform_indices = @transform_0, window_bounds = array<i64: 32, 576>}, {pipeline_mode = #tpu.pipeline_mode<synchronous>, transform_indices = @transform_1, window_bounds = array<i64: 576, 128>}, {pipeline_mode = #tpu.pipeline_mode<synchronous>, transform_indices = @transform_2, window_bounds = array<i64: 1, 128>}, {pipeline_mode = #tpu.pipeline_mode<synchronous>, transform_indices = @transform_3, window_bounds = array<i64: 1, 128>}, {pipeline_mode = #tpu.pipeline_mode<synchronous>, transform_indices = @transform_4, window_bounds = array<i64: 32, 128>}]} {
    %c0 = arith.constant 0 : index
    %c0_0 = arith.constant 0 : index
    %0 = vector.load %arg1[%c0, %c0_0] : memref<32x576xbf16, #tpu.memory_space<vmem>>, vector<32x576xbf16>
    %c0_1 = arith.constant 0 : index
    %c0_2 = arith.constant 0 : index
    %1 = vector.load %arg2[%c0_1, %c0_2] : memref<576x128xbf16, #tpu.memory_space<vmem>>, vector<576x128xbf16>
    %cst = arith.constant dense<0.000000e+00> : vector<32x128xf32>
    %2 = tpu.matmul %0, %1, %cst {dimension_numbers = #tpu.dot_dimension_numbers<[1], [0], [0], [1], [0, 0, 1, 1], [], []>} : vector<32x576xbf16>, vector<576x128xbf16>, vector<32x128xf32> -> vector<32x128xf32>
    %c0_3 = arith.constant 0 : index
    %c0_4 = arith.constant 0 : index
    %3 = vector.load %arg6[%c0_3, %c0_4] : memref<32x128xf32, #tpu.memory_space<vmem>>, vector<32x128xf32>
    tpu.vector_store %arg6[%c0_3, %c0_4], %2 {strides = array<i32>} : memref<32x128xf32, #tpu.memory_space<vmem>>, vector<32x128xf32>,
    %c0_i32 = arith.constant 0 : i32
    %4 = arith.cmpi eq, %arg0, %c0_i32 : i32
    %5 = arith.extui %4 : i1 to i32
    %c0_i32_5 = arith.constant 0 : i32
    %6 = arith.cmpi ne, %5, %c0_i32_5 : i32
    scf.if %6 {
      %c0_6 = arith.constant 0 : index
      %c0_7 = arith.constant 0 : index
      %7 = vector.load %arg6[%c0_6, %c0_7] : memref<32x128xf32, #tpu.memory_space<vmem>>, vector<32x128xf32>
      %cst_8 = arith.constant dense<0.000000e+00> : vector<128xf32>
      %8 = vector.multi_reduction <add>, %7, %cst_8 [0] : vector<32x128xf32> to vector<128xf32>
      %9 = vector.shape_cast %8 : vector<128xf32> to vector<1x128xf32>
      %cst_9 = arith.constant 3.125000e-02 : f32
      %10 = vector.broadcast %cst_9 : f32 to vector<1x128xf32>
      %11 = arith.mulf %9, %10 : vector<1x128xf32>
      %12 = vector.broadcast %11 : vector<1x128xf32> to vector<32x128xf32>
      %13 = arith.subf %7, %12 : vector<32x128xf32>
      %14 = arith.mulf %13, %13 : vector<32x128xf32>
      %cst_10 = arith.constant dense<0.000000e+00> : vector<128xf32>
      %15 = vector.multi_reduction <add>, %14, %cst_10 [0] : vector<32x128xf32> to vector<128xf32>
      %16 = vector.shape_cast %15 : vector<128xf32> to vector<1x128xf32>
      %cst_11 = arith.constant 3.125000e-02 : f32
      %17 = vector.broadcast %cst_11 : f32 to vector<1x128xf32>
      %18 = arith.mulf %16, %17 : vector<1x128xf32>
      %c0_12 = arith.constant 0 : index
      %c0_13 = arith.constant 0 : index
      %19 = vector.load %arg3[%c0_12, %c0_13] : memref<1x128xf32, #tpu.memory_space<vmem>>, vector<1x128xf32>
      %cst_14 = arith.constant 9.99999974E-6 : f32
      %20 = vector.broadcast %cst_14 : f32 to vector<1x128xf32>
      %21 = arith.addf %18, %20 : vector<1x128xf32>
      %22 = math.rsqrt %21 : vector<1x128xf32>
      %23 = arith.mulf %19, %22 : vector<1x128xf32>
      %c0_15 = arith.constant 0 : index
      %c0_16 = arith.constant 0 : index
      %24 = vector.load %arg4[%c0_15, %c0_16] : memref<1x128xf32, #tpu.memory_space<vmem>>, vector<1x128xf32>
      %25 = arith.mulf %11, %23 : vector<1x128xf32>
      %26 = arith.subf %24, %25 : vector<1x128xf32>
      %27 = vector.broadcast %23 : vector<1x128xf32> to vector<32x128xf32>
      %28 = arith.mulf %7, %27 : vector<32x128xf32>
      %29 = vector.broadcast %26 : vector<1x128xf32> to vector<32x128xf32>
      %30 = arith.addf %28, %29 : vector<32x128xf32>
      %cst_17 = arith.constant 0.000000e+00 : f32
      %31 = vector.broadcast %cst_17 : f32 to vector<32x128xf32>
      %32 = arith.cmpf oge, %30, %31 : vector<32x128xf32>
      %cst_18 = arith.constant 2.000000e-01 : f32
      %33 = vector.broadcast %cst_18 : f32 to vector<32x128xf32>
      %34 = arith.mulf %33, %30 : vector<32x128xf32>
      %35 = arith.select %32, %30, %34 : vector<32x128xi1>, vector<32x128xf32>
      %36 = arith.truncf %35 : vector<32x128xf32> to vector<32x128xbf16>
      %c0_19 = arith.constant 0 : index
      %c0_20 = arith.constant 0 : index
      %37 = vector.load %arg5[%c0_19, %c0_20] : memref<32x128xbf16, #tpu.memory_space<vmem>>, vector<32x128xbf16>
      tpu.vector_store %arg5[%c0_19, %c0_20], %36 {strides = array<i32>} : memref<32x128xbf16, #tpu.memory_space<vmem>>, vector<32x128xbf16>,
    } else {
    }
    return
  }
  func.func @transform_0(%arg0: i32) -> (i32, i32) {
    %c0_i32 = arith.constant 0 : i32
    %c0_i32_0 = arith.constant 0 : i32
    return %arg0, %c0_i32 : i32, i32
  }
  func.func @transform_1(%arg0: i32) -> (i32, i32) {
    %c0_i32 = arith.constant 0 : i32
    %c0_i32_0 = arith.constant 0 : i32
    %c0_i32_1 = arith.constant 0 : i32
    return %c0_i32, %c0_i32_0 : i32, i32
  }
  func.func @transform_2(%arg0: i32) -> (i32, i32) {
    %c0_i32 = arith.constant 0 : i32
    %c0_i32_0 = arith.constant 0 : i32
    %c0_i32_1 = arith.constant 0 : i32
    return %c0_i32, %c0_i32_0 : i32, i32
  }
  func.func @transform_3(%arg0: i32) -> (i32, i32) {
    %c0_i32 = arith.constant 0 : i32
    %c0_i32_0 = arith.constant 0 : i32
    %c0_i32_1 = arith.constant 0 : i32
    return %c0_i32, %c0_i32_0 : i32, i32
  }
  func.func @transform_4(%arg0: i32) -> (i32, i32) {
    %c0_i32 = arith.constant 0 : i32
    %c0_i32_0 = arith.constant 0 : i32
    %c0_i32_1 = arith.constant 0 : i32
    return %c0_i32, %c0_i32_0 : i32, i32
  }
}

module attributes {stable_mosaic.version = 11 : i64} {
  func.func @final_conv_gap_kernel(%arg0: memref<2x4x1152xbf16, #tpu.memory_space<vmem>>, %arg1: memref<1152x1xbf16, #tpu.memory_space<vmem>>, %arg2: memref<1x1xf32, #tpu.memory_space<vmem>>, %arg3: memref<2x1xf32, #tpu.memory_space<vmem>>) attributes {dimension_semantics = [], scalar_prefetch = 0 : i64, scratch_operands = 0 : i64, tpu.core_type = #tpu.core_type<tc>} {
    %c0 = arith.constant 0 : index
    %c0_0 = arith.constant 0 : index
    %c0_1 = arith.constant 0 : index
    %0 = vector.load %arg0[%c0, %c0_0, %c0_1] : memref<2x4x1152xbf16, #tpu.memory_space<vmem>>, vector<2x4x1152xbf16>
    %1 = arith.extf %0 : vector<2x4x1152xbf16> to vector<2x4x1152xf32>
    %cst = arith.constant dense<0.000000e+00> : vector<2x1152xf32>
    %2 = vector.multi_reduction <add>, %1, %cst [1] : vector<2x4x1152xf32> to vector<2x1152xf32>
    %c0_2 = arith.constant 0 : index
    %c0_3 = arith.constant 0 : index
    %3 = vector.load %arg1[%c0_2, %c0_3] : memref<1152x1xbf16, #tpu.memory_space<vmem>>, vector<1152x1xbf16>
    %4 = arith.extf %3 : vector<1152x1xbf16> to vector<1152x1xf32>
    %cst_4 = arith.constant dense<0.000000e+00> : vector<2x1xf32>
    %5 = tpu.matmul %2, %4, %cst_4 {dimension_numbers = #tpu.dot_dimension_numbers<[1], [0], [0], [1], [0, 0, 1, 1], [], []>} : vector<2x1152xf32>, vector<1152x1xf32>, vector<2x1xf32> -> vector<2x1xf32>
    %cst_5 = arith.constant 2.500000e-01 : f32
    %6 = vector.broadcast %cst_5 : f32 to vector<2x1xf32>
    %7 = arith.mulf %5, %6 : vector<2x1xf32>
    %c0_6 = arith.constant 0 : index
    %c0_7 = arith.constant 0 : index
    %8 = vector.load %arg2[%c0_6, %c0_7] : memref<1x1xf32, #tpu.memory_space<vmem>>, vector<1x1xf32>
    %9 = vector.broadcast %8 : vector<1x1xf32> to vector<2x1xf32>
    %10 = arith.addf %7, %9 : vector<2x1xf32>
    %c0_8 = arith.constant 0 : index
    %c0_9 = arith.constant 0 : index
    %11 = vector.load %arg3[%c0_8, %c0_9] : memref<2x1xf32, #tpu.memory_space<vmem>>, vector<2x1xf32>
    tpu.vector_store %arg3[%c0_8, %c0_9], %10 {strides = array<i32>} : memref<2x1xf32, #tpu.memory_space<vmem>>, vector<2x1xf32>,
    return
  }
}

</mosaic_0001>

<llo_original>
// kernel: discriminator_forward.6
$region0: #{discriminator_forward.6}
  #allocation0 [shape = 'u32[]', space=smem, size = 0x4, offset = 0x4, fixed_abs, tag = 'smem constant byte address 0x4 - core index']
  #allocation1 [shape = 'u32[144,128]{1,0:T(1,128)}', space=vmem, size = 0x12000, scoped, tag = 'internal scratch']
  %s0 = inlined_call_operand.vmem [shape: bf16[1152,27], index: 0, kind: input, shape index: {}]
  %s1 = inlined_call_operand.vmem [shape: bf16[27,32], index: 1, kind: input, shape index: {}]
  %s2 = inlined_call_operand.vmem [shape: f32[1,32], index: 2, kind: input, shape index: {}]
  %s3 = inlined_call_operand.vmem [shape: bf16[1152,32], index: 3, kind: output, shape index: {}]
  %s4 = sld [smem:[#allocation0]]
  $region45: #{discriminator_forward.6} parent=0
    _
  %s6 = ssub.s32 1, %s4
  %s7 = scalar_select 0, %s6, %s4
  loop: start=0, step=1, limit=5
  $region2: #{discriminator_forward.6} parent=0 // loop_pre_header
    _
  $region3: #{discriminator_forward.6} parent=0 // loop_header
    %s9 = sphi 0, %s13
    %p10 = scmp.ge.s32.totalorder %s9, 5
    %s19 = sphi 0, %s21
    %s22 = sphi 0, %s19
    %s23 = sphi 0, %s22
    %s39 = sphi 0, %s23
    %s43 = sphi 0, %s43
    %s45 = sphi 0, %s43
    %s46 = sphi 0, %s45
    %s60 = sphi 0, %s46
    %s64 = sphi 0, %s64
    %s66 = sphi 0, %s64
    %s67 = sphi 0, %s66
    %s81 = sphi 0, %s67
    %s87 = sphi 0, %s89
    %s90 = sphi 0, %s87
    %s91 = sphi 0, %s90
    %s107 = sphi 0, %s91
  $region4: #{discriminator_forward.6} parent=0 // loop_header_branch
    %12 = sbr.rel (%p10) target = $region8
  $region5: #{discriminator_forward.6} parent=0 // loop_body
    %s14 = ssub.s32 %s9, 1
    %s15 = ssub.s32 %s9, 2
    %s16 = sadd.s32 %s9, 1
    %s17 = ssub.s32 %s9, %s16
    %p18 = scmp.eq.s32.totalorder %s17, 0
    %s20 = sadd.s32 %s19, 1
    %s21 = scalar_select %p18, %s19, %s20
    %p24 = pneg %p18
    %p25 = scmp.eq.s32.totalorder %s9, 2
    %p26 = por %p24, %p25
    %p27 = scmp.ne.s32.totalorder %s19, %s22
    %p28 = scmp.eq.s32.totalorder %s9, 0
    %p29 = por %p27, %p28
    %p30 = scmp.ne.s32.totalorder %s19, %s22
    %p31 = scmp.eq.s32.totalorder %s14, 2
    %p32 = por %p30, %p31
    %p33 = scmp.ne.s32.totalorder %s22, %s23
    %p34 = scmp.eq.s32.totalorder %s14, 0
    %p35 = por %p33, %p34
    %p36 = scmp.ne.s32.totalorder %s22, %s23
    %p37 = scmp.eq.s32.totalorder %s15, 2
    %p38 = por %p36, %p37
    %p40 = scmp.ne.s32.totalorder %s23, %s39
    %p41 = scmp.eq.s32.totalorder %s15, 0
    %p42 = por %p40, %p41
    %s44 = sadd.s32 %s43, 1
    %p47 = scmp.eq.s32.totalorder %s9, 2
    %p48 = scmp.ne.s32.totalorder %s43, %s45
    %p49 = scmp.eq.s32.totalorder %s9, 0
    %p50 = por %p48, %p49
    %p51 = scmp.ne.s32.totalorder %s43, %s45
    %p52 = scmp.eq.s32.totalorder %s14, 2
    %p53 = por %p51, %p52
    %p54 = scmp.ne.s32.totalorder %s45, %s46
    %p55 = scmp.eq.s32.totalorder %s14, 0
    %p56 = por %p54, %p55
    %p57 = scmp.ne.s32.totalorder %s45, %s46
    %p58 = scmp.eq.s32.totalorder %s15, 2
    %p59 = por %p57, %p58
    %p61 = scmp.ne.s32.totalorder %s46, %s60
    %p62 = scmp.eq.s32.totalorder %s15, 0
    %p63 = por %p61, %p62
    %s65 = sadd.s32 %s64, 1
    %p68 = scmp.eq.s32.totalorder %s9, 2
    %p69 = scmp.ne.s32.totalorder %s64, %s66
    %p70 = scmp.eq.s32.totalorder %s9, 0
    %p71 = por %p69, %p70
    %p72 = scmp.ne.s32.totalorder %s64, %s66
    %p73 = scmp.eq.s32.totalorder %s14, 2
    %p74 = por %p72, %p73
    %p75 = scmp.ne.s32.totalorder %s66, %s67
    %p76 = scmp.eq.s32.totalorder %s14, 0
    %p77 = por %p75, %p76
    %p78 = scmp.ne.s32.totalorder %s66, %s67
    %p79 = scmp.eq.s32.totalorder %s15, 2
    %p80 = por %p78, %p79
    %p82 = scmp.ne.s32.totalorder %s67, %s81
    %p83 = scmp.eq.s32.totalorder %s15, 0
    %p84 = por %p82, %p83
    %s85 = ssub.s32 %s9, %s16
    %p86 = scmp.eq.s32.totalorder %s85, 0
    %s88 = sadd.s32 %s87, 1
    %s89 = scalar_select %p86, %s87, %s88
    %p92 = pneg %p86
    %p93 = scmp.eq.s32.totalorder %s9, 2
    %p94 = por %p92, %p93
    %p95 = scmp.ne.s32.totalorder %s87, %s90
    %p96 = scmp.eq.s32.totalorder %s9, 0
    %p97 = por %p95, %p96
    %p98 = scmp.ne.s32.totalorder %s87, %s90
    %p99 = scmp.eq.s32.totalorder %s14, 2
    %p100 = por %p98, %p99
    %p101 = scmp.ne.s32.totalorder %s90, %s91
    %p102 = scmp.eq.s32.totalorder %s14, 0
    %p103 = por %p101, %p102
    %p104 = scmp.ne.s32.totalorder %s90, %s91
    %p105 = scmp.eq.s32.totalorder %s15, 2
    %p106 = por %p104, %p105
    %p108 = scmp.ne.s32.totalorder %s91, %s107
    %p109 = scmp.eq.s32.totalorder %s15, 0
    %p110 = por %p108, %p109
    %p111 = scmp.le.s32.totalorder 1, %s9
    %p112 = scmp.lt.s32.totalorder %s9, 4
    %p113 = pnand %p111, %p112
    %p114 = pneg %p113
    // Predicated region
    $region9: #{discriminator_forward.6} parent=5 // pred_check
      _
    $region10: #{discriminator_forward.6} parent=5 // pred_check_branch
      %116 = sbr.rel (%p113) target = $region12
    $region11: #{discriminator_forward.6} parent=5 // pred_region
      %s117 = ssub.s32 %s9, 1
      // Predicated region
      $region13: #{discriminator_forward.6} parent=11 // pred_check
        %p118 = pneg %p56
      $region14: #{discriminator_forward.6} parent=11 // pred_check_branch
        %120 = sbr.rel (%p118) target = $region16
      $region15: #{discriminator_forward.6} parent=11 // pred_region
        _
      $region16: #{discriminator_forward.6} parent=11 // pred_fallthru
        _
      // Predicated region
      $region17: #{discriminator_forward.6} parent=11 // pred_check
        %p121 = pneg %p77
      $region18: #{discriminator_forward.6} parent=11 // pred_check_branch
        %123 = sbr.rel (%p121) target = $region20
      $region19: #{discriminator_forward.6} parent=11 // pred_region
        _
      $region20: #{discriminator_forward.6} parent=11 // pred_fallthru
        _
    $region12: #{discriminator_forward.6} parent=5 // pred_fallthru
      _
    %p124 = scmp.lt.s32.totalorder %s9, 3
    // Predicated region
    $region21: #{discriminator_forward.6} parent=5 // pred_check
      %p125 = pneg %p124
    $region22: #{discriminator_forward.6} parent=5 // pred_check_branch
      %127 = sbr.rel (%p125) target = $region24
    $region23: #{discriminator_forward.6} parent=5 // pred_region
      // Predicated region
      $region25: #{discriminator_forward.6} parent=23 // pred_check
        %p128 = pneg %p29
      $region26: #{discriminator_forward.6} parent=23 // pred_check_branch
        %130 = sbr.rel (%p128) target = $region28
      $region27: #{discriminator_forward.6} parent=23 // pred_region
        %s131 = smul.u32 48, %s9
        %p132 = scmp.lt.s32.totalorder %s131, 143
        %s133 = scalar_select %p132, %s131, 143
        %s134 = smul.addr %s133, 4
        %s135 = scalar_lea.vmem %s0, %s134
        %s136 = smul.u32 48, %s9
      $region28: #{discriminator_forward.6} parent=23 // pred_fallthru
        _
    $region24: #{discriminator_forward.6} parent=5 // pred_fallthru
      _
    %p137 = scmp.le.s32.totalorder 1, %s9
    %p138 = scmp.lt.s32.totalorder %s9, 4
    %p139 = pnand %p137, %p138
    %p140 = pneg %p139
    // Predicated region
    $region29: #{discriminator_forward.6} parent=5 // pred_check
      _
    $region30: #{discriminator_forward.6} parent=5 // pred_check_branch
      %142 = sbr.rel (%p139) target = $region32
    $region31: #{discriminator_forward.6} parent=5 // pred_region
      %s143 = ssub.s32 %s9, 1
      %s144 = smul.u32 48, %s14
      %p145 = scmp.lt.s32.totalorder %s144, 143
      %s146 = scalar_select %p145, %s144, 143
      %s147 = smul.addr %s146, 4
      %s148 = scalar_lea.vmem %s0, %s147
      %p149 = pneg %p35
      %p150 = pneg %p32
      %p151 = pneg %p56
      %p152 = pneg %p53
      %p153 = pneg %p77
      %p154 = pneg %p74
      %p155 = pneg %p103
      %p156 = pneg %p100
      %s157 = smul.u32 48, %s14
      %p158 = scmp.lt.s32.totalorder %s157, 143
      %s159 = scalar_select %p158, %s157, 143
      %s160 = smul.addr %s159, 4
      %s161 = scalar_lea.vmem %s3, %s160
      %s162 = smul.u32 48, %s14
      %p163 = scmp.lt.s32.totalorder %s162, 143
      %s164 = scalar_select %p163, %s162, 143
      %s165 = smul.addr %s164, 4
      %s166 = scalar_lea.vmem %s0, %s165
      %s167 = smul.u32 48, %s14
      %s168 = smul.u32 48, %s14
      %p169 = scmp.lt.s32.totalorder %s168, 143
      %s170 = scalar_select %p169, %s168, 143
      %s171 = smul.addr %s170, 4
      %s172 = scalar_lea.vmem %s3, %s171
      %s173 = smul.u32 48, %s14
      %v175 = vld [vmem:[%s166] sm:$0xf]
      %v176 = vld [vmem:[%s166 + $0x4] sm:$0xf]
      %v177 = vld [vmem:[%s166 + $0x8] sm:$0xf]
      %v178 = vld [vmem:[%s166 + $0xc] sm:$0xf]
      %v179 = vld [vmem:[%s166 + $0x10] sm:$0xf]
      %v180 = vld [vmem:[%s166 + $0x14] sm:$0xf]
      %v181 = vld [vmem:[%s166 + $0x18] sm:$0xf]
      %v182 = vld [vmem:[%s166 + $0x1c] sm:$0xf]
      %v183 = vld [vmem:[%s166 + $0x20] sm:$0xf]
      %v184 = vld [vmem:[%s166 + $0x24] sm:$0xf]
      %v185 = vld [vmem:[%s166 + $0x28] sm:$0xf]
      %v186 = vld [vmem:[%s166 + $0x2c] sm:$0xf]
      %v187 = vld [vmem:[%s166 + $0x30] sm:$0xf]
      %v188 = vld [vmem:[%s166 + $0x34] sm:$0xf]
      %v189 = vld [vmem:[%s166 + $0x38] sm:$0xf]
      %v190 = vld [vmem:[%s166 + $0x3c] sm:$0xf]
      %v191 = vld [vmem:[%s166 + $0x40] sm:$0xf]
      %v192 = vld [vmem:[%s166 + $0x44] sm:$0xf]
      %v193 = vld [vmem:[%s166 + $0x48] sm:$0xf]
      %v194 = vld [vmem:[%s166 + $0x4c] sm:$0xf]
      %v195 = vld [vmem:[%s166 + $0x50] sm:$0xf]
      %v196 = vld [vmem:[%s166 + $0x54] sm:$0xf]
      %v197 = vld [vmem:[%s166 + $0x58] sm:$0xf]
      %v198 = vld [vmem:[%s166 + $0x5c] sm:$0xf]
      %v199 = vld [vmem:[%s166 + $0x60] sm:$0xf]
      %v200 = vld [vmem:[%s166 + $0x64] sm:$0xf]
      %v201 = vld [vmem:[%s166 + $0x68] sm:$0xf]
      %v202 = vld [vmem:[%s166 + $0x6c] sm:$0xf]
      %v203 = vld [vmem:[%s166 + $0x70] sm:$0xf]
      %v204 = vld [vmem:[%s166 + $0x74] sm:$0xf]
      %v205 = vld [vmem:[%s166 + $0x78] sm:$0xf]
      %v206 = vld [vmem:[%s166 + $0x7c] sm:$0xf]
      %v207 = vld [vmem:[%s166 + $0x80] sm:$0xf]
      %v208 = vld [vmem:[%s166 + $0x84] sm:$0xf]
      %v209 = vld [vmem:[%s166 + $0x88] sm:$0xf]
      %v210 = vld [vmem:[%s166 + $0x8c] sm:$0xf]
      %v211 = vld [vmem:[%s166 + $0x90] sm:$0xf]
      %v212 = vld [vmem:[%s166 + $0x94] sm:$0xf]
      %v213 = vld [vmem:[%s166 + $0x98] sm:$0xf]
      %v214 = vld [vmem:[%s166 + $0x9c] sm:$0xf]
      %v215 = vld [vmem:[%s166 + $0xa0] sm:$0xf]
      %v216 = vld [vmem:[%s166 + $0xa4] sm:$0xf]
      %v217 = vld [vmem:[%s166 + $0xa8] sm:$0xf]
      %v218 = vld [vmem:[%s166 + $0xac] sm:$0xf]
      %v219 = vld [vmem:[%s166 + $0xb0] sm:$0xf]
      %v220 = vld [vmem:[%s166 + $0xb4] sm:$0xf]
      %v221 = vld [vmem:[%s166 + $0xb8] sm:$0xf]
      %v222 = vld [vmem:[%s166 + $0xbc] sm:$0xf]
      %v223 = vld [vmem:[%s1] sm:$0xf]
      %v224 = vld [vmem:[%s1 + $0x4] sm:$0xf]
      %v225 = vld [vmem:[%s1 + $0x8] sm:$0xf]
      %v226 = vld [vmem:[%s1 + $0xc] sm:$0x3]
      %v227 = vld [vmem:[%s2] sm:$0x1]
      %v229 = vlaneseq
      %v230 = vshrl.u32 %v229, 7
      %v231 = vsub.s32 0, %v230
      %v232 = vrot.slane %v227, %v231
      %v282 = vunpack.c.l.b16 %v175
      %v283 = vunpack.c.l.b16 %v176
      %v284 = vunpack.c.l.b16 %v177
      %v285 = vunpack.c.l.b16 %v178
      %v286 = vunpack.c.l.b16 %v179
      %v287 = vunpack.c.l.b16 %v180
      %v288 = vunpack.c.l.b16 %v181
      %v289 = vunpack.c.l.b16 %v182
      %v290 = vunpack.c.l.b16 %v183
      %v291 = vunpack.c.l.b16 %v184
      %v292 = vunpack.c.l.b16 %v185
      %v293 = vunpack.c.l.b16 %v186
      %v294 = vunpack.c.l.b16 %v187
      %v295 = vunpack.c.l.b16 %v188
      %v296 = vunpack.c.l.b16 %v189
      %v297 = vunpack.c.l.b16 %v190
      %v298 = vunpack.c.l.b16 %v191
      %v299 = vunpack.c.l.b16 %v192
      %v300 = vunpack.c.l.b16 %v193
      %v301 = vunpack.c.l.b16 %v194
      %v302 = vunpack.c.l.b16 %v195
      %v303 = vunpack.c.l.b16 %v196
      %v304 = vunpack.c.l.b16 %v197
      %v305 = vunpack.c.l.b16 %v198
      %v306 = vunpack.c.l.b16 %v199
      %v307 = vunpack.c.l.b16 %v200
      %v308 = vunpack.c.l.b16 %v201
      %v309 = vunpack.c.l.b16 %v202
      %v310 = vunpack.c.l.b16 %v203
      %v311 = vunpack.c.l.b16 %v204
      %v312 = vunpack.c.l.b16 %v205
      %v313 = vunpack.c.l.b16 %v206
      %v314 = vunpack.c.l.b16 %v207
      %v315 = vunpack.c.l.b16 %v208
      %v316 = vunpack.c.l.b16 %v209
      %v317 = vunpack.c.l.b16 %v210
      %v318 = vunpack.c.l.b16 %v211
      %v319 = vunpack.c.l.b16 %v212
      %v320 = vunpack.c.l.b16 %v213
      %v321 = vunpack.c.l.b16 %v214
      %v322 = vunpack.c.l.b16 %v215
      %v323 = vunpack.c.l.b16 %v216
      %v324 = vunpack.c.l.b16 %v217
      %v325 = vunpack.c.l.b16 %v218
      %v326 = vunpack.c.l.b16 %v219
      %v327 = vunpack.c.l.b16 %v220
      %v328 = vunpack.c.l.b16 %v221
      %v329 = vunpack.c.l.b16 %v222
      %v330 = vpack.c.b16 %v283, %v282
      %v331 = vpack.c.b16 %v285, %v284
      %v332 = vpack.c.b16 %v287, %v286
      %v333 = vpack.c.b16 %v289, %v288
      %v334 = vpack.c.b16 %v291, %v290
      %v335 = vpack.c.b16 %v293, %v292
      %v336 = vpack.c.b16 %v295, %v294
      %v337 = vpack.c.b16 %v297, %v296
      %v338 = vpack.c.b16 %v299, %v298
      %v339 = vpack.c.b16 %v301, %v300
      %v340 = vpack.c.b16 %v303, %v302
      %v341 = vpack.c.b16 %v305, %v304
      %v342 = vpack.c.b16 %v307, %v306
      %v343 = vpack.c.b16 %v309, %v308
      %v344 = vpack.c.b16 %v311, %v310
      %v345 = vpack.c.b16 %v313, %v312
      %v346 = vpack.c.b16 %v315, %v314
      %v347 = vpack.c.b16 %v317, %v316
      %v348 = vpack.c.b16 %v319, %v318
      %v349 = vpack.c.b16 %v321, %v320
      %v350 = vpack.c.b16 %v323, %v322
      %v351 = vpack.c.b16 %v325, %v324
      %v352 = vpack.c.b16 %v327, %v326
      %v353 = vpack.c.b16 %v329, %v328
      %v358 = vunpack.c.l.b16 %v223
      %v359 = vunpack.c.l.b16 %v224
      %v360 = vunpack.c.l.b16 %v225
      %v361 = vunpack.c.l.b16 %v226
      %v362 = vpack.c.b16 %v359, %v358
      %v363 = vpack.c.b16 %v361, %v360
      %vm365 = vcmask 220160
      %v367 = vsel %vm365, %v330, 0
      %v370 = vsel %vm365, %v331, 0
      %v373 = vsel %vm365, %v332, 0
      %v376 = vsel %vm365, %v333, 0
      %v379 = vsel %vm365, %v334, 0
      %v382 = vsel %vm365, %v335, 0
      %v385 = vsel %vm365, %v336, 0
      %v388 = vsel %vm365, %v337, 0
      %v391 = vsel %vm365, %v338, 0
      %v394 = vsel %vm365, %v339, 0
      %v397 = vsel %vm365, %v340, 0
      %v400 = vsel %vm365, %v341, 0
      %v403 = vsel %vm365, %v342, 0
      %v406 = vsel %vm365, %v343, 0
      %v409 = vsel %vm365, %v344, 0
      %v412 = vsel %vm365, %v345, 0
      %v415 = vsel %vm365, %v346, 0
      %v418 = vsel %vm365, %v347, 0
      %v421 = vsel %vm365, %v348, 0
      %v424 = vsel %vm365, %v349, 0
      %v427 = vsel %vm365, %v350, 0
      %v430 = vsel %vm365, %v351, 0
      %v433 = vsel %vm365, %v352, 0
      %v436 = vsel %vm365, %v353, 0
      %vm438 = vcmask 1044480
      %vm439 = vcmask 1045504
      %v440 = vsel %vm438, 4294967295, 65535
      %v441 = vsel %vm439, %v440, 0
      %v443 = vand.u32 %v363, %v441
      %445 = vmatprep.subr.bf16.mxu0 0
      %446 = vmatpush1.bf16.msra.mxu0 %v362
      %447 = vmatprep.subr.bf16.mxu0 0
      %448 = vmatpush1.bf16.msra.mxu0 %v443
      %449 = vmatprep.subr.bf16.mxu0 0
      %450 = vmatpush1.bf16.msra.mxu0 0
      %451 = vmatprep.subr.bf16.mxu0 0
      %452 = vmatpush1.bf16.msra.mxu0 0
      %453 = vmatprep.subr.bf16.mxu0 0
      %454 = vmatpush1.bf16.msra.mxu0 0
      %455 = vmatprep.subr.bf16.mxu0 0
      %456 = vmatpush1.bf16.msra.mxu0 0
      %457 = vmatprep.subr.bf16.mxu0 0
      %458 = vmatpush1.bf16.msra.mxu0 0
      %459 = vmatprep.subr.bf16.mxu0 0
      %460 = vmatpush1.bf16.msra.mxu0 0
      %461 = vmatprep.subr.bf16.mxu0 0
      %462 = vmatpush1.bf16.msra.mxu0 0
      %463 = vmatprep.subr.bf16.mxu0 0
      %464 = vmatpush1.bf16.msra.mxu0 0
      %465 = vmatprep.subr.bf16.mxu0 0
      %466 = vmatpush1.bf16.msra.mxu0 0
      %467 = vmatprep.subr.bf16.mxu0 0
      %468 = vmatpush1.bf16.msra.mxu0 0
      %469 = vmatprep.subr.bf16.mxu0 0
      %470 = vmatpush1.bf16.msra.mxu0 0
      %471 = vmatprep.subr.bf16.mxu0 0
      %472 = vmatpush1.bf16.msra.mxu0 0
      %473 = vmatprep.subr.bf16.mxu0 0
      %474 = vmatpush1.bf16.msra.mxu0 0
      %475 = vmatprep.subr.bf16.mxu0 0
      %476 = vmatpush1.bf16.msra.mxu0 0
      %477 = vmatprep.mubr.bf16.mxu0 0
      %478 = vmatmul.mubr.bf16.gmra.mrb[0].mxu0 %v367
      %v479 = vpop.f32.mrb[0].mxu0
      %v480 = vadd.f32 %v232, %v479
      %v481 = vpop.f32.mrb[0].mxu0
      %v482 = vpop.f32.mrb[0].mxu0
      %v483 = vadd.f32 %v232, %v482
      %v484 = vpop.f32.mrb[0].mxu0
      %485 = vmatprep.mubr.bf16.mxu0 0
      %486 = vmatmul.mubr.bf16.gmra.mrb[0].mxu0 %v370
      %v487 = vpop.f32.mrb[0].mxu0
      %v488 = vadd.f32 %v232, %v487
      %v489 = vpop.f32.mrb[0].mxu0
      %v490 = vpop.f32.mrb[0].mxu0
      %v491 = vadd.f32 %v232, %v490
      %v492 = vpop.f32.mrb[0].mxu0
      %493 = vmatprep.mubr.bf16.mxu0 0
      %494 = vmatmul.mubr.bf16.gmra.mrb[0].mxu0 %v373
      %v495 = vpop.f32.mrb[0].mxu0
      %v496 = vadd.f32 %v232, %v495
      %v497 = vpop.f32.mrb[0].mxu0
      %v498 = vpop.f32.mrb[0].mxu0
      %v499 = vadd.f32 %v232, %v498
      %v500 = vpop.f32.mrb[0].mxu0
      %501 = vmatprep.mubr.bf16.mxu0 0
      %502 = vmatmul.mubr.bf16.gmra.mrb[0].mxu0 %v376
      %v503 = vpop.f32.mrb[0].mxu0
      %v504 = vadd.f32 %v232, %v503
      %v505 = vpop.f32.mrb[0].mxu0
      %v506 = vpop.f32.mrb[0].mxu0
      %v507 = vadd.f32 %v232, %v506
      %v508 = vpop.f32.mrb[0].mxu0
      %509 = vmatprep.mubr.bf16.mxu0 0
      %510 = vmatmul.mubr.bf16.gmra.mrb[0].mxu0 %v379
      %v511 = vpop.f32.mrb[0].mxu0
      %v512 = vadd.f32 %v232, %v511
      %v513 = vpop.f32.mrb[0].mxu0
      %v514 = vpop.f32.mrb[0].mxu0
      %v515 = vadd.f32 %v232, %v514
      %v516 = vpop.f32.mrb[0].mxu0
      %517 = vmatprep.mubr.bf16.mxu0 0
      %518 = vmatmul.mubr.bf16.gmra.mrb[0].mxu0 %v382
      %v519 = vpop.f32.mrb[0].mxu0
      %v520 = vadd.f32 %v232, %v519
      %v521 = vpop.f32.mrb[0].mxu0
      %v522 = vpop.f32.mrb[0].mxu0
      %v523 = vadd.f32 %v232, %v522
      %v524 = vpop.f32.mrb[0].mxu0
      %525 = vmatprep.mubr.bf16.mxu0 0
      %526 = vmatmul.mubr.bf16.gmra.mrb[0].mxu0 %v385
      %v527 = vpop.f32.mrb[0].mxu0
      %v528 = vadd.f32 %v232, %v527
      %v529 = vpop.f32.mrb[0].mxu0
      %v530 = vpop.f32.mrb[0].mxu0
      %v531 = vadd.f32 %v232, %v530
      %v532 = vpop.f32.mrb[0].mxu0
      %533 = vmatprep.mubr.bf16.mxu0 0
      %534 = vmatmul.mubr.bf16.gmra.mrb[0].mxu0 %v388
      %v535 = vpop.f32.mrb[0].mxu0
      %v536 = vadd.f32 %v232, %v535
      %v537 = vpop.f32.mrb[0].mxu0
      %v538 = vpop.f32.mrb[0].mxu0
      %v539 = vadd.f32 %v232, %v538
      %v540 = vpop.f32.mrb[0].mxu0
      %541 = vmatprep.mubr.bf16.mxu0 0
      %542 = vmatmul.mubr.bf16.gmra.mrb[0].mxu0 %v391
      %v543 = vpop.f32.mrb[0].mxu0
      %v544 = vadd.f32 %v232, %v543
      %v545 = vpop.f32.mrb[0].mxu0
      %v546 = vpop.f32.mrb[0].mxu0
      %v547 = vadd.f32 %v232, %v546
      %v548 = vpop.f32.mrb[0].mxu0
      %549 = vmatprep.mubr.bf16.mxu0 0
      %550 = vmatmul.mubr.bf16.gmra.mrb[0].mxu0 %v394
      %v551 = vpop.f32.mrb[0].mxu0
      %v552 = vadd.f32 %v232, %v551
      %v553 = vpop.f32.mrb[0].mxu0
      %v554 = vpop.f32.mrb[0].mxu0
      %v555 = vadd.f32 %v232, %v554
      %v556 = vpop.f32.mrb[0].mxu0
      %557 = vmatprep.mubr.bf16.mxu0 0
      %558 = vmatmul.mubr.bf16.gmra.mrb[0].mxu0 %v397
      %v559 = vpop.f32.mrb[0].mxu0
      %v560 = vadd.f32 %v232, %v559
      %v561 = vpop.f32.mrb[0].mxu0
      %v562 = vpop.f32.mrb[0].mxu0
      %v563 = vadd.f32 %v232, %v562
      %v564 = vpop.f32.mrb[0].mxu0
      %565 = vmatprep.mubr.bf16.mxu0 0
      %566 = vmatmul.mubr.bf16.gmra.mrb[0].mxu0 %v400
      %v567 = vpop.f32.mrb[0].mxu0
      %v568 = vadd.f32 %v232, %v567
      %v569 = vpop.f32.mrb[0].mxu0
      %v570 = vpop.f32.mrb[0].mxu0
      %v571 = vadd.f32 %v232, %v570
      %v572 = vpop.f32.mrb[0].mxu0
      %573 = vmatprep.mubr.bf16.mxu0 0
      %574 = vmatmul.mubr.bf16.gmra.mrb[0].mxu0 %v403
      %v575 = vpop.f32.mrb[0].mxu0
      %v576 = vadd.f32 %v232, %v575
      %v577 = vpop.f32.mrb[0].mxu0
      %v578 = vpop.f32.mrb[0].mxu0
      %v579 = vadd.f32 %v232, %v578
      %v580 = vpop.f32.mrb[0].mxu0
      %581 = vmatprep.mubr.bf16.mxu0 0
      %582 = vmatmul.mubr.bf16.gmra.mrb[0].mxu0 %v406
      %v583 = vpop.f32.mrb[0].mxu0
      %v584 = vadd.f32 %v232, %v583
      %v585 = vpop.f32.mrb[0].mxu0
      %v586 = vpop.f32.mrb[0].mxu0
      %v587 = vadd.f32 %v232, %v586
      %v588 = vpop.f32.mrb[0].mxu0
      %589 = vmatprep.mubr.bf16.mxu0 0
      %590 = vmatmul.mubr.bf16.gmra.mrb[0].mxu0 %v409
      %v591 = vpop.f32.mrb[0].mxu0
      %v592 = vadd.f32 %v232, %v591
      %v593 = vpop.f32.mrb[0].mxu0
      %v594 = vpop.f32.mrb[0].mxu0
      %v595 = vadd.f32 %v232, %v594
      %v596 = vpop.f32.mrb[0].mxu0
      %597 = vmatprep.mubr.bf16.mxu0 0
      %598 = vmatmul.mubr.bf16.gmra.mrb[0].mxu0 %v412
      %v599 = vpop.f32.mrb[0].mxu0
      %v600 = vadd.f32 %v232, %v599
      %v601 = vpop.f32.mrb[0].mxu0
      %v602 = vpop.f32.mrb[0].mxu0
      %v603 = vadd.f32 %v232, %v602
      %v604 = vpop.f32.mrb[0].mxu0
      %605 = vmatprep.mubr.bf16.mxu0 0
      %606 = vmatmul.mubr.bf16.gmra.mrb[0].mxu0 %v415
      %v607 = vpop.f32.mrb[0].mxu0
      %v608 = vadd.f32 %v232, %v607
      %v609 = vpop.f32.mrb[0].mxu0
      %v610 = vpop.f32.mrb[0].mxu0
      %v611 = vadd.f32 %v232, %v610
      %v612 = vpop.f32.mrb[0].mxu0
      %613 = vmatprep.mubr.bf16.mxu0 0
      %614 = vmatmul.mubr.bf16.gmra.mrb[0].mxu0 %v418
      %v615 = vpop.f32.mrb[0].mxu0
      %v616 = vadd.f32 %v232, %v615
      %v617 = vpop.f32.mrb[0].mxu0
      %v618 = vpop.f32.mrb[0].mxu0
      %v619 = vadd.f32 %v232, %v618
      %v620 = vpop.f32.mrb[0].mxu0
      %621 = vmatprep.mubr.bf16.mxu0 0
      %622 = vmatmul.mubr.bf16.gmra.mrb[0].mxu0 %v421
      %v623 = vpop.f32.mrb[0].mxu0
      %v624 = vadd.f32 %v232, %v623
      %v625 = vpop.f32.mrb[0].mxu0
      %v626 = vpop.f32.mrb[0].mxu0
      %v627 = vadd.f32 %v232, %v626
      %v628 = vpop.f32.mrb[0].mxu0
      %629 = vmatprep.mubr.bf16.mxu0 0
      %630 = vmatmul.mubr.bf16.gmra.mrb[0].mxu0 %v424
      %v631 = vpop.f32.mrb[0].mxu0
      %v632 = vadd.f32 %v232, %v631
      %v633 = vpop.f32.mrb[0].mxu0
      %v634 = vpop.f32.mrb[0].mxu0
      %v635 = vadd.f32 %v232, %v634
      %v636 = vpop.f32.mrb[0].mxu0
      %637 = vmatprep.mubr.bf16.mxu0 0
      %638 = vmatmul.mubr.bf16.gmra.mrb[0].mxu0 %v427
      %v639 = vpop.f32.mrb[0].mxu0
      %v640 = vadd.f32 %v232, %v639
      %v641 = vpop.f32.mrb[0].mxu0
      %v642 = vpop.f32.mrb[0].mxu0
      %v643 = vadd.f32 %v232, %v642
      %v644 = vpop.f32.mrb[0].mxu0
      %645 = vmatprep.mubr.bf16.mxu0 0
      %646 = vmatmul.mubr.bf16.gmra.mrb[0].mxu0 %v430
      %v647 = vpop.f32.mrb[0].mxu0
      %v648 = vadd.f32 %v232, %v647
      %v649 = vpop.f32.mrb[0].mxu0
      %v650 = vpop.f32.mrb[0].mxu0
      %v651 = vadd.f32 %v232, %v650
      %v652 = vpop.f32.mrb[0].mxu0
      %653 = vmatprep.mubr.bf16.mxu0 0
      %654 = vmatmul.mubr.bf16.gmra.mrb[0].mxu0 %v433
      %v655 = vpop.f32.mrb[0].mxu0
      %v656 = vadd.f32 %v232, %v655
      %v657 = vpop.f32.mrb[0].mxu0
      %v658 = vpop.f32.mrb[0].mxu0
      %v659 = vadd.f32 %v232, %v658
      %v660 = vpop.f32.mrb[0].mxu0
      %661 = vmatprep.mubr.bf16.mxu0 0
      %662 = vmatmul.mubr.bf16.gmra.mrb[0].mxu0 %v436
      %v663 = vpop.f32.mrb[0].mxu0
      %v664 = vadd.f32 %v232, %v663
      %v665 = vpop.f32.mrb[0].mxu0
      %v666 = vpop.f32.mrb[0].mxu0
      %v667 = vadd.f32 %v232, %v666
      %v668 = vpop.f32.mrb[0].mxu0
      %669 = vdwg.mxu0
      %vm670 = vcmp.ge.f32.partialorder %v480, 0.0
      %vm671 = vcmp.ge.f32.partialorder %v483, 0.0
      %vm672 = vcmp.ge.f32.partialorder %v488, 0.0
      %vm673 = vcmp.ge.f32.partialorder %v491, 0.0
      %vm674 = vcmp.ge.f32.partialorder %v496, 0.0
      %vm675 = vcmp.ge.f32.partialorder %v499, 0.0
      %vm676 = vcmp.ge.f32.partialorder %v504, 0.0
      %vm677 = vcmp.ge.f32.partialorder %v507, 0.0
      %vm678 = vcmp.ge.f32.partialorder %v512, 0.0
      %vm679 = vcmp.ge.f32.partialorder %v515, 0.0
      %vm680 = vcmp.ge.f32.partialorder %v520, 0.0
      %vm681 = vcmp.ge.f32.partialorder %v523, 0.0
      %vm682 = vcmp.ge.f32.partialorder %v528, 0.0
      %vm683 = vcmp.ge.f32.partialorder %v531, 0.0
      %vm684 = vcmp.ge.f32.partialorder %v536, 0.0
      %vm685 = vcmp.ge.f32.partialorder %v539, 0.0
      %vm686 = vcmp.ge.f32.partialorder %v544, 0.0
      %vm687 = vcmp.ge.f32.partialorder %v547, 0.0
      %vm688 = vcmp.ge.f32.partialorder %v552, 0.0
      %vm689 = vcmp.ge.f32.partialorder %v555, 0.0
      %vm690 = vcmp.ge.f32.partialorder %v560, 0.0
      %vm691 = vcmp.ge.f32.partialorder %v563, 0.0
      %vm692 = vcmp.ge.f32.partialorder %v568, 0.0
      %vm693 = vcmp.ge.f32.partialorder %v571, 0.0
      %vm694 = vcmp.ge.f32.partialorder %v576, 0.0
      %vm695 = vcmp.ge.f32.partialorder %v579, 0.0
      %vm696 = vcmp.ge.f32.partialorder %v584, 0.0
      %vm697 = vcmp.ge.f32.partialorder %v587, 0.0
      %vm698 = vcmp.ge.f32.partialorder %v592, 0.0
      %vm699 = vcmp.ge.f32.partialorder %v595, 0.0
      %vm700 = vcmp.ge.f32.partialorder %v600, 0.0
      %vm701 = vcmp.ge.f32.partialorder %v603, 0.0
      %vm702 = vcmp.ge.f32.partialorder %v608, 0.0
      %vm703 = vcmp.ge.f32.partialorder %v611, 0.0
      %vm704 = vcmp.ge.f32.partialorder %v616, 0.0
      %vm705 = vcmp.ge.f32.partialorder %v619, 0.0
      %vm706 = vcmp.ge.f32.partialorder %v624, 0.0
      %vm707 = vcmp.ge.f32.partialorder %v627, 0.0
      %vm708 = vcmp.ge.f32.partialorder %v632, 0.0
      %vm709 = vcmp.ge.f32.partialorder %v635, 0.0
      %vm710 = vcmp.ge.f32.partialorder %v640, 0.0
      %vm711 = vcmp.ge.f32.partialorder %v643, 0.0
      %vm712 = vcmp.ge.f32.partialorder %v648, 0.0
      %vm713 = vcmp.ge.f32.partialorder %v651, 0.0
      %vm714 = vcmp.ge.f32.partialorder %v656, 0.0
      %vm715 = vcmp.ge.f32.partialorder %v659, 0.0
      %vm716 = vcmp.ge.f32.partialorder %v664, 0.0
      %vm717 = vcmp.ge.f32.partialorder %v667, 0.0
      %v718 = vmul.f32 %v480, 0.2
      %v719 = vmul.f32 %v483, 0.2
      %v720 = vmul.f32 %v488, 0.2
      %v721 = vmul.f32 %v491, 0.2
      %v722 = vmul.f32 %v496, 0.2
      %v723 = vmul.f32 %v499, 0.2
      %v724 = vmul.f32 %v504, 0.2
      %v725 = vmul.f32 %v507, 0.2
      %v726 = vmul.f32 %v512, 0.2
      %v727 = vmul.f32 %v515, 0.2
      %v728 = vmul.f32 %v520, 0.2
      %v729 = vmul.f32 %v523, 0.2
      %v730 = vmul.f32 %v528, 0.2
      %v731 = vmul.f32 %v531, 0.2
      %v732 = vmul.f32 %v536, 0.2
      %v733 = vmul.f32 %v539, 0.2
      %v734 = vmul.f32 %v544, 0.2
      %v735 = vmul.f32 %v547, 0.2
      %v736 = vmul.f32 %v552, 0.2
      %v737 = vmul.f32 %v555, 0.2
      %v738 = vmul.f32 %v560, 0.2
      %v739 = vmul.f32 %v563, 0.2
      %v740 = vmul.f32 %v568, 0.2
      %v741 = vmul.f32 %v571, 0.2
      %v742 = vmul.f32 %v576, 0.2
      %v743 = vmul.f32 %v579, 0.2
      %v744 = vmul.f32 %v584, 0.2
      %v745 = vmul.f32 %v587, 0.2
      %v746 = vmul.f32 %v592, 0.2
      %v747 = vmul.f32 %v595, 0.2
      %v748 = vmul.f32 %v600, 0.2
      %v749 = vmul.f32 %v603, 0.2
      %v750 = vmul.f32 %v608, 0.2
      %v751 = vmul.f32 %v611, 0.2
      %v752 = vmul.f32 %v616, 0.2
      %v753 = vmul.f32 %v619, 0.2
      %v754 = vmul.f32 %v624, 0.2
      %v755 = vmul.f32 %v627, 0.2
      %v756 = vmul.f32 %v632, 0.2
      %v757 = vmul.f32 %v635, 0.2
      %v758 = vmul.f32 %v640, 0.2
      %v759 = vmul.f32 %v643, 0.2
      %v760 = vmul.f32 %v648, 0.2
      %v761 = vmul.f32 %v651, 0.2
      %v762 = vmul.f32 %v656, 0.2
      %v763 = vmul.f32 %v659, 0.2
      %v764 = vmul.f32 %v664, 0.2
      %v765 = vmul.f32 %v667, 0.2
      %v766 = vsel %vm670, %v480, %v718
      %v767 = vsel %vm671, %v483, %v719
      %v768 = vsel %vm672, %v488, %v720
      %v769 = vsel %vm673, %v491, %v721
      %v770 = vsel %vm674, %v496, %v722
      %v771 = vsel %vm675, %v499, %v723
      %v772 = vsel %vm676, %v504, %v724
      %v773 = vsel %vm677, %v507, %v725
      %v774 = vsel %vm678, %v512, %v726
      %v775 = vsel %vm679, %v515, %v727
      %v776 = vsel %vm680, %v520, %v728
      %v777 = vsel %vm681, %v523, %v729
      %v778 = vsel %vm682, %v528, %v730
      %v779 = vsel %vm683, %v531, %v731
      %v780 = vsel %vm684, %v536, %v732
      %v781 = vsel %vm685, %v539, %v733
      %v782 = vsel %vm686, %v544, %v734
      %v783 = vsel %vm687, %v547, %v735
      %v784 = vsel %vm688, %v552, %v736
      %v785 = vsel %vm689, %v555, %v737
      %v786 = vsel %vm690, %v560, %v738
      %v787 = vsel %vm691, %v563, %v739
      %v788 = vsel %vm692, %v568, %v740
      %v789 = vsel %vm693, %v571, %v741
      %v790 = vsel %vm694, %v576, %v742
      %v791 = vsel %vm695, %v579, %v743
      %v792 = vsel %vm696, %v584, %v744
      %v793 = vsel %vm697, %v587, %v745
      %v794 = vsel %vm698, %v592, %v746
      %v795 = vsel %vm699, %v595, %v747
      %v796 = vsel %vm700, %v600, %v748
      %v797 = vsel %vm701, %v603, %v749
      %v798 = vsel %vm702, %v608, %v750
      %v799 = vsel %vm703, %v611, %v751
      %v800 = vsel %vm704, %v616, %v752
      %v801 = vsel %vm705, %v619, %v753
      %v802 = vsel %vm706, %v624, %v754
      %v803 = vsel %vm707, %v627, %v755
      %v804 = vsel %vm708, %v632, %v756
      %v805 = vsel %vm709, %v635, %v757
      %v806 = vsel %vm710, %v640, %v758
      %v807 = vsel %vm711, %v643, %v759
      %v808 = vsel %vm712, %v648, %v760
      %v809 = vsel %vm713, %v651, %v761
      %v810 = vsel %vm714, %v656, %v762
      %v811 = vsel %vm715, %v659, %v763
      %v812 = vsel %vm716, %v664, %v764
      %v813 = vsel %vm717, %v667, %v765
      %v814 = vpack.c.bf16 %v767, %v766
      %v815 = vpack.c.bf16 %v769, %v768
      %v816 = vpack.c.bf16 %v771, %v770
      %v817 = vpack.c.bf16 %v773, %v772
      %v818 = vpack.c.bf16 %v775, %v774
      %v819 = vpack.c.bf16 %v777, %v776
      %v820 = vpack.c.bf16 %v779, %v778
      %v821 = vpack.c.bf16 %v781, %v780
      %v822 = vpack.c.bf16 %v783, %v782
      %v823 = vpack.c.bf16 %v785, %v784
      %v824 = vpack.c.bf16 %v787, %v786
      %v825 = vpack.c.bf16 %v789, %v788
      %v826 = vpack.c.bf16 %v791, %v790
      %v827 = vpack.c.bf16 %v793, %v792
      %v828 = vpack.c.bf16 %v795, %v794
      %v829 = vpack.c.bf16 %v797, %v796
      %v830 = vpack.c.bf16 %v799, %v798
      %v831 = vpack.c.bf16 %v801, %v800
      %v832 = vpack.c.bf16 %v803, %v802
      %v833 = vpack.c.bf16 %v805, %v804
      %v834 = vpack.c.bf16 %v807, %v806
      %v835 = vpack.c.bf16 %v809, %v808
      %v836 = vpack.c.bf16 %v811, %v810
      %v837 = vpack.c.bf16 %v813, %v812
      %v862 = vunpack.c.l.b16 %v814
      %v863 = vunpack.c.h.b16 %v814
      %v864 = vunpack.c.l.b16 %v815
      %v865 = vunpack.c.h.b16 %v815
      %v866 = vunpack.c.l.b16 %v816
      %v867 = vunpack.c.h.b16 %v816
      %v868 = vunpack.c.l.b16 %v817
      %v869 = vunpack.c.h.b16 %v817
      %v870 = vunpack.c.l.b16 %v818
      %v871 = vunpack.c.h.b16 %v818
      %v872 = vunpack.c.l.b16 %v819
      %v873 = vunpack.c.h.b16 %v819
      %v874 = vunpack.c.l.b16 %v820
      %v875 = vunpack.c.h.b16 %v820
      %v876 = vunpack.c.l.b16 %v821
      %v877 = vunpack.c.h.b16 %v821
      %v878 = vunpack.c.l.b16 %v822
      %v879 = vunpack.c.h.b16 %v822
      %v880 = vunpack.c.l.b16 %v823
      %v881 = vunpack.c.h.b16 %v823
      %v882 = vunpack.c.l.b16 %v824
      %v883 = vunpack.c.h.b16 %v824
      %v884 = vunpack.c.l.b16 %v825
      %v885 = vunpack.c.h.b16 %v825
      %v886 = vunpack.c.l.b16 %v826
      %v887 = vunpack.c.h.b16 %v826
      %v888 = vunpack.c.l.b16 %v827
      %v889 = vunpack.c.h.b16 %v827
      %v890 = vunpack.c.l.b16 %v828
      %v891 = vunpack.c.h.b16 %v828
      %v892 = vunpack.c.l.b16 %v829
      %v893 = vunpack.c.h.b16 %v829
      %v894 = vunpack.c.l.b16 %v830
      %v895 = vunpack.c.h.b16 %v830
      %v896 = vunpack.c.l.b16 %v831
      %v897 = vunpack.c.h.b16 %v831
      %v898 = vunpack.c.l.b16 %v832
      %v899 = vunpack.c.h.b16 %v832
      %v900 = vunpack.c.l.b16 %v833
      %v901 = vunpack.c.h.b16 %v833
      %v902 = vunpack.c.l.b16 %v834
      %v903 = vunpack.c.h.b16 %v834
      %v904 = vunpack.c.l.b16 %v835
      %v905 = vunpack.c.h.b16 %v835
      %v906 = vunpack.c.l.b16 %v836
      %v907 = vunpack.c.h.b16 %v836
      %v908 = vunpack.c.l.b16 %v837
      %v909 = vunpack.c.h.b16 %v837
      %v910 = vpack.c.b16 %v862, %v862
      %v911 = vpack.c.b16 %v863, %v863
      %v912 = vpack.c.b16 %v864, %v864
      %v913 = vpack.c.b16 %v865, %v865
      %v914 = vpack.c.b16 %v866, %v866
      %v915 = vpack.c.b16 %v867, %v867
      %v916 = vpack.c.b16 %v868, %v868
      %v917 = vpack.c.b16 %v869, %v869
      %v918 = vpack.c.b16 %v870, %v870
      %v919 = vpack.c.b16 %v871, %v871
      %v920 = vpack.c.b16 %v872, %v872
      %v921 = vpack.c.b16 %v873, %v873
      %v922 = vpack.c.b16 %v874, %v874
      %v923 = vpack.c.b16 %v875, %v875
      %v924 = vpack.c.b16 %v876, %v876
      %v925 = vpack.c.b16 %v877, %v877
      %v926 = vpack.c.b16 %v878, %v878
      %v927 = vpack.c.b16 %v879, %v879
      %v928 = vpack.c.b16 %v880, %v880
      %v929 = vpack.c.b16 %v881, %v881
      %v930 = vpack.c.b16 %v882, %v882
      %v931 = vpack.c.b16 %v883, %v883
      %v932 = vpack.c.b16 %v884, %v884
      %v933 = vpack.c.b16 %v885, %v885
      %v934 = vpack.c.b16 %v886, %v886
      %v935 = vpack.c.b16 %v887, %v887
      %v936 = vpack.c.b16 %v888, %v888
      %v937 = vpack.c.b16 %v889, %v889
      %v938 = vpack.c.b16 %v890, %v890
      %v939 = vpack.c.b16 %v891, %v891
      %v940 = vpack.c.b16 %v892, %v892
      %v941 = vpack.c.b16 %v893, %v893
      %v942 = vpack.c.b16 %v894, %v894
      %v943 = vpack.c.b16 %v895, %v895
      %v944 = vpack.c.b16 %v896, %v896
      %v945 = vpack.c.b16 %v897, %v897
      %v946 = vpack.c.b16 %v898, %v898
      %v947 = vpack.c.b16 %v899, %v899
      %v948 = vpack.c.b16 %v900, %v900
      %v949 = vpack.c.b16 %v901, %v901
      %v950 = vpack.c.b16 %v902, %v902
      %v951 = vpack.c.b16 %v903, %v903
      %v952 = vpack.c.b16 %v904, %v904
      %v953 = vpack.c.b16 %v905, %v905
      %v954 = vpack.c.b16 %v906, %v906
      %v955 = vpack.c.b16 %v907, %v907
      %v956 = vpack.c.b16 %v908, %v908
      %v957 = vpack.c.b16 %v909, %v909
      %vm1006 = vcmask 257024
      %1007 = vst.msk [vmem:[%s172] sm:$0xf] %vm1006, %v910
      %1008 = vst.msk [vmem:[%s172 + $0x4] sm:$0xf] %vm1006, %v911
      %1009 = vst.msk [vmem:[%s172 + $0x8] sm:$0xf] %vm1006, %v912
      %1010 = vst.msk [vmem:[%s172 + $0xc] sm:$0xf] %vm1006, %v913
      %1011 = vst.msk [vmem:[%s172 + $0x10] sm:$0xf] %vm1006, %v914
      %1012 = vst.msk [vmem:[%s172 + $0x14] sm:$0xf] %vm1006, %v915
      %1013 = vst.msk [vmem:[%s172 + $0x18] sm:$0xf] %vm1006, %v916
      %1014 = vst.msk [vmem:[%s172 + $0x1c] sm:$0xf] %vm1006, %v917
      %1015 = vst.msk [vmem:[%s172 + $0x20] sm:$0xf] %vm1006, %v918
      %1016 = vst.msk [vmem:[%s172 + $0x24] sm:$0xf] %vm1006, %v919
      %1017 = vst.msk [vmem:[%s172 + $0x28] sm:$0xf] %vm1006, %v920
      %1018 = vst.msk [vmem:[%s172 + $0x2c] sm:$0xf] %vm1006, %v921
      %1019 = vst.msk [vmem:[%s172 + $0x30] sm:$0xf] %vm1006, %v922
      %1020 = vst.msk [vmem:[%s172 + $0x34] sm:$0xf] %vm1006, %v923
      %1021 = vst.msk [vmem:[%s172 + $0x38] sm:$0xf] %vm1006, %v924
      %1022 = vst.msk [vmem:[%s172 + $0x3c] sm:$0xf] %vm1006, %v925
      %1023 = vst.msk [vmem:[%s172 + $0x40] sm:$0xf] %vm1006, %v926
      %1024 = vst.msk [vmem:[%s172 + $0x44] sm:$0xf] %vm1006, %v927
      %1025 = vst.msk [vmem:[%s172 + $0x48] sm:$0xf] %vm1006, %v928
      %1026 = vst.msk [vmem:[%s172 + $0x4c] sm:$0xf] %vm1006, %v929
      %1027 = vst.msk [vmem:[%s172 + $0x50] sm:$0xf] %vm1006, %v930
      %1028 = vst.msk [vmem:[%s172 + $0x54] sm:$0xf] %vm1006, %v931
      %1029 = vst.msk [vmem:[%s172 + $0x58] sm:$0xf] %vm1006, %v932
      %1030 = vst.msk [vmem:[%s172 + $0x5c] sm:$0xf] %vm1006, %v933
      %1031 = vst.msk [vmem:[%s172 + $0x60] sm:$0xf] %vm1006, %v934
      %1032 = vst.msk [vmem:[%s172 + $0x64] sm:$0xf] %vm1006, %v935
      %1033 = vst.msk [vmem:[%s172 + $0x68] sm:$0xf] %vm1006, %v936
      %1034 = vst.msk [vmem:[%s172 + $0x6c] sm:$0xf] %vm1006, %v937
      %1035 = vst.msk [vmem:[%s172 + $0x70] sm:$0xf] %vm1006, %v938
      %1036 = vst.msk [vmem:[%s172 + $0x74] sm:$0xf] %vm1006, %v939
      %1037 = vst.msk [vmem:[%s172 + $0x78] sm:$0xf] %vm1006, %v940
      %1038 = vst.msk [vmem:[%s172 + $0x7c] sm:$0xf] %vm1006, %v941
      %1039 = vst.msk [vmem:[%s172 + $0x80] sm:$0xf] %vm1006, %v942
      %1040 = vst.msk [vmem:[%s172 + $0x84] sm:$0xf] %vm1006, %v943
      %1041 = vst.msk [vmem:[%s172 + $0x88] sm:$0xf] %vm1006, %v944
      %1042 = vst.msk [vmem:[%s172 + $0x8c] sm:$0xf] %vm1006, %v945
      %1043 = vst.msk [vmem:[%s172 + $0x90] sm:$0xf] %vm1006, %v946
      %1044 = vst.msk [vmem:[%s172 + $0x94] sm:$0xf] %vm1006, %v947
      %1045 = vst.msk [vmem:[%s172 + $0x98] sm:$0xf] %vm1006, %v948
      %1046 = vst.msk [vmem:[%s172 + $0x9c] sm:$0xf] %vm1006, %v949
      %1047 = vst.msk [vmem:[%s172 + $0xa0] sm:$0xf] %vm1006, %v950
      %1048 = vst.msk [vmem:[%s172 + $0xa4] sm:$0xf] %vm1006, %v951
      %1049 = vst.msk [vmem:[%s172 + $0xa8] sm:$0xf] %vm1006, %v952
      %1050 = vst.msk [vmem:[%s172 + $0xac] sm:$0xf] %vm1006, %v953
      %1051 = vst.msk [vmem:[%s172 + $0xb0] sm:$0xf] %vm1006, %v954
      %1052 = vst.msk [vmem:[%s172 + $0xb4] sm:$0xf] %vm1006, %v955
      %1053 = vst.msk [vmem:[%s172 + $0xb8] sm:$0xf] %vm1006, %v956
      %1054 = vst.msk [vmem:[%s172 + $0xbc] sm:$0xf] %vm1006, %v957
      %s1055 = smul.u32 48, %s14
      %p1056 = scmp.lt.s32.totalorder %s1055, 143
      %s1057 = scalar_select %p1056, %s1055, 143
      %s1058 = smul.addr %s1057, 4
      %s1059 = scalar_lea.vmem %s3, %s1058
      // Predicated region
      $region33: #{discriminator_forward.6} parent=31 // pred_check
        %p1060 = pneg %p100
      $region34: #{discriminator_forward.6} parent=31 // pred_check_branch
        %1062 = sbr.rel (%p1060) target = $region36
      $region35: #{discriminator_forward.6} parent=31 // pred_region
        %s1063 = smul.u32 48, %s14
      $region36: #{discriminator_forward.6} parent=31 // pred_fallthru
        _
    $region32: #{discriminator_forward.6} parent=5 // pred_fallthru
      _
    %p1064 = scmp.le.s32.totalorder 2, %s9
    // Predicated region
    $region37: #{discriminator_forward.6} parent=5 // pred_check
      %p1065 = pneg %p1064
    $region38: #{discriminator_forward.6} parent=5 // pred_check_branch
      %1067 = sbr.rel (%p1065) target = $region40
    $region39: #{discriminator_forward.6} parent=5 // pred_region
      %s1068 = ssub.s32 %s9, 2
      // Predicated region
      $region41: #{discriminator_forward.6} parent=39 // pred_check
        %p1069 = pneg %p106
      $region42: #{discriminator_forward.6} parent=39 // pred_check_branch
        %1071 = sbr.rel (%p1069) target = $region44
      $region43: #{discriminator_forward.6} parent=39 // pred_region
        %s1072 = smul.u32 48, %s15
        %p1073 = scmp.lt.s32.totalorder %s1072, 143
        %s1074 = scalar_select %p1073, %s1072, 143
        %s1075 = smul.addr %s1074, 4
        %s1076 = scalar_lea.vmem %s3, %s1075
      $region44: #{discriminator_forward.6} parent=39 // pred_fallthru
        _
    $region40: #{discriminator_forward.6} parent=5 // pred_fallthru
      _
  $region6: #{discriminator_forward.6} parent=0 // loop_footer
    %s13 = sadd.s32 1, %s9
  $region7: #{discriminator_forward.6} parent=0 // loop_footer_branch
    %8 = sbr.rel target = $region3
  $region8: #{discriminator_forward.6} parent=0 // loop_exit
    _

// kernel: discriminator_forward.7
$region0: #{discriminator_forward.7}
  #allocation0 [shape = 'u32[]', space=smem, size = 0x4, offset = 0x4, fixed_abs, tag = 'smem constant byte address 0x4 - core index']
  #allocation1 [shape = 'u32[144,128]{1,0:T(1,128)}', space=vmem, size = 0x12000, scoped, tag = 'internal scratch']
  %s0 = inlined_call_operand.vmem [shape: bf16[242,512], index: 0, kind: input, shape index: {}]
  %s1 = inlined_call_operand.vmem [shape: bf16[512,32], index: 1, kind: input, shape index: {}]
  %s2 = inlined_call_operand.vmem [shape: f32[1,32], index: 2, kind: input, shape index: {}]
  %s3 = inlined_call_operand.vmem [shape: bf16[242,32], index: 3, kind: output, shape index: {}]
  %s4 = sld [smem:[#allocation0]]
  $region22: #{discriminator_forward.7} parent=0
    _
  %s6 = ssub.s32 1, %s4
  %s7 = scalar_select 0, %s6, %s4
  // Predicated region
  $region2: #{discriminator_forward.7} parent=0 // pred_check
    _
  $region3: #{discriminator_forward.7} parent=0 // pred_check_branch
    %9 = sbr.rel (0) target = $region5
  $region4: #{discriminator_forward.7} parent=0 // pred_region
    _
  $region5: #{discriminator_forward.7} parent=0 // pred_fallthru
    _
  // Predicated region
  $region6: #{discriminator_forward.7} parent=0 // pred_check
    _
  $region7: #{discriminator_forward.7} parent=0 // pred_check_branch
    %11 = sbr.rel (0) target = $region9
  $region8: #{discriminator_forward.7} parent=0 // pred_region
    _
  $region9: #{discriminator_forward.7} parent=0 // pred_fallthru
    _
  // Predicated region
  $region10: #{discriminator_forward.7} parent=0 // pred_check
    _
  $region11: #{discriminator_forward.7} parent=0 // pred_check_branch
    %13 = sbr.rel (0) target = $region13
  $region12: #{discriminator_forward.7} parent=0 // pred_region
    _
  $region13: #{discriminator_forward.7} parent=0 // pred_fallthru
    _
  %v15 = vld [vmem:[%s0] sm:$0xff]
  %v16 = vld [vmem:[%s0 + $0x8] sm:$0xff]
  %v17 = vld [vmem:[%s0 + $0x10] sm:$0xff]
  %v18 = vld [vmem:[%s0 + $0x18] sm:$0xff]
  %v19 = vld [vmem:[%s0 + $0x20] sm:$0xff]
  %v20 = vld [vmem:[%s0 + $0x28] sm:$0xff]
  %v21 = vld [vmem:[%s0 + $0x30] sm:$0xff]
  %v22 = vld [vmem:[%s0 + $0x38] sm:$0xff]
  %v23 = vld [vmem:[%s0 + $0x40] sm:$0xff]
  %v24 = vld [vmem:[%s0 + $0x48] sm:$0xff]
  %v25 = vld [vmem:[%s0 + $0x50] sm:$0xff]
  %v26 = vld [vmem:[%s0 + $0x58] sm:$0xff]
  %v27 = vld [vmem:[%s0 + $0x60] sm:$0xff]
  %v28 = vld [vmem:[%s0 + $0x68] sm:$0xff]
  %v29 = vld [vmem:[%s0 + $0x70] sm:$0xff]
  %v30 = vld [vmem:[%s0 + $0x78] sm:$0xff]
  %v31 = vld [vmem:[%s0 + $0x80] sm:$0xff]
  %v32 = vld [vmem:[%s0 + $0x88] sm:$0xff]
  %v33 = vld [vmem:[%s0 + $0x90] sm:$0xff]
  %v34 = vld [vmem:[%s0 + $0x98] sm:$0xff]
  %v35 = vld [vmem:[%s0 + $0xa0] sm:$0xff]
  %v36 = vld [vmem:[%s0 + $0xa8] sm:$0xff]
  %v37 = vld [vmem:[%s0 + $0xb0] sm:$0xff]
  %v38 = vld [vmem:[%s0 + $0xb8] sm:$0xff]
  %v39 = vld [vmem:[%s0 + $0xc0] sm:$0xff]
  %v40 = vld [vmem:[%s0 + $0xc8] sm:$0xff]
  %v41 = vld [vmem:[%s0 + $0xd0] sm:$0xff]
  %v42 = vld [vmem:[%s0 + $0xd8] sm:$0xff]
  %v43 = vld [vmem:[%s0 + $0xe0] sm:$0xff]
  %v44 = vld [vmem:[%s0 + $0xe8] sm:$0xff]
  %v45 = vld [vmem:[%s0 + $0xf0] sm:$0xff]
  %v46 = vld [vmem:[%s0 + $0xf8] sm:$0xff]
  %v47 = vld [vmem:[%s0 + $0x100] sm:$0xff]
  %v48 = vld [vmem:[%s0 + $0x108] sm:$0xff]
  %v49 = vld [vmem:[%s0 + $0x110] sm:$0xff]
  %v50 = vld [vmem:[%s0 + $0x118] sm:$0xff]
  %v51 = vld [vmem:[%s0 + $0x120] sm:$0xff]
  %v52 = vld [vmem:[%s0 + $0x128] sm:$0xff]
  %v53 = vld [vmem:[%s0 + $0x130] sm:$0xff]
  %v54 = vld [vmem:[%s0 + $0x138] sm:$0xff]
  %v55 = vld [vmem:[%s0 + $0x140] sm:$0xff]
  %v56 = vld [vmem:[%s0 + $0x148] sm:$0xff]
  %v57 = vld [vmem:[%s0 + $0x150] sm:$0xff]
  %v58 = vld [vmem:[%s0 + $0x158] sm:$0xff]
  %v59 = vld [vmem:[%s0 + $0x160] sm:$0xff]
  %v60 = vld [vmem:[%s0 + $0x168] sm:$0xff]
  %v61 = vld [vmem:[%s0 + $0x170] sm:$0xff]
  %v62 = vld [vmem:[%s0 + $0x178] sm:$0xff]
  %v63 = vld [vmem:[%s0 + $0x180] sm:$0xff]
  %v64 = vld [vmem:[%s0 + $0x188] sm:$0xff]
  %v65 = vld [vmem:[%s0 + $0x190] sm:$0xff]
  %v66 = vld [vmem:[%s0 + $0x198] sm:$0xff]
  %v67 = vld [vmem:[%s0 + $0x1a0] sm:$0xff]
  %v68 = vld [vmem:[%s0 + $0x1a8] sm:$0xff]
  %v69 = vld [vmem:[%s0 + $0x1b0] sm:$0xff]
  %v70 = vld [vmem:[%s0 + $0x1b8] sm:$0xff]
  %v71 = vld [vmem:[%s0 + $0x1c0] sm:$0xff]
  %v72 = vld [vmem:[%s0 + $0x1c8] sm:$0xff]
  %v73 = vld [vmem:[%s0 + $0x1d0] sm:$0xff]
  %v74 = vld [vmem:[%s0 + $0x1d8] sm:$0xff]
  %v75 = vld [vmem:[%s0 + $0x1e0] sm:$0x11]
  %v76 = vld [vmem:[%s0 + $0x1e8] sm:$0x11]
  %v77 = vld [vmem:[%s1] sm:$0xf]
  %v78 = vld [vmem:[%s1 + $0x4] sm:$0xf]
  %v79 = vld [vmem:[%s1 + $0x8] sm:$0xf]
  %v80 = vld [vmem:[%s1 + $0xc] sm:$0xf]
  %v81 = vld [vmem:[%s1 + $0x10] sm:$0xf]
  %v82 = vld [vmem:[%s1 + $0x14] sm:$0xf]
  %v83 = vld [vmem:[%s1 + $0x18] sm:$0xf]
  %v84 = vld [vmem:[%s1 + $0x1c] sm:$0xf]
  %v85 = vld [vmem:[%s1 + $0x20] sm:$0xf]
  %v86 = vld [vmem:[%s1 + $0x24] sm:$0xf]
  %v87 = vld [vmem:[%s1 + $0x28] sm:$0xf]
  %v88 = vld [vmem:[%s1 + $0x2c] sm:$0xf]
  %v89 = vld [vmem:[%s1 + $0x30] sm:$0xf]
  %v90 = vld [vmem:[%s1 + $0x34] sm:$0xf]
  %v91 = vld [vmem:[%s1 + $0x38] sm:$0xf]
  %v92 = vld [vmem:[%s1 + $0x3c] sm:$0xf]
  %v93 = vld [vmem:[%s1 + $0x40] sm:$0xf]
  %v94 = vld [vmem:[%s1 + $0x44] sm:$0xf]
  %v95 = vld [vmem:[%s1 + $0x48] sm:$0xf]
  %v96 = vld [vmem:[%s1 + $0x4c] sm:$0xf]
  %v97 = vld [vmem:[%s1 + $0x50] sm:$0xf]
  %v98 = vld [vmem:[%s1 + $0x54] sm:$0xf]
  %v99 = vld [vmem:[%s1 + $0x58] sm:$0xf]
  %v100 = vld [vmem:[%s1 + $0x5c] sm:$0xf]
  %v101 = vld [vmem:[%s1 + $0x60] sm:$0xf]
  %v102 = vld [vmem:[%s1 + $0x64] sm:$0xf]
  %v103 = vld [vmem:[%s1 + $0x68] sm:$0xf]
  %v104 = vld [vmem:[%s1 + $0x6c] sm:$0xf]
  %v105 = vld [vmem:[%s1 + $0x70] sm:$0xf]
  %v106 = vld [vmem:[%s1 + $0x74] sm:$0xf]
  %v107 = vld [vmem:[%s1 + $0x78] sm:$0xf]
  %v108 = vld [vmem:[%s1 + $0x7c] sm:$0xf]
  %v109 = vld [vmem:[%s1 + $0x80] sm:$0xf]
  %v110 = vld [vmem:[%s1 + $0x84] sm:$0xf]
  %v111 = vld [vmem:[%s1 + $0x88] sm:$0xf]
  %v112 = vld [vmem:[%s1 + $0x8c] sm:$0xf]
  %v113 = vld [vmem:[%s1 + $0x90] sm:$0xf]
  %v114 = vld [vmem:[%s1 + $0x94] sm:$0xf]
  %v115 = vld [vmem:[%s1 + $0x98] sm:$0xf]
  %v116 = vld [vmem:[%s1 + $0x9c] sm:$0xf]
  %v117 = vld [vmem:[%s1 + $0xa0] sm:$0xf]
  %v118 = vld [vmem:[%s1 + $0xa4] sm:$0xf]
  %v119 = vld [vmem:[%s1 + $0xa8] sm:$0xf]
  %v120 = vld [vmem:[%s1 + $0xac] sm:$0xf]
  %v121 = vld [vmem:[%s1 + $0xb0] sm:$0xf]
  %v122 = vld [vmem:[%s1 + $0xb4] sm:$0xf]
  %v123 = vld [vmem:[%s1 + $0xb8] sm:$0xf]
  %v124 = vld [vmem:[%s1 + $0xbc] sm:$0xf]
  %v125 = vld [vmem:[%s1 + $0xc0] sm:$0xf]
  %v126 = vld [vmem:[%s1 + $0xc4] sm:$0xf]
  %v127 = vld [vmem:[%s1 + $0xc8] sm:$0xf]
  %v128 = vld [vmem:[%s1 + $0xcc] sm:$0xf]
  %v129 = vld [vmem:[%s1 + $0xd0] sm:$0xf]
  %v130 = vld [vmem:[%s1 + $0xd4] sm:$0xf]
  %v131 = vld [vmem:[%s1 + $0xd8] sm:$0xf]
  %v132 = vld [vmem:[%s1 + $0xdc] sm:$0xf]
  %v133 = vld [vmem:[%s1 + $0xe0] sm:$0xf]
  %v134 = vld [vmem:[%s1 + $0xe4] sm:$0xf]
  %v135 = vld [vmem:[%s1 + $0xe8] sm:$0xf]
  %v136 = vld [vmem:[%s1 + $0xec] sm:$0xf]
  %v137 = vld [vmem:[%s1 + $0xf0] sm:$0xf]
  %v138 = vld [vmem:[%s1 + $0xf4] sm:$0xf]
  %v139 = vld [vmem:[%s1 + $0xf8] sm:$0xf]
  %v140 = vld [vmem:[%s1 + $0xfc] sm:$0xf]
  %v141 = vld [vmem:[%s2] sm:$0x1]
  %v143 = vlaneseq
  %v144 = vshrl.u32 %v143, 7
  %v145 = vsub.s32 0, %v144
  %v146 = vrot.slane %v141, %v145
  %v210 = vunpack.c.l.b16 %v15
  %v211 = vunpack.c.h.b16 %v15
  %v212 = vunpack.c.l.b16 %v16
  %v213 = vunpack.c.h.b16 %v16
  %v214 = vunpack.c.l.b16 %v17
  %v215 = vunpack.c.h.b16 %v17
  %v216 = vunpack.c.l.b16 %v18
  %v217 = vunpack.c.h.b16 %v18
  %v218 = vunpack.c.l.b16 %v19
  %v219 = vunpack.c.h.b16 %v19
  %v220 = vunpack.c.l.b16 %v20
  %v221 = vunpack.c.h.b16 %v20
  %v222 = vunpack.c.l.b16 %v21
  %v223 = vunpack.c.h.b16 %v21
  %v224 = vunpack.c.l.b16 %v22
  %v225 = vunpack.c.h.b16 %v22
  %v226 = vunpack.c.l.b16 %v23
  %v227 = vunpack.c.h.b16 %v23
  %v228 = vunpack.c.l.b16 %v24
  %v229 = vunpack.c.h.b16 %v24
  %v230 = vunpack.c.l.b16 %v25
  %v231 = vunpack.c.h.b16 %v25
  %v232 = vunpack.c.l.b16 %v26
  %v233 = vunpack.c.h.b16 %v26
  %v234 = vunpack.c.l.b16 %v27
  %v235 = vunpack.c.h.b16 %v27
  %v236 = vunpack.c.l.b16 %v28
  %v237 = vunpack.c.h.b16 %v28
  %v238 = vunpack.c.l.b16 %v29
  %v239 = vunpack.c.h.b16 %v29
  %v240 = vunpack.c.l.b16 %v30
  %v241 = vunpack.c.h.b16 %v30
  %v242 = vunpack.c.l.b16 %v31
  %v243 = vunpack.c.h.b16 %v31
  %v244 = vunpack.c.l.b16 %v32
  %v245 = vunpack.c.h.b16 %v32
  %v246 = vunpack.c.l.b16 %v33
  %v247 = vunpack.c.h.b16 %v33
  %v248 = vunpack.c.l.b16 %v34
  %v249 = vunpack.c.h.b16 %v34
  %v250 = vunpack.c.l.b16 %v35
  %v251 = vunpack.c.h.b16 %v35
  %v252 = vunpack.c.l.b16 %v36
  %v253 = vunpack.c.h.b16 %v36
  %v254 = vunpack.c.l.b16 %v37
  %v255 = vunpack.c.h.b16 %v37
  %v256 = vunpack.c.l.b16 %v38
  %v257 = vunpack.c.h.b16 %v38
  %v258 = vunpack.c.l.b16 %v39
  %v259 = vunpack.c.h.b16 %v39
  %v260 = vunpack.c.l.b16 %v40
  %v261 = vunpack.c.h.b16 %v40
  %v262 = vunpack.c.l.b16 %v41
  %v263 = vunpack.c.h.b16 %v41
  %v264 = vunpack.c.l.b16 %v42
  %v265 = vunpack.c.h.b16 %v42
  %v266 = vunpack.c.l.b16 %v43
  %v267 = vunpack.c.h.b16 %v43
  %v268 = vunpack.c.l.b16 %v44
  %v269 = vunpack.c.h.b16 %v44
  %v270 = vunpack.c.l.b16 %v45
  %v271 = vunpack.c.h.b16 %v45
  %v272 = vunpack.c.l.b16 %v46
  %v273 = vunpack.c.h.b16 %v46
  %v274 = vunpack.c.l.b16 %v47
  %v275 = vunpack.c.h.b16 %v47
  %v276 = vunpack.c.l.b16 %v48
  %v277 = vunpack.c.h.b16 %v48
  %v278 = vunpack.c.l.b16 %v49
  %v279 = vunpack.c.h.b16 %v49
  %v280 = vunpack.c.l.b16 %v50
  %v281 = vunpack.c.h.b16 %v50
  %v282 = vunpack.c.l.b16 %v51
  %v283 = vunpack.c.h.b16 %v51
  %v284 = vunpack.c.l.b16 %v52
  %v285 = vunpack.c.h.b16 %v52
  %v286 = vunpack.c.l.b16 %v53
  %v287 = vunpack.c.h.b16 %v53
  %v288 = vunpack.c.l.b16 %v54
  %v289 = vunpack.c.h.b16 %v54
  %v290 = vunpack.c.l.b16 %v55
  %v291 = vunpack.c.h.b16 %v55
  %v292 = vunpack.c.l.b16 %v56
  %v293 = vunpack.c.h.b16 %v56
  %v294 = vunpack.c.l.b16 %v57
  %v295 = vunpack.c.h.b16 %v57
  %v296 = vunpack.c.l.b16 %v58
  %v297 = vunpack.c.h.b16 %v58
  %v298 = vunpack.c.l.b16 %v59
  %v299 = vunpack.c.h.b16 %v59
  %v300 = vunpack.c.l.b16 %v60
  %v301 = vunpack.c.h.b16 %v60
  %v302 = vunpack.c.l.b16 %v61
  %v303 = vunpack.c.h.b16 %v61
  %v304 = vunpack.c.l.b16 %v62
  %v305 = vunpack.c.h.b16 %v62
  %v306 = vunpack.c.l.b16 %v63
  %v307 = vunpack.c.h.b16 %v63
  %v308 = vunpack.c.l.b16 %v64
  %v309 = vunpack.c.h.b16 %v64
  %v310 = vunpack.c.l.b16 %v65
  %v311 = vunpack.c.h.b16 %v65
  %v312 = vunpack.c.l.b16 %v66
  %v313 = vunpack.c.h.b16 %v66
  %v314 = vunpack.c.l.b16 %v67
  %v315 = vunpack.c.h.b16 %v67
  %v316 = vunpack.c.l.b16 %v68
  %v317 = vunpack.c.h.b16 %v68
  %v318 = vunpack.c.l.b16 %v69
  %v319 = vunpack.c.h.b16 %v69
  %v320 = vunpack.c.l.b16 %v70
  %v321 = vunpack.c.h.b16 %v70
  %v322 = vunpack.c.l.b16 %v71
  %v323 = vunpack.c.h.b16 %v71
  %v324 = vunpack.c.l.b16 %v72
  %v325 = vunpack.c.h.b16 %v72
  %v326 = vunpack.c.l.b16 %v73
  %v327 = vunpack.c.h.b16 %v73
  %v328 = vunpack.c.l.b16 %v74
  %v329 = vunpack.c.h.b16 %v74
  %v330 = vunpack.c.l.b16 %v75
  %v331 = vunpack.c.h.b16 %v75
  %v332 = vunpack.c.l.b16 %v76
  %v333 = vunpack.c.h.b16 %v76
  %v334 = vpack.c.b16 %v214, %v210
  %v335 = vpack.c.b16 %v215, %v211
  %v336 = vpack.c.b16 %v216, %v212
  %v337 = vpack.c.b16 %v217, %v213
  %v338 = vpack.c.b16 %v222, %v218
  %v339 = vpack.c.b16 %v223, %v219
  %v340 = vpack.c.b16 %v224, %v220
  %v341 = vpack.c.b16 %v225, %v221
  %v342 = vpack.c.b16 %v230, %v226
  %v343 = vpack.c.b16 %v231, %v227
  %v344 = vpack.c.b16 %v232, %v228
  %v345 = vpack.c.b16 %v233, %v229
  %v346 = vpack.c.b16 %v238, %v234
  %v347 = vpack.c.b16 %v239, %v235
  %v348 = vpack.c.b16 %v240, %v236
  %v349 = vpack.c.b16 %v241, %v237
  %v350 = vpack.c.b16 %v246, %v242
  %v351 = vpack.c.b16 %v247, %v243
  %v352 = vpack.c.b16 %v248, %v244
  %v353 = vpack.c.b16 %v249, %v245
  %v354 = vpack.c.b16 %v254, %v250
  %v355 = vpack.c.b16 %v255, %v251
  %v356 = vpack.c.b16 %v256, %v252
  %v357 = vpack.c.b16 %v257, %v253
  %v358 = vpack.c.b16 %v262, %v258
  %v359 = vpack.c.b16 %v263, %v259
  %v360 = vpack.c.b16 %v264, %v260
  %v361 = vpack.c.b16 %v265, %v261
  %v362 = vpack.c.b16 %v270, %v266
  %v363 = vpack.c.b16 %v271, %v267
  %v364 = vpack.c.b16 %v272, %v268
  %v365 = vpack.c.b16 %v273, %v269
  %v366 = vpack.c.b16 %v278, %v274
  %v367 = vpack.c.b16 %v279, %v275
  %v368 = vpack.c.b16 %v280, %v276
  %v369 = vpack.c.b16 %v281, %v277
  %v370 = vpack.c.b16 %v286, %v282
  %v371 = vpack.c.b16 %v287, %v283
  %v372 = vpack.c.b16 %v288, %v284
  %v373 = vpack.c.b16 %v289, %v285
  %v374 = vpack.c.b16 %v294, %v290
  %v375 = vpack.c.b16 %v295, %v291
  %v376 = vpack.c.b16 %v296, %v292
  %v377 = vpack.c.b16 %v297, %v293
  %v378 = vpack.c.b16 %v302, %v298
  %v379 = vpack.c.b16 %v303, %v299
  %v380 = vpack.c.b16 %v304, %v300
  %v381 = vpack.c.b16 %v305, %v301
  %v382 = vpack.c.b16 %v310, %v306
  %v383 = vpack.c.b16 %v311, %v307
  %v384 = vpack.c.b16 %v312, %v308
  %v385 = vpack.c.b16 %v313, %v309
  %v386 = vpack.c.b16 %v318, %v314
  %v387 = vpack.c.b16 %v319, %v315
  %v388 = vpack.c.b16 %v320, %v316
  %v389 = vpack.c.b16 %v321, %v317
  %v390 = vpack.c.b16 %v326, %v322
  %v391 = vpack.c.b16 %v327, %v323
  %v392 = vpack.c.b16 %v328, %v324
  %v393 = vpack.c.b16 %v329, %v325
  %v394 = vpack.c.b16 %v330, %v330
  %v395 = vpack.c.b16 %v331, %v331
  %v396 = vpack.c.b16 %v332, %v332
  %v397 = vpack.c.b16 %v333, %v333
  %v526 = vunpack.c.l.b16 %v77
  %v527 = vunpack.c.l.b16 %v78
  %v528 = vunpack.c.l.b16 %v79
  %v529 = vunpack.c.l.b16 %v80
  %v530 = vunpack.c.l.b16 %v81
  %v531 = vunpack.c.l.b16 %v82
  %v532 = vunpack.c.l.b16 %v83
  %v533 = vunpack.c.l.b16 %v84
  %v534 = vunpack.c.l.b16 %v85
  %v535 = vunpack.c.l.b16 %v86
  %v536 = vunpack.c.l.b16 %v87
  %v537 = vunpack.c.l.b16 %v88
  %v538 = vunpack.c.l.b16 %v89
  %v539 = vunpack.c.l.b16 %v90
  %v540 = vunpack.c.l.b16 %v91
  %v541 = vunpack.c.l.b16 %v92
  %v542 = vunpack.c.l.b16 %v93
  %v543 = vunpack.c.l.b16 %v94
  %v544 = vunpack.c.l.b16 %v95
  %v545 = vunpack.c.l.b16 %v96
  %v546 = vunpack.c.l.b16 %v97
  %v547 = vunpack.c.l.b16 %v98
  %v548 = vunpack.c.l.b16 %v99
  %v549 = vunpack.c.l.b16 %v100
  %v550 = vunpack.c.l.b16 %v101
  %v551 = vunpack.c.l.b16 %v102
  %v552 = vunpack.c.l.b16 %v103
  %v553 = vunpack.c.l.b16 %v104
  %v554 = vunpack.c.l.b16 %v105
  %v555 = vunpack.c.l.b16 %v106
  %v556 = vunpack.c.l.b16 %v107
  %v557 = vunpack.c.l.b16 %v108
  %v558 = vunpack.c.l.b16 %v109
  %v559 = vunpack.c.l.b16 %v110
  %v560 = vunpack.c.l.b16 %v111
  %v561 = vunpack.c.l.b16 %v112
  %v562 = vunpack.c.l.b16 %v113
  %v563 = vunpack.c.l.b16 %v114
  %v564 = vunpack.c.l.b16 %v115
  %v565 = vunpack.c.l.b16 %v116
  %v566 = vunpack.c.l.b16 %v117
  %v567 = vunpack.c.l.b16 %v118
  %v568 = vunpack.c.l.b16 %v119
  %v569 = vunpack.c.l.b16 %v120
  %v570 = vunpack.c.l.b16 %v121
  %v571 = vunpack.c.l.b16 %v122
  %v572 = vunpack.c.l.b16 %v123
  %v573 = vunpack.c.l.b16 %v124
  %v574 = vunpack.c.l.b16 %v125
  %v575 = vunpack.c.l.b16 %v126
  %v576 = vunpack.c.l.b16 %v127
  %v577 = vunpack.c.l.b16 %v128
  %v578 = vunpack.c.l.b16 %v129
  %v579 = vunpack.c.l.b16 %v130
  %v580 = vunpack.c.l.b16 %v131
  %v581 = vunpack.c.l.b16 %v132
  %v582 = vunpack.c.l.b16 %v133
  %v583 = vunpack.c.l.b16 %v134
  %v584 = vunpack.c.l.b16 %v135
  %v585 = vunpack.c.l.b16 %v136
  %v586 = vunpack.c.l.b16 %v137
  %v587 = vunpack.c.l.b16 %v138
  %v588 = vunpack.c.l.b16 %v139
  %v589 = vunpack.c.l.b16 %v140
  %v590 = vpack.c.b16 %v527, %v526
  %v591 = vpack.c.b16 %v529, %v528
  %v592 = vpack.c.b16 %v531, %v530
  %v593 = vpack.c.b16 %v533, %v532
  %v594 = vpack.c.b16 %v535, %v534
  %v595 = vpack.c.b16 %v537, %v536
  %v596 = vpack.c.b16 %v539, %v538
  %v597 = vpack.c.b16 %v541, %v540
  %v598 = vpack.c.b16 %v543, %v542
  %v599 = vpack.c.b16 %v545, %v544
  %v600 = vpack.c.b16 %v547, %v546
  %v601 = vpack.c.b16 %v549, %v548
  %v602 = vpack.c.b16 %v551, %v550
  %v603 = vpack.c.b16 %v553, %v552
  %v604 = vpack.c.b16 %v555, %v554
  %v605 = vpack.c.b16 %v557, %v556
  %v606 = vpack.c.b16 %v559, %v558
  %v607 = vpack.c.b16 %v561, %v560
  %v608 = vpack.c.b16 %v563, %v562
  %v609 = vpack.c.b16 %v565, %v564
  %v610 = vpack.c.b16 %v567, %v566
  %v611 = vpack.c.b16 %v569, %v568
  %v612 = vpack.c.b16 %v571, %v570
  %v613 = vpack.c.b16 %v573, %v572
  %v614 = vpack.c.b16 %v575, %v574
  %v615 = vpack.c.b16 %v577, %v576
  %v616 = vpack.c.b16 %v579, %v578
  %v617 = vpack.c.b16 %v581, %v580
  %v618 = vpack.c.b16 %v583, %v582
  %v619 = vpack.c.b16 %v585, %v584
  %v620 = vpack.c.b16 %v587, %v586
  %v621 = vpack.c.b16 %v589, %v588
  %654 = vmatprep.subr.bf16.mxu0 0
  %655 = vmatpush1.bf16.msra.mxu0 %v590
  %656 = vmatprep.subr.bf16.mxu0 0
  %657 = vmatpush1.bf16.msra.mxu0 %v591
  %658 = vmatprep.subr.bf16.mxu0 0
  %659 = vmatpush1.bf16.msra.mxu0 %v592
  %660 = vmatprep.subr.bf16.mxu0 0
  %661 = vmatpush1.bf16.msra.mxu0 %v593
  %662 = vmatprep.subr.bf16.mxu0 0
  %663 = vmatpush1.bf16.msra.mxu0 %v594
  %664 = vmatprep.subr.bf16.mxu0 0
  %665 = vmatpush1.bf16.msra.mxu0 %v595
  %666 = vmatprep.subr.bf16.mxu0 0
  %667 = vmatpush1.bf16.msra.mxu0 %v596
  %668 = vmatprep.subr.bf16.mxu0 0
  %669 = vmatpush1.bf16.msra.mxu0 %v597
  %670 = vmatprep.subr.bf16.mxu0 0
  %671 = vmatpush1.bf16.msra.mxu0 %v598
  %672 = vmatprep.subr.bf16.mxu0 0
  %673 = vmatpush1.bf16.msra.mxu0 %v599
  %674 = vmatprep.subr.bf16.mxu0 0
  %675 = vmatpush1.bf16.msra.mxu0 %v600
  %676 = vmatprep.subr.bf16.mxu0 0
  %677 = vmatpush1.bf16.msra.mxu0 %v601
  %678 = vmatprep.subr.bf16.mxu0 0
  %679 = vmatpush1.bf16.msra.mxu0 %v602
  %680 = vmatprep.subr.bf16.mxu0 0
  %681 = vmatpush1.bf16.msra.mxu0 %v603
  %682 = vmatprep.subr.bf16.mxu0 0
  %683 = vmatpush1.bf16.msra.mxu0 %v604
  %684 = vmatprep.subr.bf16.mxu0 0
  %685 = vmatpush1.bf16.msra.mxu0 %v605
  %686 = vmatprep.mubr.bf16.mxu0 %v335
  %687 = vmatmul.mubr.bf16.gmra.mrb[0].mxu0 %v334
  %v688 = vpop.f32.mrb[0].mxu0
  %v689 = vadd.f32 %v146, %v688
  %v690 = vpop.f32.mrb[0].mxu0
  %v691 = vpop.f32.mrb[0].mxu0
  %v692 = vadd.f32 %v146, %v691
  %v693 = vpop.f32.mrb[0].mxu0
  %694 = vmatprep.mubr.bf16.mxu0 %v339
  %695 = vmatmul.mubr.bf16.gmra.mrb[0].mxu0 %v338
  %v696 = vpop.f32.mrb[0].mxu0
  %v697 = vadd.f32 %v146, %v696
  %v698 = vpop.f32.mrb[0].mxu0
  %v699 = vpop.f32.mrb[0].mxu0
  %v700 = vadd.f32 %v146, %v699
  %v701 = vpop.f32.mrb[0].mxu0
  %702 = vmatprep.mubr.bf16.mxu0 %v343
  %703 = vmatmul.mubr.bf16.gmra.mrb[0].mxu0 %v342
  %v704 = vpop.f32.mrb[0].mxu0
  %v705 = vadd.f32 %v146, %v704
  %v706 = vpop.f32.mrb[0].mxu0
  %v707 = vpop.f32.mrb[0].mxu0
  %v708 = vadd.f32 %v146, %v707
  %v709 = vpop.f32.mrb[0].mxu0
  %710 = vmatprep.mubr.bf16.mxu0 %v347
  %711 = vmatmul.mubr.bf16.gmra.mrb[0].mxu0 %v346
  %v712 = vpop.f32.mrb[0].mxu0
  %v713 = vadd.f32 %v146, %v712
  %v714 = vpop.f32.mrb[0].mxu0
  %v715 = vpop.f32.mrb[0].mxu0
  %v716 = vadd.f32 %v146, %v715
  %v717 = vpop.f32.mrb[0].mxu0
  %718 = vmatprep.mubr.bf16.mxu0 %v351
  %719 = vmatmul.mubr.bf16.gmra.mrb[0].mxu0 %v350
  %v720 = vpop.f32.mrb[0].mxu0
  %v721 = vadd.f32 %v146, %v720
  %v722 = vpop.f32.mrb[0].mxu0
  %v723 = vpop.f32.mrb[0].mxu0
  %v724 = vadd.f32 %v146, %v723
  %v725 = vpop.f32.mrb[0].mxu0
  %726 = vmatprep.mubr.bf16.mxu0 %v355
  %727 = vmatmul.mubr.bf16.gmra.mrb[0].mxu0 %v354
  %v728 = vpop.f32.mrb[0].mxu0
  %v729 = vadd.f32 %v146, %v728
  %v730 = vpop.f32.mrb[0].mxu0
  %v731 = vpop.f32.mrb[0].mxu0
  %v732 = vadd.f32 %v146, %v731
  %v733 = vpop.f32.mrb[0].mxu0
  %734 = vmatprep.mubr.bf16.mxu0 %v359
  %735 = vmatmul.mubr.bf16.gmra.mrb[0].mxu0 %v358
  %v736 = vpop.f32.mrb[0].mxu0
  %v737 = vadd.f32 %v146, %v736
  %v738 = vpop.f32.mrb[0].mxu0
  %v739 = vpop.f32.mrb[0].mxu0
  %v740 = vadd.f32 %v146, %v739
  %v741 = vpop.f32.mrb[0].mxu0
  %742 = vmatprep.mubr.bf16.mxu0 %v363
  %743 = vmatmul.mubr.bf16.gmra.mrb[0].mxu0 %v362
  %v744 = vpop.f32.mrb[0].mxu0
  %v745 = vadd.f32 %v146, %v744
  %v746 = vpop.f32.mrb[0].mxu0
  %v747 = vpop.f32.mrb[0].mxu0
  %v748 = vadd.f32 %v146, %v747
  %v749 = vpop.f32.mrb[0].mxu0
  %750 = vmatprep.mubr.bf16.mxu0 %v367
  %751 = vmatmul.mubr.bf16.gmra.mrb[0].mxu0 %v366
  %v752 = vpop.f32.mrb[0].mxu0
  %v753 = vadd.f32 %v146, %v752
  %v754 = vpop.f32.mrb[0].mxu0
  %v755 = vpop.f32.mrb[0].mxu0
  %v756 = vadd.f32 %v146, %v755
  %v757 = vpop.f32.mrb[0].mxu0
  %758 = vmatprep.mubr.bf16.mxu0 %v371
  %759 = vmatmul.mubr.bf16.gmra.mrb[0].mxu0 %v370
  %v760 = vpop.f32.mrb[0].mxu0
  %v761 = vadd.f32 %v146, %v760
  %v762 = vpop.f32.mrb[0].mxu0
  %v763 = vpop.f32.mrb[0].mxu0
  %v764 = vadd.f32 %v146, %v763
  %v765 = vpop.f32.mrb[0].mxu0
  %766 = vmatprep.mubr.bf16.mxu0 %v375
  %767 = vmatmul.mubr.bf16.gmra.mrb[0].mxu0 %v374
  %v768 = vpop.f32.mrb[0].mxu0
  %v769 = vadd.f32 %v146, %v768
  %v770 = vpop.f32.mrb[0].mxu0
  %v771 = vpop.f32.mrb[0].mxu0
  %v772 = vadd.f32 %v146, %v771
  %v773 = vpop.f32.mrb[0].mxu0
  %774 = vmatprep.mubr.bf16.mxu0 %v379
  %775 = vmatmul.mubr.bf16.gmra.mrb[0].mxu0 %v378
  %v776 = vpop.f32.mrb[0].mxu0
  %v777 = vadd.f32 %v146, %v776
  %v778 = vpop.f32.mrb[0].mxu0
  %v779 = vpop.f32.mrb[0].mxu0
  %v780 = vadd.f32 %v146, %v779
  %v781 = vpop.f32.mrb[0].mxu0
  %782 = vmatprep.mubr.bf16.mxu0 %v383
  %783 = vmatmul.mubr.bf16.gmra.mrb[0].mxu0 %v382
  %v784 = vpop.f32.mrb[0].mxu0
  %v785 = vadd.f32 %v146, %v784
  %v786 = vpop.f32.mrb[0].mxu0
  %v787 = vpop.f32.mrb[0].mxu0
  %v788 = vadd.f32 %v146, %v787
  %v789 = vpop.f32.mrb[0].mxu0
  %790 = vmatprep.mubr.bf16.mxu0 %v387
  %791 = vmatmul.mubr.bf16.gmra.mrb[0].mxu0 %v386
  %v792 = vpop.f32.mrb[0].mxu0
  %v793 = vadd.f32 %v146, %v792
  %v794 = vpop.f32.mrb[0].mxu0
  %v795 = vpop.f32.mrb[0].mxu0
  %v796 = vadd.f32 %v146, %v795
  %v797 = vpop.f32.mrb[0].mxu0
  %798 = vmatprep.mubr.bf16.mxu0 %v391
  %799 = vmatmul.mubr.bf16.gmra.mrb[0].mxu0 %v390
  %v800 = vpop.f32.mrb[0].mxu0
  %v801 = vadd.f32 %v146, %v800
  %v802 = vpop.f32.mrb[0].mxu0
  %v803 = vpop.f32.mrb[0].mxu0
  %v804 = vadd.f32 %v146, %v803
  %v805 = vpop.f32.mrb[0].mxu0
  %806 = vmatprep.mubr.bf16.mxu0 %v395
  %807 = vmatmul.mubr.bf16.gmra.mrb[0].mxu0 %v394
  %v808 = vpop.f32.mrb[0].mxu0
  %v809 = vadd.f32 %v146, %v808
  %v810 = vpop.f32.mrb[0].mxu0
  %v811 = vpop.f32.mrb[0].mxu0
  %v812 = vpop.f32.mrb[0].mxu0
  %813 = vdwg.mxu0
  %814 = vmatprep.subr.bf16.mxu0 0
  %815 = vmatpush1.bf16.msra.mxu0 %v606
  %816 = vmatprep.subr.bf16.mxu0 0
  %817 = vmatpush1.bf16.msra.mxu0 %v607
  %818 = vmatprep.subr.bf16.mxu0 0
  %819 = vmatpush1.bf16.msra.mxu0 %v608
  %820 = vmatprep.subr.bf16.mxu0 0
  %821 = vmatpush1.bf16.msra.mxu0 %v609
  %822 = vmatprep.subr.bf16.mxu0 0
  %823 = vmatpush1.bf16.msra.mxu0 %v610
  %824 = vmatprep.subr.bf16.mxu0 0
  %825 = vmatpush1.bf16.msra.mxu0 %v611
  %826 = vmatprep.subr.bf16.mxu0 0
  %827 = vmatpush1.bf16.msra.mxu0 %v612
  %828 = vmatprep.subr.bf16.mxu0 0
  %829 = vmatpush1.bf16.msra.mxu0 %v613
  %830 = vmatprep.subr.bf16.mxu0 0
  %831 = vmatpush1.bf16.msra.mxu0 %v614
  %832 = vmatprep.subr.bf16.mxu0 0
  %833 = vmatpush1.bf16.msra.mxu0 %v615
  %834 = vmatprep.subr.bf16.mxu0 0
  %835 = vmatpush1.bf16.msra.mxu0 %v616
  %836 = vmatprep.subr.bf16.mxu0 0
  %837 = vmatpush1.bf16.msra.mxu0 %v617
  %838 = vmatprep.subr.bf16.mxu0 0
  %839 = vmatpush1.bf16.msra.mxu0 %v618
  %840 = vmatprep.subr.bf16.mxu0 0
  %841 = vmatpush1.bf16.msra.mxu0 %v619
  %842 = vmatprep.subr.bf16.mxu0 0
  %843 = vmatpush1.bf16.msra.mxu0 %v620
  %844 = vmatprep.subr.bf16.mxu0 0
  %845 = vmatpush1.bf16.msra.mxu0 %v621
  %846 = vmatprep.mubr.bf16.mxu0 %v337
  %847 = vmatmul.mubr.bf16.gmra.mrb[0].mxu0 %v336
  %v848 = vpop.f32.mrb[0].mxu0
  %v849 = vadd.f32 %v689, %v848
  %v850 = vpop.f32.mrb[0].mxu0
  %v851 = vpop.f32.mrb[0].mxu0
  %v852 = vadd.f32 %v692, %v851
  %v853 = vpop.f32.mrb[0].mxu0
  %854 = vmatprep.mubr.bf16.mxu0 %v341
  %855 = vmatmul.mubr.bf16.gmra.mrb[0].mxu0 %v340
  %v856 = vpop.f32.mrb[0].mxu0
  %v857 = vadd.f32 %v697, %v856
  %v858 = vpop.f32.mrb[0].mxu0
  %v859 = vpop.f32.mrb[0].mxu0
  %v860 = vadd.f32 %v700, %v859
  %v861 = vpop.f32.mrb[0].mxu0
  %862 = vmatprep.mubr.bf16.mxu0 %v345
  %863 = vmatmul.mubr.bf16.gmra.mrb[0].mxu0 %v344
  %v864 = vpop.f32.mrb[0].mxu0
  %v865 = vadd.f32 %v705, %v864
  %v866 = vpop.f32.mrb[0].mxu0
  %v867 = vpop.f32.mrb[0].mxu0
  %v868 = vadd.f32 %v708, %v867
  %v869 = vpop.f32.mrb[0].mxu0
  %870 = vmatprep.mubr.bf16.mxu0 %v349
  %871 = vmatmul.mubr.bf16.gmra.mrb[0].mxu0 %v348
  %v872 = vpop.f32.mrb[0].mxu0
  %v873 = vadd.f32 %v713, %v872
  %v874 = vpop.f32.mrb[0].mxu0
  %v875 = vpop.f32.mrb[0].mxu0
  %v876 = vadd.f32 %v716, %v875
  %v877 = vpop.f32.mrb[0].mxu0
  %878 = vmatprep.mubr.bf16.mxu0 %v353
  %879 = vmatmul.mubr.bf16.gmra.mrb[0].mxu0 %v352
  %v880 = vpop.f32.mrb[0].mxu0
  %v881 = vadd.f32 %v721, %v880
  %v882 = vpop.f32.mrb[0].mxu0
  %v883 = vpop.f32.mrb[0].mxu0
  %v884 = vadd.f32 %v724, %v883
  %v885 = vpop.f32.mrb[0].mxu0
  %886 = vmatprep.mubr.bf16.mxu0 %v357
  %887 = vmatmul.mubr.bf16.gmra.mrb[0].mxu0 %v356
  %v888 = vpop.f32.mrb[0].mxu0
  %v889 = vadd.f32 %v729, %v888
  %v890 = vpop.f32.mrb[0].mxu0
  %v891 = vpop.f32.mrb[0].mxu0
  %v892 = vadd.f32 %v732, %v891
  %v893 = vpop.f32.mrb[0].mxu0
  %894 = vmatprep.mubr.bf16.mxu0 %v361
  %895 = vmatmul.mubr.bf16.gmra.mrb[0].mxu0 %v360
  %v896 = vpop.f32.mrb[0].mxu0
  %v897 = vadd.f32 %v737, %v896
  %v898 = vpop.f32.mrb[0].mxu0
  %v899 = vpop.f32.mrb[0].mxu0
  %v900 = vadd.f32 %v740, %v899
  %v901 = vpop.f32.mrb[0].mxu0
  %902 = vmatprep.mubr.bf16.mxu0 %v365
  %903 = vmatmul.mubr.bf16.gmra.mrb[0].mxu0 %v364
  %v904 = vpop.f32.mrb[0].mxu0
  %v905 = vadd.f32 %v745, %v904
  %v906 = vpop.f32.mrb[0].mxu0
  %v907 = vpop.f32.mrb[0].mxu0
  %v908 = vadd.f32 %v748, %v907
  %v909 = vpop.f32.mrb[0].mxu0
  %910 = vmatprep.mubr.bf16.mxu0 %v369
  %911 = vmatmul.mubr.bf16.gmra.mrb[0].mxu0 %v368
  %v912 = vpop.f32.mrb[0].mxu0
  %v913 = vadd.f32 %v753, %v912
  %v914 = vpop.f32.mrb[0].mxu0
  %v915 = vpop.f32.mrb[0].mxu0
  %v916 = vadd.f32 %v756, %v915
  %v917 = vpop.f32.mrb[0].mxu0
  %918 = vmatprep.mubr.bf16.mxu0 %v373
  %919 = vmatmul.mubr.bf16.gmra.mrb[0].mxu0 %v372
  %v920 = vpop.f32.mrb[0].mxu0
  %v921 = vadd.f32 %v761, %v920
  %v922 = vpop.f32.mrb[0].mxu0
  %v923 = vpop.f32.mrb[0].mxu0
  %v924 = vadd.f32 %v764, %v923
  %v925 = vpop.f32.mrb[0].mxu0
  %926 = vmatprep.mubr.bf16.mxu0 %v377
  %927 = vmatmul.mubr.bf16.gmra.mrb[0].mxu0 %v376
  %v928 = vpop.f32.mrb[0].mxu0
  %v929 = vadd.f32 %v769, %v928
  %v930 = vpop.f32.mrb[0].mxu0
  %v931 = vpop.f32.mrb[0].mxu0
  %v932 = vadd.f32 %v772, %v931
  %v933 = vpop.f32.mrb[0].mxu0
  %934 = vmatprep.mubr.bf16.mxu0 %v381
  %935 = vmatmul.mubr.bf16.gmra.mrb[0].mxu0 %v380
  %v936 = vpop.f32.mrb[0].mxu0
  %v937 = vadd.f32 %v777, %v936
  %v938 = vpop.f32.mrb[0].mxu0
  %v939 = vpop.f32.mrb[0].mxu0
  %v940 = vadd.f32 %v780, %v939
  %v941 = vpop.f32.mrb[0].mxu0
  %942 = vmatprep.mubr.bf16.mxu0 %v385
  %943 = vmatmul.mubr.bf16.gmra.mrb[0].mxu0 %v384
  %v944 = vpop.f32.mrb[0].mxu0
  %v945 = vadd.f32 %v785, %v944
  %v946 = vpop.f32.mrb[0].mxu0
  %v947 = vpop.f32.mrb[0].mxu0
  %v948 = vadd.f32 %v788, %v947
  %v949 = vpop.f32.mrb[0].mxu0
  %950 = vmatprep.mubr.bf16.mxu0 %v389
  %951 = vmatmul.mubr.bf16.gmra.mrb[0].mxu0 %v388
  %v952 = vpop.f32.mrb[0].mxu0
  %v953 = vadd.f32 %v793, %v952
  %v954 = vpop.f32.mrb[0].mxu0
  %v955 = vpop.f32.mrb[0].mxu0
  %v956 = vadd.f32 %v796, %v955
  %v957 = vpop.f32.mrb[0].mxu0
  %958 = vmatprep.mubr.bf16.mxu0 %v393
  %959 = vmatmul.mubr.bf16.gmra.mrb[0].mxu0 %v392
  %v960 = vpop.f32.mrb[0].mxu0
  %v961 = vadd.f32 %v801, %v960
  %v962 = vpop.f32.mrb[0].mxu0
  %v963 = vpop.f32.mrb[0].mxu0
  %v964 = vadd.f32 %v804, %v963
  %v965 = vpop.f32.mrb[0].mxu0
  %966 = vmatprep.mubr.bf16.mxu0 %v397
  %967 = vmatmul.mubr.bf16.gmra.mrb[0].mxu0 %v396
  %v968 = vpop.f32.mrb[0].mxu0
  %v969 = vadd.f32 %v809, %v968
  %v970 = vpop.f32.mrb[0].mxu0
  %v971 = vpop.f32.mrb[0].mxu0
  %v972 = vpop.f32.mrb[0].mxu0
  %973 = vdwg.mxu0
  %v974 = vpack.c.bf16 %v852, %v849
  %v975 = vpack.c.bf16 %v860, %v857
  %v976 = vpack.c.bf16 %v868, %v865
  %v977 = vpack.c.bf16 %v876, %v873
  %v978 = vpack.c.bf16 %v884, %v881
  %v979 = vpack.c.bf16 %v892, %v889
  %v980 = vpack.c.bf16 %v900, %v897
  %v981 = vpack.c.bf16 %v908, %v905
  %v982 = vpack.c.bf16 %v916, %v913
  %v983 = vpack.c.bf16 %v924, %v921
  %v984 = vpack.c.bf16 %v932, %v929
  %v985 = vpack.c.bf16 %v940, %v937
  %v986 = vpack.c.bf16 %v948, %v945
  %v987 = vpack.c.bf16 %v956, %v953
  %v988 = vpack.c.bf16 %v964, %v961
  %v989 = vpack.c.bf16 %v969, %v969
  %v1006 = vunpack.c.l.b16 %v974
  %v1007 = vunpack.c.h.b16 %v974
  %v1008 = vunpack.c.l.b16 %v975
  %v1009 = vunpack.c.h.b16 %v975
  %v1010 = vunpack.c.l.b16 %v976
  %v1011 = vunpack.c.h.b16 %v976
  %v1012 = vunpack.c.l.b16 %v977
  %v1013 = vunpack.c.h.b16 %v977
  %v1014 = vunpack.c.l.b16 %v978
  %v1015 = vunpack.c.h.b16 %v978
  %v1016 = vunpack.c.l.b16 %v979
  %v1017 = vunpack.c.h.b16 %v979
  %v1018 = vunpack.c.l.b16 %v980
  %v1019 = vunpack.c.h.b16 %v980
  %v1020 = vunpack.c.l.b16 %v981
  %v1021 = vunpack.c.h.b16 %v981
  %v1022 = vunpack.c.l.b16 %v982
  %v1023 = vunpack.c.h.b16 %v982
  %v1024 = vunpack.c.l.b16 %v983
  %v1025 = vunpack.c.h.b16 %v983
  %v1026 = vunpack.c.l.b16 %v984
  %v1027 = vunpack.c.h.b16 %v984
  %v1028 = vunpack.c.l.b16 %v985
  %v1029 = vunpack.c.h.b16 %v985
  %v1030 = vunpack.c.l.b16 %v986
  %v1031 = vunpack.c.h.b16 %v986
  %v1032 = vunpack.c.l.b16 %v987
  %v1033 = vunpack.c.h.b16 %v987
  %v1034 = vunpack.c.l.b16 %v988
  %v1035 = vunpack.c.h.b16 %v988
  %v1036 = vunpack.c.l.b16 %v989
  %v1037 = vpack.c.b16 %v1006, %v1006
  %v1038 = vpack.c.b16 %v1007, %v1007
  %v1039 = vpack.c.b16 %v1008, %v1008
  %v1040 = vpack.c.b16 %v1009, %v1009
  %v1041 = vpack.c.b16 %v1010, %v1010
  %v1042 = vpack.c.b16 %v1011, %v1011
  %v1043 = vpack.c.b16 %v1012, %v1012
  %v1044 = vpack.c.b16 %v1013, %v1013
  %v1045 = vpack.c.b16 %v1014, %v1014
  %v1046 = vpack.c.b16 %v1015, %v1015
  %v1047 = vpack.c.b16 %v1016, %v1016
  %v1048 = vpack.c.b16 %v1017, %v1017
  %v1049 = vpack.c.b16 %v1018, %v1018
  %v1050 = vpack.c.b16 %v1019, %v1019
  %v1051 = vpack.c.b16 %v1020, %v1020
  %v1052 = vpack.c.b16 %v1021, %v1021
  %v1053 = vpack.c.b16 %v1022, %v1022
  %v1054 = vpack.c.b16 %v1023, %v1023
  %v1055 = vpack.c.b16 %v1024, %v1024
  %v1056 = vpack.c.b16 %v1025, %v1025
  %v1057 = vpack.c.b16 %v1026, %v1026
  %v1058 = vpack.c.b16 %v1027, %v1027
  %v1059 = vpack.c.b16 %v1028, %v1028
  %v1060 = vpack.c.b16 %v1029, %v1029
  %v1061 = vpack.c.b16 %v1030, %v1030
  %v1062 = vpack.c.b16 %v1031, %v1031
  %v1063 = vpack.c.b16 %v1032, %v1032
  %v1064 = vpack.c.b16 %v1033, %v1033
  %v1065 = vpack.c.b16 %v1034, %v1034
  %v1066 = vpack.c.b16 %v1035, %v1035
  %v1067 = vpack.c.b16 %v1036, %v1036
  %vm1099 = vcmask 257024
  %1100 = vst.msk [vmem:[%s3] sm:$0xf] %vm1099, %v1037
  %1101 = vst.msk [vmem:[%s3 + $0x4] sm:$0xf] %vm1099, %v1038
  %1102 = vst.msk [vmem:[%s3 + $0x8] sm:$0xf] %vm1099, %v1039
  %1103 = vst.msk [vmem:[%s3 + $0xc] sm:$0xf] %vm1099, %v1040
  %1104 = vst.msk [vmem:[%s3 + $0x10] sm:$0xf] %vm1099, %v1041
  %1105 = vst.msk [vmem:[%s3 + $0x14] sm:$0xf] %vm1099, %v1042
  %1106 = vst.msk [vmem:[%s3 + $0x18] sm:$0xf] %vm1099, %v1043
  %1107 = vst.msk [vmem:[%s3 + $0x1c] sm:$0xf] %vm1099, %v1044
  %1108 = vst.msk [vmem:[%s3 + $0x20] sm:$0xf] %vm1099, %v1045
  %1109 = vst.msk [vmem:[%s3 + $0x24] sm:$0xf] %vm1099, %v1046
  %1110 = vst.msk [vmem:[%s3 + $0x28] sm:$0xf] %vm1099, %v1047
  %1111 = vst.msk [vmem:[%s3 + $0x2c] sm:$0xf] %vm1099, %v1048
  %1112 = vst.msk [vmem:[%s3 + $0x30] sm:$0xf] %vm1099, %v1049
  %1113 = vst.msk [vmem:[%s3 + $0x34] sm:$0xf] %vm1099, %v1050
  %1114 = vst.msk [vmem:[%s3 + $0x38] sm:$0xf] %vm1099, %v1051
  %1115 = vst.msk [vmem:[%s3 + $0x3c] sm:$0xf] %vm1099, %v1052
  %1116 = vst.msk [vmem:[%s3 + $0x40] sm:$0xf] %vm1099, %v1053
  %1117 = vst.msk [vmem:[%s3 + $0x44] sm:$0xf] %vm1099, %v1054
  %1118 = vst.msk [vmem:[%s3 + $0x48] sm:$0xf] %vm1099, %v1055
  %1119 = vst.msk [vmem:[%s3 + $0x4c] sm:$0xf] %vm1099, %v1056
  %1120 = vst.msk [vmem:[%s3 + $0x50] sm:$0xf] %vm1099, %v1057
  %1121 = vst.msk [vmem:[%s3 + $0x54] sm:$0xf] %vm1099, %v1058
  %1122 = vst.msk [vmem:[%s3 + $0x58] sm:$0xf] %vm1099, %v1059
  %1123 = vst.msk [vmem:[%s3 + $0x5c] sm:$0xf] %vm1099, %v1060
  %1124 = vst.msk [vmem:[%s3 + $0x60] sm:$0xf] %vm1099, %v1061
  %1125 = vst.msk [vmem:[%s3 + $0x64] sm:$0xf] %vm1099, %v1062
  %1126 = vst.msk [vmem:[%s3 + $0x68] sm:$0xf] %vm1099, %v1063
  %1127 = vst.msk [vmem:[%s3 + $0x6c] sm:$0xf] %vm1099, %v1064
  %1128 = vst.msk [vmem:[%s3 + $0x70] sm:$0xf] %vm1099, %v1065
  %1129 = vst.msk [vmem:[%s3 + $0x74] sm:$0xf] %vm1099, %v1066
  %vm1130 = vcmask 253952
  %1131 = vst.msk [vmem:[%s3 + $0x78] sm:$0x1] %vm1130, %v1067
  // Predicated region
  $region14: #{discriminator_forward.7} parent=0 // pred_check
    _
  $region15: #{discriminator_forward.7} parent=0 // pred_check_branch
    %1133 = sbr.rel (0) target = $region17
  $region16: #{discriminator_forward.7} parent=0 // pred_region
    _
  $region17: #{discriminator_forward.7} parent=0 // pred_fallthru
    _
  // Predicated region
  $region18: #{discriminator_forward.7} parent=0 // pred_check
    _
  $region19: #{discriminator_forward.7} parent=0 // pred_check_branch
    %1135 = sbr.rel (0) target = $region21
  $region20: #{discriminator_forward.7} parent=0 // pred_region
    _
  $region21: #{discriminator_forward.7} parent=0 // pred_fallthru
    _

// kernel: discriminator_forward.8
$region0: #{discriminator_forward.8}
  #allocation0 [shape = 'u32[]', space=smem, size = 0x4, offset = 0x4, fixed_abs, tag = 'smem constant byte address 0x4 - core index']
  #allocation1 [shape = 'u32[144,128]{1,0:T(1,128)}', space=vmem, size = 0x12000, scoped, tag = 'internal scratch']
  #allocation2 [shape = 'f32[242,64]{1,0:T(8,128)}', space=vmem, size = 0x1f000, scoped, tag = 'scratch operand']
  %s0 = inlined_call_operand.vmem [shape: bf16[242,288], index: 0, kind: input, shape index: {}]
  %s1 = inlined_call_operand.vmem [shape: bf16[288,64], index: 1, kind: input, shape index: {}]
  %s2 = inlined_call_operand.vmem [shape: f32[1,64], index: 2, kind: input, shape index: {}]
  %s3 = inlined_call_operand.vmem [shape: f32[1,64], index: 3, kind: input, shape index: {}]
  %s4 = inlined_call_operand.vmem [shape: bf16[242,64], index: 4, kind: output, shape index: {}]
  %s5 = sld [smem:[#allocation0]]
  $region30: #{discriminator_forward.8} parent=0
    _
  %s7 = ssub.s32 1, %s5
  %s8 = scalar_select 0, %s7, %s5
  // Predicated region
  $region2: #{discriminator_forward.8} parent=0 // pred_check
    _
  $region3: #{discriminator_forward.8} parent=0 // pred_check_branch
    %10 = sbr.rel (0) target = $region5
  $region4: #{discriminator_forward.8} parent=0 // pred_region
    _
  $region5: #{discriminator_forward.8} parent=0 // pred_fallthru
    _
  // Predicated region
  $region6: #{discriminator_forward.8} parent=0 // pred_check
    _
  $region7: #{discriminator_forward.8} parent=0 // pred_check_branch
    %12 = sbr.rel (0) target = $region9
  $region8: #{discriminator_forward.8} parent=0 // pred_region
    _
  $region9: #{discriminator_forward.8} parent=0 // pred_fallthru
    _
  // Predicated region
  $region10: #{discriminator_forward.8} parent=0 // pred_check
    _
  $region11: #{discriminator_forward.8} parent=0 // pred_check_branch
    %14 = sbr.rel (0) target = $region13
  $region12: #{discriminator_forward.8} parent=0 // pred_region
    _
  $region13: #{discriminator_forward.8} parent=0 // pred_fallthru
    _
  // Predicated region
  $region14: #{discriminator_forward.8} parent=0 // pred_check
    _
  $region15: #{discriminator_forward.8} parent=0 // pred_check_branch
    %16 = sbr.rel (0) target = $region17
  $region16: #{discriminator_forward.8} parent=0 // pred_region
    _
  $region17: #{discriminator_forward.8} parent=0 // pred_fallthru
    _
  %v18 = vld [vmem:[%s0] sm:$0xff]
  %v19 = vld [vmem:[%s0 + $0x8] sm:$0xf]
  %v20 = vld [vmem:[%s0 + $0xc] sm:$0xff]
  %v21 = vld [vmem:[%s0 + $0x14] sm:$0xf]
  %v22 = vld [vmem:[%s0 + $0x18] sm:$0xff]
  %v23 = vld [vmem:[%s0 + $0x20] sm:$0xf]
  %v24 = vld [vmem:[%s0 + $0x24] sm:$0xff]
  %v25 = vld [vmem:[%s0 + $0x2c] sm:$0xf]
  %v26 = vld [vmem:[%s0 + $0x30] sm:$0xff]
  %v27 = vld [vmem:[%s0 + $0x38] sm:$0xf]
  %v28 = vld [vmem:[%s0 + $0x3c] sm:$0xff]
  %v29 = vld [vmem:[%s0 + $0x44] sm:$0xf]
  %v30 = vld [vmem:[%s0 + $0x48] sm:$0xff]
  %v31 = vld [vmem:[%s0 + $0x50] sm:$0xf]
  %v32 = vld [vmem:[%s0 + $0x54] sm:$0xff]
  %v33 = vld [vmem:[%s0 + $0x5c] sm:$0xf]
  %v34 = vld [vmem:[%s0 + $0x60] sm:$0xff]
  %v35 = vld [vmem:[%s0 + $0x68] sm:$0xf]
  %v36 = vld [vmem:[%s0 + $0x6c] sm:$0xff]
  %v37 = vld [vmem:[%s0 + $0x74] sm:$0xf]
  %v38 = vld [vmem:[%s0 + $0x78] sm:$0xff]
  %v39 = vld [vmem:[%s0 + $0x80] sm:$0xf]
  %v40 = vld [vmem:[%s0 + $0x84] sm:$0xff]
  %v41 = vld [vmem:[%s0 + $0x8c] sm:$0xf]
  %v42 = vld [vmem:[%s0 + $0x90] sm:$0xff]
  %v43 = vld [vmem:[%s0 + $0x98] sm:$0xf]
  %v44 = vld [vmem:[%s0 + $0x9c] sm:$0xff]
  %v45 = vld [vmem:[%s0 + $0xa4] sm:$0xf]
  %v46 = vld [vmem:[%s0 + $0xa8] sm:$0xff]
  %v47 = vld [vmem:[%s0 + $0xb0] sm:$0xf]
  %v48 = vld [vmem:[%s0 + $0xb4] sm:$0xff]
  %v49 = vld [vmem:[%s0 + $0xbc] sm:$0xf]
  %v50 = vld [vmem:[%s0 + $0xc0] sm:$0xff]
  %v51 = vld [vmem:[%s0 + $0xc8] sm:$0xf]
  %v52 = vld [vmem:[%s0 + $0xcc] sm:$0xff]
  %v53 = vld [vmem:[%s0 + $0xd4] sm:$0xf]
  %v54 = vld [vmem:[%s0 + $0xd8] sm:$0xff]
  %v55 = vld [vmem:[%s0 + $0xe0] sm:$0xf]
  %v56 = vld [vmem:[%s0 + $0xe4] sm:$0xff]
  %v57 = vld [vmem:[%s0 + $0xec] sm:$0xf]
  %v58 = vld [vmem:[%s0 + $0xf0] sm:$0xff]
  %v59 = vld [vmem:[%s0 + $0xf8] sm:$0xf]
  %v60 = vld [vmem:[%s0 + $0xfc] sm:$0xff]
  %v61 = vld [vmem:[%s0 + $0x104] sm:$0xf]
  %v62 = vld [vmem:[%s0 + $0x108] sm:$0xff]
  %v63 = vld [vmem:[%s0 + $0x110] sm:$0xf]
  %v64 = vld [vmem:[%s0 + $0x114] sm:$0xff]
  %v65 = vld [vmem:[%s0 + $0x11c] sm:$0xf]
  %v66 = vld [vmem:[%s0 + $0x120] sm:$0xff]
  %v67 = vld [vmem:[%s0 + $0x128] sm:$0xf]
  %v68 = vld [vmem:[%s0 + $0x12c] sm:$0xff]
  %v69 = vld [vmem:[%s0 + $0x134] sm:$0xf]
  %v70 = vld [vmem:[%s0 + $0x138] sm:$0xff]
  %v71 = vld [vmem:[%s0 + $0x140] sm:$0xf]
  %v72 = vld [vmem:[%s0 + $0x144] sm:$0xff]
  %v73 = vld [vmem:[%s0 + $0x14c] sm:$0xf]
  %v74 = vld [vmem:[%s0 + $0x150] sm:$0xff]
  %v75 = vld [vmem:[%s0 + $0x158] sm:$0xf]
  %v76 = vld [vmem:[%s0 + $0x15c] sm:$0xff]
  %v77 = vld [vmem:[%s0 + $0x164] sm:$0xf]
  %v78 = vld [vmem:[%s0 + $0x168] sm:$0x11]
  %v79 = vld [vmem:[%s0 + $0x170] sm:$0x1]
  %v80 = vld [vmem:[%s1] sm:$0xf]
  %v81 = vld [vmem:[%s1 + $0x4] sm:$0xf]
  %v82 = vld [vmem:[%s1 + $0x8] sm:$0xf]
  %v83 = vld [vmem:[%s1 + $0xc] sm:$0xf]
  %v84 = vld [vmem:[%s1 + $0x10] sm:$0xf]
  %v85 = vld [vmem:[%s1 + $0x14] sm:$0xf]
  %v86 = vld [vmem:[%s1 + $0x18] sm:$0xf]
  %v87 = vld [vmem:[%s1 + $0x1c] sm:$0xf]
  %v88 = vld [vmem:[%s1 + $0x20] sm:$0xf]
  %v89 = vld [vmem:[%s1 + $0x24] sm:$0xf]
  %v90 = vld [vmem:[%s1 + $0x28] sm:$0xf]
  %v91 = vld [vmem:[%s1 + $0x2c] sm:$0xf]
  %v92 = vld [vmem:[%s1 + $0x30] sm:$0xf]
  %v93 = vld [vmem:[%s1 + $0x34] sm:$0xf]
  %v94 = vld [vmem:[%s1 + $0x38] sm:$0xf]
  %v95 = vld [vmem:[%s1 + $0x3c] sm:$0xf]
  %v96 = vld [vmem:[%s1 + $0x40] sm:$0xf]
  %v97 = vld [vmem:[%s1 + $0x44] sm:$0xf]
  %v98 = vld [vmem:[%s1 + $0x48] sm:$0xf]
  %v99 = vld [vmem:[%s1 + $0x4c] sm:$0xf]
  %v100 = vld [vmem:[%s1 + $0x50] sm:$0xf]
  %v101 = vld [vmem:[%s1 + $0x54] sm:$0xf]
  %v102 = vld [vmem:[%s1 + $0x58] sm:$0xf]
  %v103 = vld [vmem:[%s1 + $0x5c] sm:$0xf]
  %v104 = vld [vmem:[%s1 + $0x60] sm:$0xf]
  %v105 = vld [vmem:[%s1 + $0x64] sm:$0xf]
  %v106 = vld [vmem:[%s1 + $0x68] sm:$0xf]
  %v107 = vld [vmem:[%s1 + $0x6c] sm:$0xf]
  %v108 = vld [vmem:[%s1 + $0x70] sm:$0xf]
  %v109 = vld [vmem:[%s1 + $0x74] sm:$0xf]
  %v110 = vld [vmem:[%s1 + $0x78] sm:$0xf]
  %v111 = vld [vmem:[%s1 + $0x7c] sm:$0xf]
  %v112 = vld [vmem:[%s1 + $0x80] sm:$0xf]
  %v113 = vld [vmem:[%s1 + $0x84] sm:$0xf]
  %v114 = vld [vmem:[%s1 + $0x88] sm:$0xf]
  %v115 = vld [vmem:[%s1 + $0x8c] sm:$0xf]
  %v178 = vunpack.c.l.b16 %v18
  %v179 = vunpack.c.h.b16 %v18
  %v180 = vunpack.c.l.b16 %v19
  %v181 = vunpack.c.l.b16 %v20
  %v182 = vunpack.c.h.b16 %v20
  %v183 = vunpack.c.l.b16 %v21
  %v184 = vunpack.c.l.b16 %v22
  %v185 = vunpack.c.h.b16 %v22
  %v186 = vunpack.c.l.b16 %v23
  %v187 = vunpack.c.l.b16 %v24
  %v188 = vunpack.c.h.b16 %v24
  %v189 = vunpack.c.l.b16 %v25
  %v190 = vunpack.c.l.b16 %v26
  %v191 = vunpack.c.h.b16 %v26
  %v192 = vunpack.c.l.b16 %v27
  %v193 = vunpack.c.l.b16 %v28
  %v194 = vunpack.c.h.b16 %v28
  %v195 = vunpack.c.l.b16 %v29
  %v196 = vunpack.c.l.b16 %v30
  %v197 = vunpack.c.h.b16 %v30
  %v198 = vunpack.c.l.b16 %v31
  %v199 = vunpack.c.l.b16 %v32
  %v200 = vunpack.c.h.b16 %v32
  %v201 = vunpack.c.l.b16 %v33
  %v202 = vunpack.c.l.b16 %v34
  %v203 = vunpack.c.h.b16 %v34
  %v204 = vunpack.c.l.b16 %v35
  %v205 = vunpack.c.l.b16 %v36
  %v206 = vunpack.c.h.b16 %v36
  %v207 = vunpack.c.l.b16 %v37
  %v208 = vunpack.c.l.b16 %v38
  %v209 = vunpack.c.h.b16 %v38
  %v210 = vunpack.c.l.b16 %v39
  %v211 = vunpack.c.l.b16 %v40
  %v212 = vunpack.c.h.b16 %v40
  %v213 = vunpack.c.l.b16 %v41
  %v214 = vunpack.c.l.b16 %v42
  %v215 = vunpack.c.h.b16 %v42
  %v216 = vunpack.c.l.b16 %v43
  %v217 = vunpack.c.l.b16 %v44
  %v218 = vunpack.c.h.b16 %v44
  %v219 = vunpack.c.l.b16 %v45
  %v220 = vunpack.c.l.b16 %v46
  %v221 = vunpack.c.h.b16 %v46
  %v222 = vunpack.c.l.b16 %v47
  %v223 = vunpack.c.l.b16 %v48
  %v224 = vunpack.c.h.b16 %v48
  %v225 = vunpack.c.l.b16 %v49
  %v226 = vunpack.c.l.b16 %v50
  %v227 = vunpack.c.h.b16 %v50
  %v228 = vunpack.c.l.b16 %v51
  %v229 = vunpack.c.l.b16 %v52
  %v230 = vunpack.c.h.b16 %v52
  %v231 = vunpack.c.l.b16 %v53
  %v232 = vunpack.c.l.b16 %v54
  %v233 = vunpack.c.h.b16 %v54
  %v234 = vunpack.c.l.b16 %v55
  %v235 = vunpack.c.l.b16 %v56
  %v236 = vunpack.c.h.b16 %v56
  %v237 = vunpack.c.l.b16 %v57
  %v238 = vunpack.c.l.b16 %v58
  %v239 = vunpack.c.h.b16 %v58
  %v240 = vunpack.c.l.b16 %v59
  %v241 = vunpack.c.l.b16 %v60
  %v242 = vunpack.c.h.b16 %v60
  %v243 = vunpack.c.l.b16 %v61
  %v244 = vunpack.c.l.b16 %v62
  %v245 = vunpack.c.h.b16 %v62
  %v246 = vunpack.c.l.b16 %v63
  %v247 = vunpack.c.l.b16 %v64
  %v248 = vunpack.c.h.b16 %v64
  %v249 = vunpack.c.l.b16 %v65
  %v250 = vunpack.c.l.b16 %v66
  %v251 = vunpack.c.h.b16 %v66
  %v252 = vunpack.c.l.b16 %v67
  %v253 = vunpack.c.l.b16 %v68
  %v254 = vunpack.c.h.b16 %v68
  %v255 = vunpack.c.l.b16 %v69
  %v256 = vunpack.c.l.b16 %v70
  %v257 = vunpack.c.h.b16 %v70
  %v258 = vunpack.c.l.b16 %v71
  %v259 = vunpack.c.l.b16 %v72
  %v260 = vunpack.c.h.b16 %v72
  %v261 = vunpack.c.l.b16 %v73
  %v262 = vunpack.c.l.b16 %v74
  %v263 = vunpack.c.h.b16 %v74
  %v264 = vunpack.c.l.b16 %v75
  %v265 = vunpack.c.l.b16 %v76
  %v266 = vunpack.c.h.b16 %v76
  %v267 = vunpack.c.l.b16 %v77
  %v268 = vunpack.c.l.b16 %v78
  %v269 = vunpack.c.h.b16 %v78
  %v270 = vunpack.c.l.b16 %v79
  %v271 = vpack.c.b16 %v181, %v178
  %v272 = vpack.c.b16 %v182, %v179
  %v273 = vpack.c.b16 %v183, %v180
  %v274 = vpack.c.b16 %v187, %v184
  %v275 = vpack.c.b16 %v188, %v185
  %v276 = vpack.c.b16 %v189, %v186
  %v277 = vpack.c.b16 %v193, %v190
  %v278 = vpack.c.b16 %v194, %v191
  %v279 = vpack.c.b16 %v195, %v192
  %v280 = vpack.c.b16 %v199, %v196
  %v281 = vpack.c.b16 %v200, %v197
  %v282 = vpack.c.b16 %v201, %v198
  %v283 = vpack.c.b16 %v205, %v202
  %v284 = vpack.c.b16 %v206, %v203
  %v285 = vpack.c.b16 %v207, %v204
  %v286 = vpack.c.b16 %v211, %v208
  %v287 = vpack.c.b16 %v212, %v209
  %v288 = vpack.c.b16 %v213, %v210
  %v289 = vpack.c.b16 %v217, %v214
  %v290 = vpack.c.b16 %v218, %v215
  %v291 = vpack.c.b16 %v219, %v216
  %v292 = vpack.c.b16 %v223, %v220
  %v293 = vpack.c.b16 %v224, %v221
  %v294 = vpack.c.b16 %v225, %v222
  %v295 = vpack.c.b16 %v229, %v226
  %v296 = vpack.c.b16 %v230, %v227
  %v297 = vpack.c.b16 %v231, %v228
  %v298 = vpack.c.b16 %v235, %v232
  %v299 = vpack.c.b16 %v236, %v233
  %v300 = vpack.c.b16 %v237, %v234
  %v301 = vpack.c.b16 %v241, %v238
  %v302 = vpack.c.b16 %v242, %v239
  %v303 = vpack.c.b16 %v243, %v240
  %v304 = vpack.c.b16 %v247, %v244
  %v305 = vpack.c.b16 %v248, %v245
  %v306 = vpack.c.b16 %v249, %v246
  %v307 = vpack.c.b16 %v253, %v250
  %v308 = vpack.c.b16 %v254, %v251
  %v309 = vpack.c.b16 %v255, %v252
  %v310 = vpack.c.b16 %v259, %v256
  %v311 = vpack.c.b16 %v260, %v257
  %v312 = vpack.c.b16 %v261, %v258
  %v313 = vpack.c.b16 %v265, %v262
  %v314 = vpack.c.b16 %v266, %v263
  %v315 = vpack.c.b16 %v267, %v264
  %v316 = vpack.c.b16 %v268, %v268
  %v317 = vpack.c.b16 %v269, %v269
  %v318 = vpack.c.b16 %v270, %v270
  %v387 = vunpack.c.l.b16 %v80
  %v388 = vunpack.c.l.b16 %v81
  %v389 = vunpack.c.l.b16 %v82
  %v390 = vunpack.c.l.b16 %v83
  %v391 = vunpack.c.l.b16 %v84
  %v392 = vunpack.c.l.b16 %v85
  %v393 = vunpack.c.l.b16 %v86
  %v394 = vunpack.c.l.b16 %v87
  %v395 = vunpack.c.l.b16 %v88
  %v396 = vunpack.c.l.b16 %v89
  %v397 = vunpack.c.l.b16 %v90
  %v398 = vunpack.c.l.b16 %v91
  %v399 = vunpack.c.l.b16 %v92
  %v400 = vunpack.c.l.b16 %v93
  %v401 = vunpack.c.l.b16 %v94
  %v402 = vunpack.c.l.b16 %v95
  %v403 = vunpack.c.l.b16 %v96
  %v404 = vunpack.c.l.b16 %v97
  %v405 = vunpack.c.l.b16 %v98
  %v406 = vunpack.c.l.b16 %v99
  %v407 = vunpack.c.l.b16 %v100
  %v408 = vunpack.c.l.b16 %v101
  %v409 = vunpack.c.l.b16 %v102
  %v410 = vunpack.c.l.b16 %v103
  %v411 = vunpack.c.l.b16 %v104
  %v412 = vunpack.c.l.b16 %v105
  %v413 = vunpack.c.l.b16 %v106
  %v414 = vunpack.c.l.b16 %v107
  %v415 = vunpack.c.l.b16 %v108
  %v416 = vunpack.c.l.b16 %v109
  %v417 = vunpack.c.l.b16 %v110
  %v418 = vunpack.c.l.b16 %v111
  %v419 = vunpack.c.l.b16 %v112
  %v420 = vunpack.c.l.b16 %v113
  %v421 = vunpack.c.l.b16 %v114
  %v422 = vunpack.c.l.b16 %v115
  %v423 = vpack.c.b16 %v388, %v387
  %v424 = vpack.c.b16 %v390, %v389
  %v425 = vpack.c.b16 %v392, %v391
  %v426 = vpack.c.b16 %v394, %v393
  %v427 = vpack.c.b16 %v396, %v395
  %v428 = vpack.c.b16 %v398, %v397
  %v429 = vpack.c.b16 %v400, %v399
  %v430 = vpack.c.b16 %v402, %v401
  %v431 = vpack.c.b16 %v404, %v403
  %v432 = vpack.c.b16 %v406, %v405
  %v433 = vpack.c.b16 %v408, %v407
  %v434 = vpack.c.b16 %v410, %v409
  %v435 = vpack.c.b16 %v412, %v411
  %v436 = vpack.c.b16 %v414, %v413
  %v437 = vpack.c.b16 %v416, %v415
  %v438 = vpack.c.b16 %v418, %v417
  %v439 = vpack.c.b16 %v420, %v419
  %v440 = vpack.c.b16 %v422, %v421
  %vm459 = vcmask 261120
  %v461 = vsel %vm459, %v273, 0
  %v464 = vsel %vm459, %v276, 0
  %v467 = vsel %vm459, %v279, 0
  %v470 = vsel %vm459, %v282, 0
  %v473 = vsel %vm459, %v285, 0
  %v476 = vsel %vm459, %v288, 0
  %v479 = vsel %vm459, %v291, 0
  %v482 = vsel %vm459, %v294, 0
  %v485 = vsel %vm459, %v297, 0
  %v488 = vsel %vm459, %v300, 0
  %v491 = vsel %vm459, %v303, 0
  %v494 = vsel %vm459, %v306, 0
  %v497 = vsel %vm459, %v309, 0
  %v500 = vsel %vm459, %v312, 0
  %v503 = vsel %vm459, %v315, 0
  %v506 = vsel %vm459, %v318, 0
  %508 = vmatprep.subr.bf16.mxu0 0
  %509 = vmatpush1.bf16.msra.mxu0 %v423
  %510 = vmatprep.subr.bf16.mxu0 0
  %511 = vmatpush1.bf16.msra.mxu0 %v424
  %512 = vmatprep.subr.bf16.mxu0 0
  %513 = vmatpush1.bf16.msra.mxu0 %v425
  %514 = vmatprep.subr.bf16.mxu0 0
  %515 = vmatpush1.bf16.msra.mxu0 %v426
  %516 = vmatprep.subr.bf16.mxu0 0
  %517 = vmatpush1.bf16.msra.mxu0 %v427
  %518 = vmatprep.subr.bf16.mxu0 0
  %519 = vmatpush1.bf16.msra.mxu0 %v428
  %520 = vmatprep.subr.bf16.mxu0 0
  %521 = vmatpush1.bf16.msra.mxu0 %v429
  %522 = vmatprep.subr.bf16.mxu0 0
  %523 = vmatpush1.bf16.msra.mxu0 %v430
  %524 = vmatprep.subr.bf16.mxu0 0
  %525 = vmatpush1.bf16.msra.mxu0 %v431
  %526 = vmatprep.subr.bf16.mxu0 0
  %527 = vmatpush1.bf16.msra.mxu0 %v432
  %528 = vmatprep.subr.bf16.mxu0 0
  %529 = vmatpush1.bf16.msra.mxu0 %v433
  %530 = vmatprep.subr.bf16.mxu0 0
  %531 = vmatpush1.bf16.msra.mxu0 %v434
  %532 = vmatprep.subr.bf16.mxu0 0
  %533 = vmatpush1.bf16.msra.mxu0 %v435
  %534 = vmatprep.subr.bf16.mxu0 0
  %535 = vmatpush1.bf16.msra.mxu0 %v436
  %536 = vmatprep.subr.bf16.mxu0 0
  %537 = vmatpush1.bf16.msra.mxu0 %v437
  %538 = vmatprep.subr.bf16.mxu0 0
  %539 = vmatpush1.bf16.msra.mxu0 %v438
  %540 = vmatprep.mubr.bf16.mxu0 %v272
  %541 = vmatmul.mubr.bf16.gmra.mrb[0].mxu0 %v271
  %v542 = vpop.f32.mrb[0].mxu0
  %v543 = vadd.f32 0.0, %v542
  %v544 = vpop.f32.mrb[0].mxu0
  %v545 = vpop.f32.mrb[0].mxu0
  %v546 = vadd.f32 0.0, %v545
  %v547 = vpop.f32.mrb[0].mxu0
  %548 = vmatprep.mubr.bf16.mxu0 %v275
  %549 = vmatmul.mubr.bf16.gmra.mrb[0].mxu0 %v274
  %v550 = vpop.f32.mrb[0].mxu0
  %v551 = vadd.f32 0.0, %v550
  %v552 = vpop.f32.mrb[0].mxu0
  %v553 = vpop.f32.mrb[0].mxu0
  %v554 = vadd.f32 0.0, %v553
  %v555 = vpop.f32.mrb[0].mxu0
  %556 = vmatprep.mubr.bf16.mxu0 %v278
  %557 = vmatmul.mubr.bf16.gmra.mrb[0].mxu0 %v277
  %v558 = vpop.f32.mrb[0].mxu0
  %v559 = vadd.f32 0.0, %v558
  %v560 = vpop.f32.mrb[0].mxu0
  %v561 = vpop.f32.mrb[0].mxu0
  %v562 = vadd.f32 0.0, %v561
  %v563 = vpop.f32.mrb[0].mxu0
  %564 = vmatprep.mubr.bf16.mxu0 %v281
  %565 = vmatmul.mubr.bf16.gmra.mrb[0].mxu0 %v280
  %v566 = vpop.f32.mrb[0].mxu0
  %v567 = vadd.f32 0.0, %v566
  %v568 = vpop.f32.mrb[0].mxu0
  %v569 = vpop.f32.mrb[0].mxu0
  %v570 = vadd.f32 0.0, %v569
  %v571 = vpop.f32.mrb[0].mxu0
  %572 = vmatprep.mubr.bf16.mxu0 %v284
  %573 = vmatmul.mubr.bf16.gmra.mrb[0].mxu0 %v283
  %v574 = vpop.f32.mrb[0].mxu0
  %v575 = vadd.f32 0.0, %v574
  %v576 = vpop.f32.mrb[0].mxu0
  %v577 = vpop.f32.mrb[0].mxu0
  %v578 = vadd.f32 0.0, %v577
  %v579 = vpop.f32.mrb[0].mxu0
  %580 = vmatprep.mubr.bf16.mxu0 %v287
  %581 = vmatmul.mubr.bf16.gmra.mrb[0].mxu0 %v286
  %v582 = vpop.f32.mrb[0].mxu0
  %v583 = vadd.f32 0.0, %v582
  %v584 = vpop.f32.mrb[0].mxu0
  %v585 = vpop.f32.mrb[0].mxu0
  %v586 = vadd.f32 0.0, %v585
  %v587 = vpop.f32.mrb[0].mxu0
  %588 = vmatprep.mubr.bf16.mxu0 %v290
  %589 = vmatmul.mubr.bf16.gmra.mrb[0].mxu0 %v289
  %v590 = vpop.f32.mrb[0].mxu0
  %v591 = vadd.f32 0.0, %v590
  %v592 = vpop.f32.mrb[0].mxu0
  %v593 = vpop.f32.mrb[0].mxu0
  %v594 = vadd.f32 0.0, %v593
  %v595 = vpop.f32.mrb[0].mxu0
  %596 = vmatprep.mubr.bf16.mxu0 %v293
  %597 = vmatmul.mubr.bf16.gmra.mrb[0].mxu0 %v292
  %v598 = vpop.f32.mrb[0].mxu0
  %v599 = vadd.f32 0.0, %v598
  %v600 = vpop.f32.mrb[0].mxu0
  %v601 = vpop.f32.mrb[0].mxu0
  %v602 = vadd.f32 0.0, %v601
  %v603 = vpop.f32.mrb[0].mxu0
  %604 = vmatprep.mubr.bf16.mxu0 %v296
  %605 = vmatmul.mubr.bf16.gmra.mrb[0].mxu0 %v295
  %v606 = vpop.f32.mrb[0].mxu0
  %v607 = vadd.f32 0.0, %v606
  %v608 = vpop.f32.mrb[0].mxu0
  %v609 = vpop.f32.mrb[0].mxu0
  %v610 = vadd.f32 0.0, %v609
  %v611 = vpop.f32.mrb[0].mxu0
  %612 = vmatprep.mubr.bf16.mxu0 %v299
  %613 = vmatmul.mubr.bf16.gmra.mrb[0].mxu0 %v298
  %v614 = vpop.f32.mrb[0].mxu0
  %v615 = vadd.f32 0.0, %v614
  %v616 = vpop.f32.mrb[0].mxu0
  %v617 = vpop.f32.mrb[0].mxu0
  %v618 = vadd.f32 0.0, %v617
  %v619 = vpop.f32.mrb[0].mxu0
  %620 = vmatprep.mubr.bf16.mxu0 %v302
  %621 = vmatmul.mubr.bf16.gmra.mrb[0].mxu0 %v301
  %v622 = vpop.f32.mrb[0].mxu0
  %v623 = vadd.f32 0.0, %v622
  %v624 = vpop.f32.mrb[0].mxu0
  %v625 = vpop.f32.mrb[0].mxu0
  %v626 = vadd.f32 0.0, %v625
  %v627 = vpop.f32.mrb[0].mxu0
  %628 = vmatprep.mubr.bf16.mxu0 %v305
  %629 = vmatmul.mubr.bf16.gmra.mrb[0].mxu0 %v304
  %v630 = vpop.f32.mrb[0].mxu0
  %v631 = vadd.f32 0.0, %v630
  %v632 = vpop.f32.mrb[0].mxu0
  %v633 = vpop.f32.mrb[0].mxu0
  %v634 = vadd.f32 0.0, %v633
  %v635 = vpop.f32.mrb[0].mxu0
  %636 = vmatprep.mubr.bf16.mxu0 %v308
  %637 = vmatmul.mubr.bf16.gmra.mrb[0].mxu0 %v307
  %v638 = vpop.f32.mrb[0].mxu0
  %v639 = vadd.f32 0.0, %v638
  %v640 = vpop.f32.mrb[0].mxu0
  %v641 = vpop.f32.mrb[0].mxu0
  %v642 = vadd.f32 0.0, %v641
  %v643 = vpop.f32.mrb[0].mxu0
  %644 = vmatprep.mubr.bf16.mxu0 %v311
  %645 = vmatmul.mubr.bf16.gmra.mrb[0].mxu0 %v310
  %v646 = vpop.f32.mrb[0].mxu0
  %v647 = vadd.f32 0.0, %v646
  %v648 = vpop.f32.mrb[0].mxu0
  %v649 = vpop.f32.mrb[0].mxu0
  %v650 = vadd.f32 0.0, %v649
  %v651 = vpop.f32.mrb[0].mxu0
  %652 = vmatprep.mubr.bf16.mxu0 %v314
  %653 = vmatmul.mubr.bf16.gmra.mrb[0].mxu0 %v313
  %v654 = vpop.f32.mrb[0].mxu0
  %v655 = vadd.f32 0.0, %v654
  %v656 = vpop.f32.mrb[0].mxu0
  %v657 = vpop.f32.mrb[0].mxu0
  %v658 = vadd.f32 0.0, %v657
  %v659 = vpop.f32.mrb[0].mxu0
  %660 = vmatprep.mubr.bf16.mxu0 %v317
  %661 = vmatmul.mubr.bf16.gmra.mrb[0].mxu0 %v316
  %v662 = vpop.f32.mrb[0].mxu0
  %v663 = vadd.f32 0.0, %v662
  %v664 = vpop.f32.mrb[0].mxu0
  %v665 = vpop.f32.mrb[0].mxu0
  %v666 = vpop.f32.mrb[0].mxu0
  %667 = vdwg.mxu0
  %668 = vmatprep.subr.bf16.mxu0 0
  %669 = vmatpush1.bf16.msra.mxu0 %v439
  %670 = vmatprep.subr.bf16.mxu0 0
  %671 = vmatpush1.bf16.msra.mxu0 %v440
  %672 = vmatprep.subr.bf16.mxu0 0
  %673 = vmatpush1.bf16.msra.mxu0 0
  %674 = vmatprep.subr.bf16.mxu0 0
  %675 = vmatpush1.bf16.msra.mxu0 0
  %676 = vmatprep.subr.bf16.mxu0 0
  %677 = vmatpush1.bf16.msra.mxu0 0
  %678 = vmatprep.subr.bf16.mxu0 0
  %679 = vmatpush1.bf16.msra.mxu0 0
  %680 = vmatprep.subr.bf16.mxu0 0
  %681 = vmatpush1.bf16.msra.mxu0 0
  %682 = vmatprep.subr.bf16.mxu0 0
  %683 = vmatpush1.bf16.msra.mxu0 0
  %684 = vmatprep.subr.bf16.mxu0 0
  %685 = vmatpush1.bf16.msra.mxu0 0
  %686 = vmatprep.subr.bf16.mxu0 0
  %687 = vmatpush1.bf16.msra.mxu0 0
  %688 = vmatprep.subr.bf16.mxu0 0
  %689 = vmatpush1.bf16.msra.mxu0 0
  %690 = vmatprep.subr.bf16.mxu0 0
  %691 = vmatpush1.bf16.msra.mxu0 0
  %692 = vmatprep.subr.bf16.mxu0 0
  %693 = vmatpush1.bf16.msra.mxu0 0
  %694 = vmatprep.subr.bf16.mxu0 0
  %695 = vmatpush1.bf16.msra.mxu0 0
  %696 = vmatprep.subr.bf16.mxu0 0
  %697 = vmatpush1.bf16.msra.mxu0 0
  %698 = vmatprep.subr.bf16.mxu0 0
  %699 = vmatpush1.bf16.msra.mxu0 0
  %700 = vmatprep.mubr.bf16.mxu0 0
  %701 = vmatmul.mubr.bf16.gmra.mrb[0].mxu0 %v461
  %v702 = vpop.f32.mrb[0].mxu0
  %v703 = vadd.f32 %v543, %v702
  %v704 = vpop.f32.mrb[0].mxu0
  %v705 = vpop.f32.mrb[0].mxu0
  %v706 = vadd.f32 %v546, %v705
  %v707 = vpop.f32.mrb[0].mxu0
  %708 = vmatprep.mubr.bf16.mxu0 0
  %709 = vmatmul.mubr.bf16.gmra.mrb[0].mxu0 %v464
  %v710 = vpop.f32.mrb[0].mxu0
  %v711 = vadd.f32 %v551, %v710
  %v712 = vpop.f32.mrb[0].mxu0
  %v713 = vpop.f32.mrb[0].mxu0
  %v714 = vadd.f32 %v554, %v713
  %v715 = vpop.f32.mrb[0].mxu0
  %716 = vmatprep.mubr.bf16.mxu0 0
  %717 = vmatmul.mubr.bf16.gmra.mrb[0].mxu0 %v467
  %v718 = vpop.f32.mrb[0].mxu0
  %v719 = vadd.f32 %v559, %v718
  %v720 = vpop.f32.mrb[0].mxu0
  %v721 = vpop.f32.mrb[0].mxu0
  %v722 = vadd.f32 %v562, %v721
  %v723 = vpop.f32.mrb[0].mxu0
  %724 = vmatprep.mubr.bf16.mxu0 0
  %725 = vmatmul.mubr.bf16.gmra.mrb[0].mxu0 %v470
  %v726 = vpop.f32.mrb[0].mxu0
  %v727 = vadd.f32 %v567, %v726
  %v728 = vpop.f32.mrb[0].mxu0
  %v729 = vpop.f32.mrb[0].mxu0
  %v730 = vadd.f32 %v570, %v729
  %v731 = vpop.f32.mrb[0].mxu0
  %732 = vmatprep.mubr.bf16.mxu0 0
  %733 = vmatmul.mubr.bf16.gmra.mrb[0].mxu0 %v473
  %v734 = vpop.f32.mrb[0].mxu0
  %v735 = vadd.f32 %v575, %v734
  %v736 = vpop.f32.mrb[0].mxu0
  %v737 = vpop.f32.mrb[0].mxu0
  %v738 = vadd.f32 %v578, %v737
  %v739 = vpop.f32.mrb[0].mxu0
  %740 = vmatprep.mubr.bf16.mxu0 0
  %741 = vmatmul.mubr.bf16.gmra.mrb[0].mxu0 %v476
  %v742 = vpop.f32.mrb[0].mxu0
  %v743 = vadd.f32 %v583, %v742
  %v744 = vpop.f32.mrb[0].mxu0
  %v745 = vpop.f32.mrb[0].mxu0
  %v746 = vadd.f32 %v586, %v745
  %v747 = vpop.f32.mrb[0].mxu0
  %748 = vmatprep.mubr.bf16.mxu0 0
  %749 = vmatmul.mubr.bf16.gmra.mrb[0].mxu0 %v479
  %v750 = vpop.f32.mrb[0].mxu0
  %v751 = vadd.f32 %v591, %v750
  %v752 = vpop.f32.mrb[0].mxu0
  %v753 = vpop.f32.mrb[0].mxu0
  %v754 = vadd.f32 %v594, %v753
  %v755 = vpop.f32.mrb[0].mxu0
  %756 = vmatprep.mubr.bf16.mxu0 0
  %757 = vmatmul.mubr.bf16.gmra.mrb[0].mxu0 %v482
  %v758 = vpop.f32.mrb[0].mxu0
  %v759 = vadd.f32 %v599, %v758
  %v760 = vpop.f32.mrb[0].mxu0
  %v761 = vpop.f32.mrb[0].mxu0
  %v762 = vadd.f32 %v602, %v761
  %v763 = vpop.f32.mrb[0].mxu0
  %764 = vmatprep.mubr.bf16.mxu0 0
  %765 = vmatmul.mubr.bf16.gmra.mrb[0].mxu0 %v485
  %v766 = vpop.f32.mrb[0].mxu0
  %v767 = vadd.f32 %v607, %v766
  %v768 = vpop.f32.mrb[0].mxu0
  %v769 = vpop.f32.mrb[0].mxu0
  %v770 = vadd.f32 %v610, %v769
  %v771 = vpop.f32.mrb[0].mxu0
  %772 = vmatprep.mubr.bf16.mxu0 0
  %773 = vmatmul.mubr.bf16.gmra.mrb[0].mxu0 %v488
  %v774 = vpop.f32.mrb[0].mxu0
  %v775 = vadd.f32 %v615, %v774
  %v776 = vpop.f32.mrb[0].mxu0
  %v777 = vpop.f32.mrb[0].mxu0
  %v778 = vadd.f32 %v618, %v777
  %v779 = vpop.f32.mrb[0].mxu0
  %780 = vmatprep.mubr.bf16.mxu0 0
  %781 = vmatmul.mubr.bf16.gmra.mrb[0].mxu0 %v491
  %v782 = vpop.f32.mrb[0].mxu0
  %v783 = vadd.f32 %v623, %v782
  %v784 = vpop.f32.mrb[0].mxu0
  %v785 = vpop.f32.mrb[0].mxu0
  %v786 = vadd.f32 %v626, %v785
  %v787 = vpop.f32.mrb[0].mxu0
  %788 = vmatprep.mubr.bf16.mxu0 0
  %789 = vmatmul.mubr.bf16.gmra.mrb[0].mxu0 %v494
  %v790 = vpop.f32.mrb[0].mxu0
  %v791 = vadd.f32 %v631, %v790
  %v792 = vpop.f32.mrb[0].mxu0
  %v793 = vpop.f32.mrb[0].mxu0
  %v794 = vadd.f32 %v634, %v793
  %v795 = vpop.f32.mrb[0].mxu0
  %796 = vmatprep.mubr.bf16.mxu0 0
  %797 = vmatmul.mubr.bf16.gmra.mrb[0].mxu0 %v497
  %v798 = vpop.f32.mrb[0].mxu0
  %v799 = vadd.f32 %v639, %v798
  %v800 = vpop.f32.mrb[0].mxu0
  %v801 = vpop.f32.mrb[0].mxu0
  %v802 = vadd.f32 %v642, %v801
  %v803 = vpop.f32.mrb[0].mxu0
  %804 = vmatprep.mubr.bf16.mxu0 0
  %805 = vmatmul.mubr.bf16.gmra.mrb[0].mxu0 %v500
  %v806 = vpop.f32.mrb[0].mxu0
  %v807 = vadd.f32 %v647, %v806
  %v808 = vpop.f32.mrb[0].mxu0
  %v809 = vpop.f32.mrb[0].mxu0
  %v810 = vadd.f32 %v650, %v809
  %v811 = vpop.f32.mrb[0].mxu0
  %812 = vmatprep.mubr.bf16.mxu0 0
  %813 = vmatmul.mubr.bf16.gmra.mrb[0].mxu0 %v503
  %v814 = vpop.f32.mrb[0].mxu0
  %v815 = vadd.f32 %v655, %v814
  %v816 = vpop.f32.mrb[0].mxu0
  %v817 = vpop.f32.mrb[0].mxu0
  %v818 = vadd.f32 %v658, %v817
  %v819 = vpop.f32.mrb[0].mxu0
  %820 = vmatprep.mubr.bf16.mxu0 0
  %821 = vmatmul.mubr.bf16.gmra.mrb[0].mxu0 %v506
  %v822 = vpop.f32.mrb[0].mxu0
  %v823 = vadd.f32 %v663, %v822
  %v824 = vpop.f32.mrb[0].mxu0
  %v825 = vpop.f32.mrb[0].mxu0
  %v826 = vpop.f32.mrb[0].mxu0
  %827 = vdwg.mxu0
  %vm828 = vcmask 523264
  %829 = vst.msk [vmem:[#allocation2] sm:$0xff] %vm828, %v703
  %830 = vst.msk [vmem:[#allocation2 + $0x8] sm:$0xff] %vm828, %v706
  %831 = vst.msk [vmem:[#allocation2 + $0x10] sm:$0xff] %vm828, %v711
  %832 = vst.msk [vmem:[#allocation2 + $0x18] sm:$0xff] %vm828, %v714
  %833 = vst.msk [vmem:[#allocation2 + $0x20] sm:$0xff] %vm828, %v719
  %834 = vst.msk [vmem:[#allocation2 + $0x28] sm:$0xff] %vm828, %v722
  %835 = vst.msk [vmem:[#allocation2 + $0x30] sm:$0xff] %vm828, %v727
  %836 = vst.msk [vmem:[#allocation2 + $0x38] sm:$0xff] %vm828, %v730
  %837 = vst.msk [vmem:[#allocation2 + $0x40] sm:$0xff] %vm828, %v735
  %838 = vst.msk [vmem:[#allocation2 + $0x48] sm:$0xff] %vm828, %v738
  %839 = vst.msk [vmem:[#allocation2 + $0x50] sm:$0xff] %vm828, %v743
  %840 = vst.msk [vmem:[#allocation2 + $0x58] sm:$0xff] %vm828, %v746
  %841 = vst.msk [vmem:[#allocation2 + $0x60] sm:$0xff] %vm828, %v751
  %842 = vst.msk [vmem:[#allocation2 + $0x68] sm:$0xff] %vm828, %v754
  %843 = vst.msk [vmem:[#allocation2 + $0x70] sm:$0xff] %vm828, %v759
  %844 = vst.msk [vmem:[#allocation2 + $0x78] sm:$0xff] %vm828, %v762
  %845 = vst.msk [vmem:[#allocation2 + $0x80] sm:$0xff] %vm828, %v767
  %846 = vst.msk [vmem:[#allocation2 + $0x88] sm:$0xff] %vm828, %v770
  %847 = vst.msk [vmem:[#allocation2 + $0x90] sm:$0xff] %vm828, %v775
  %848 = vst.msk [vmem:[#allocation2 + $0x98] sm:$0xff] %vm828, %v778
  %849 = vst.msk [vmem:[#allocation2 + $0xa0] sm:$0xff] %vm828, %v783
  %850 = vst.msk [vmem:[#allocation2 + $0xa8] sm:$0xff] %vm828, %v786
  %851 = vst.msk [vmem:[#allocation2 + $0xb0] sm:$0xff] %vm828, %v791
  %852 = vst.msk [vmem:[#allocation2 + $0xb8] sm:$0xff] %vm828, %v794
  %853 = vst.msk [vmem:[#allocation2 + $0xc0] sm:$0xff] %vm828, %v799
  %854 = vst.msk [vmem:[#allocation2 + $0xc8] sm:$0xff] %vm828, %v802
  %855 = vst.msk [vmem:[#allocation2 + $0xd0] sm:$0xff] %vm828, %v807
  %856 = vst.msk [vmem:[#allocation2 + $0xd8] sm:$0xff] %vm828, %v810
  %857 = vst.msk [vmem:[#allocation2 + $0xe0] sm:$0xff] %vm828, %v815
  %858 = vst.msk [vmem:[#allocation2 + $0xe8] sm:$0xff] %vm828, %v818
  %vm859 = vcmask 517120
  %860 = vst.msk [vmem:[#allocation2 + $0xf0] sm:$0x3] %vm859, %v823
  %p861 = scmp.eq.s32.totalorder 0, 0
  // Predicated region
  $region18: #{discriminator_forward.8} parent=0 // pred_check
    %p862 = pneg %p861
  $region19: #{discriminator_forward.8} parent=0 // pred_check_branch
    %864 = sbr.rel (%p862) target = $region21
  $region20: #{discriminator_forward.8} parent=0 // pred_region
    %v865 = vld [vmem:[#allocation2] sm:$0xff]
    %v866 = vld [vmem:[#allocation2 + $0x8] sm:$0xff]
    %v867 = vld [vmem:[#allocation2 + $0x10] sm:$0xff]
    %v868 = vld [vmem:[#allocation2 + $0x18] sm:$0xff]
    %v869 = vld [vmem:[#allocation2 + $0x20] sm:$0xff]
    %v870 = vld [vmem:[#allocation2 + $0x28] sm:$0xff]
    %v871 = vld [vmem:[#allocation2 + $0x30] sm:$0xff]
    %v872 = vld [vmem:[#allocation2 + $0x38] sm:$0xff]
    %v873 = vld [vmem:[#allocation2 + $0x40] sm:$0xff]
    %v874 = vld [vmem:[#allocation2 + $0x48] sm:$0xff]
    %v875 = vld [vmem:[#allocation2 + $0x50] sm:$0xff]
    %v876 = vld [vmem:[#allocation2 + $0x58] sm:$0xff]
    %v877 = vld [vmem:[#allocation2 + $0x60] sm:$0xff]
    %v878 = vld [vmem:[#allocation2 + $0x68] sm:$0xff]
    %v879 = vld [vmem:[#allocation2 + $0x70] sm:$0xff]
    %v880 = vld [vmem:[#allocation2 + $0x78] sm:$0xff]
    %v881 = vld [vmem:[#allocation2 + $0x80] sm:$0xff]
    %v882 = vld [vmem:[#allocation2 + $0x88] sm:$0xff]
    %v883 = vld [vmem:[#allocation2 + $0x90] sm:$0xff]
    %v884 = vld [vmem:[#allocation2 + $0x98] sm:$0xff]
    %v885 = vld [vmem:[#allocation2 + $0xa0] sm:$0xff]
    %v886 = vld [vmem:[#allocation2 + $0xa8] sm:$0xff]
    %v887 = vld [vmem:[#allocation2 + $0xb0] sm:$0xff]
    %v888 = vld [vmem:[#allocation2 + $0xb8] sm:$0xff]
    %v889 = vld [vmem:[#allocation2 + $0xc0] sm:$0xff]
    %v890 = vld [vmem:[#allocation2 + $0xc8] sm:$0xff]
    %v891 = vld [vmem:[#allocation2 + $0xd0] sm:$0xff]
    %v892 = vld [vmem:[#allocation2 + $0xd8] sm:$0xff]
    %v893 = vld [vmem:[#allocation2 + $0xe0] sm:$0xff]
    %v894 = vld [vmem:[#allocation2 + $0xe8] sm:$0xff]
    %v895 = vld [vmem:[#allocation2 + $0xf0] sm:$0x3]
    %v896 = vsel %vm828, %v865, 0.0
    %v897 = vsel %vm828, %v866, 0.0
    %v898 = vadd.f32 %v896, %v897
    %v899 = vsel %vm828, %v867, 0.0
    %v900 = vadd.f32 %v898, %v899
    %v901 = vsel %vm828, %v868, 0.0
    %v902 = vadd.f32 %v900, %v901
    %v903 = vsel %vm828, %v869, 0.0
    %v904 = vadd.f32 %v902, %v903
    %v905 = vsel %vm828, %v870, 0.0
    %v906 = vadd.f32 %v904, %v905
    %v907 = vsel %vm828, %v871, 0.0
    %v908 = vadd.f32 %v906, %v907
    %v909 = vsel %vm828, %v872, 0.0
    %v910 = vadd.f32 %v908, %v909
    %v911 = vsel %vm828, %v873, 0.0
    %v912 = vadd.f32 %v910, %v911
    %v913 = vsel %vm828, %v874, 0.0
    %v914 = vadd.f32 %v912, %v913
    %v915 = vsel %vm828, %v875, 0.0
    %v916 = vadd.f32 %v914, %v915
    %v917 = vsel %vm828, %v876, 0.0
    %v918 = vadd.f32 %v916, %v917
    %v919 = vsel %vm828, %v877, 0.0
    %v920 = vadd.f32 %v918, %v919
    %v921 = vsel %vm828, %v878, 0.0
    %v922 = vadd.f32 %v920, %v921
    %v923 = vsel %vm828, %v879, 0.0
    %v924 = vadd.f32 %v922, %v923
    %v925 = vsel %vm828, %v880, 0.0
    %v926 = vadd.f32 %v924, %v925
    %v927 = vsel %vm828, %v881, 0.0
    %v928 = vadd.f32 %v926, %v927
    %v929 = vsel %vm828, %v882, 0.0
    %v930 = vadd.f32 %v928, %v929
    %v931 = vsel %vm828, %v883, 0.0
    %v932 = vadd.f32 %v930, %v931
    %v933 = vsel %vm828, %v884, 0.0
    %v934 = vadd.f32 %v932, %v933
    %v935 = vsel %vm828, %v885, 0.0
    %v936 = vadd.f32 %v934, %v935
    %v937 = vsel %vm828, %v886, 0.0
    %v938 = vadd.f32 %v936, %v937
    %v939 = vsel %vm828, %v887, 0.0
    %v940 = vadd.f32 %v938, %v939
    %v941 = vsel %vm828, %v888, 0.0
    %v942 = vadd.f32 %v940, %v941
    %v943 = vsel %vm828, %v889, 0.0
    %v944 = vadd.f32 %v942, %v943
    %v945 = vsel %vm828, %v890, 0.0
    %v946 = vadd.f32 %v944, %v945
    %v947 = vsel %vm828, %v891, 0.0
    %v948 = vadd.f32 %v946, %v947
    %v949 = vsel %vm828, %v892, 0.0
    %v950 = vadd.f32 %v948, %v949
    %v951 = vsel %vm828, %v893, 0.0
    %v952 = vadd.f32 %v950, %v951
    %v953 = vsel %vm828, %v894, 0.0
    %v954 = vadd.f32 %v952, %v953
    %v955 = vsel %vm859, %v895, 0.0
    %v956 = vadd.f32 %v954, %v955
    %v957 = vrot.slane %v956, 4
    %v958 = vadd.f32 %v956, %v957
    %v959 = vrot.slane %v958, 2
    %v960 = vadd.f32 %v958, %v959
    %v961 = vrot.slane %v960, 1
    %v962 = vadd.f32 %v960, %v961
    %v963 = vmul.f32 %v962, 0.004132231
    %v964 = vsub.f32 %v865, %v963
    %v965 = vsub.f32 %v866, %v963
    %v966 = vsub.f32 %v867, %v963
    %v967 = vsub.f32 %v868, %v963
    %v968 = vsub.f32 %v869, %v963
    %v969 = vsub.f32 %v870, %v963
    %v970 = vsub.f32 %v871, %v963
    %v971 = vsub.f32 %v872, %v963
    %v972 = vsub.f32 %v873, %v963
    %v973 = vsub.f32 %v874, %v963
    %v974 = vsub.f32 %v875, %v963
    %v975 = vsub.f32 %v876, %v963
    %v976 = vsub.f32 %v877, %v963
    %v977 = vsub.f32 %v878, %v963
    %v978 = vsub.f32 %v879, %v963
    %v979 = vsub.f32 %v880, %v963
    %v980 = vsub.f32 %v881, %v963
    %v981 = vsub.f32 %v882, %v963
    %v982 = vsub.f32 %v883, %v963
    %v983 = vsub.f32 %v884, %v963
    %v984 = vsub.f32 %v885, %v963
    %v985 = vsub.f32 %v886, %v963
    %v986 = vsub.f32 %v887, %v963
    %v987 = vsub.f32 %v888, %v963
    %v988 = vsub.f32 %v889, %v963
    %v989 = vsub.f32 %v890, %v963
    %v990 = vsub.f32 %v891, %v963
    %v991 = vsub.f32 %v892, %v963
    %v992 = vsub.f32 %v893, %v963
    %v993 = vsub.f32 %v894, %v963
    %v994 = vsub.f32 %v895, %v963
    %v995 = vmul.f32 %v964, %v964
    %v996 = vmul.f32 %v965, %v965
    %v997 = vmul.f32 %v966, %v966
    %v998 = vmul.f32 %v967, %v967
    %v999 = vmul.f32 %v968, %v968
    %v1000 = vmul.f32 %v969, %v969
    %v1001 = vmul.f32 %v970, %v970
    %v1002 = vmul.f32 %v971, %v971
    %v1003 = vmul.f32 %v972, %v972
    %v1004 = vmul.f32 %v973, %v973
    %v1005 = vmul.f32 %v974, %v974
    %v1006 = vmul.f32 %v975, %v975
    %v1007 = vmul.f32 %v976, %v976
    %v1008 = vmul.f32 %v977, %v977
    %v1009 = vmul.f32 %v978, %v978
    %v1010 = vmul.f32 %v979, %v979
    %v1011 = vmul.f32 %v980, %v980
    %v1012 = vmul.f32 %v981, %v981
    %v1013 = vmul.f32 %v982, %v982
    %v1014 = vmul.f32 %v983, %v983
    %v1015 = vmul.f32 %v984, %v984
    %v1016 = vmul.f32 %v985, %v985
    %v1017 = vmul.f32 %v986, %v986
    %v1018 = vmul.f32 %v987, %v987
    %v1019 = vmul.f32 %v988, %v988
    %v1020 = vmul.f32 %v989, %v989
    %v1021 = vmul.f32 %v990, %v990
    %v1022 = vmul.f32 %v991, %v991
    %v1023 = vmul.f32 %v992, %v992
    %v1024 = vmul.f32 %v993, %v993
    %v1025 = vmul.f32 %v994, %v994
    %v1026 = vsel %vm828, %v995, 0.0
    %v1027 = vsel %vm828, %v996, 0.0
    %v1028 = vadd.f32 %v1026, %v1027
    %v1029 = vsel %vm828, %v997, 0.0
    %v1030 = vadd.f32 %v1028, %v1029
    %v1031 = vsel %vm828, %v998, 0.0
    %v1032 = vadd.f32 %v1030, %v1031
    %v1033 = vsel %vm828, %v999, 0.0
    %v1034 = vadd.f32 %v1032, %v1033
    %v1035 = vsel %vm828, %v1000, 0.0
    %v1036 = vadd.f32 %v1034, %v1035
    %v1037 = vsel %vm828, %v1001, 0.0
    %v1038 = vadd.f32 %v1036, %v1037
    %v1039 = vsel %vm828, %v1002, 0.0
    %v1040 = vadd.f32 %v1038, %v1039
    %v1041 = vsel %vm828, %v1003, 0.0
    %v1042 = vadd.f32 %v1040, %v1041
    %v1043 = vsel %vm828, %v1004, 0.0
    %v1044 = vadd.f32 %v1042, %v1043
    %v1045 = vsel %vm828, %v1005, 0.0
    %v1046 = vadd.f32 %v1044, %v1045
    %v1047 = vsel %vm828, %v1006, 0.0
    %v1048 = vadd.f32 %v1046, %v1047
    %v1049 = vsel %vm828, %v1007, 0.0
    %v1050 = vadd.f32 %v1048, %v1049
    %v1051 = vsel %vm828, %v1008, 0.0
    %v1052 = vadd.f32 %v1050, %v1051
    %v1053 = vsel %vm828, %v1009, 0.0
    %v1054 = vadd.f32 %v1052, %v1053
    %v1055 = vsel %vm828, %v1010, 0.0
    %v1056 = vadd.f32 %v1054, %v1055
    %v1057 = vsel %vm828, %v1011, 0.0
    %v1058 = vadd.f32 %v1056, %v1057
    %v1059 = vsel %vm828, %v1012, 0.0
    %v1060 = vadd.f32 %v1058, %v1059
    %v1061 = vsel %vm828, %v1013, 0.0
    %v1062 = vadd.f32 %v1060, %v1061
    %v1063 = vsel %vm828, %v1014, 0.0
    %v1064 = vadd.f32 %v1062, %v1063
    %v1065 = vsel %vm828, %v1015, 0.0
    %v1066 = vadd.f32 %v1064, %v1065
    %v1067 = vsel %vm828, %v1016, 0.0
    %v1068 = vadd.f32 %v1066, %v1067
    %v1069 = vsel %vm828, %v1017, 0.0
    %v1070 = vadd.f32 %v1068, %v1069
    %v1071 = vsel %vm828, %v1018, 0.0
    %v1072 = vadd.f32 %v1070, %v1071
    %v1073 = vsel %vm828, %v1019, 0.0
    %v1074 = vadd.f32 %v1072, %v1073
    %v1075 = vsel %vm828, %v1020, 0.0
    %v1076 = vadd.f32 %v1074, %v1075
    %v1077 = vsel %vm828, %v1021, 0.0
    %v1078 = vadd.f32 %v1076, %v1077
    %v1079 = vsel %vm828, %v1022, 0.0
    %v1080 = vadd.f32 %v1078, %v1079
    %v1081 = vsel %vm828, %v1023, 0.0
    %v1082 = vadd.f32 %v1080, %v1081
    %v1083 = vsel %vm828, %v1024, 0.0
    %v1084 = vadd.f32 %v1082, %v1083
    %v1085 = vsel %vm859, %v1025, 0.0
    %v1086 = vadd.f32 %v1084, %v1085
    %v1087 = vrot.slane %v1086, 4
    %v1088 = vadd.f32 %v1086, %v1087
    %v1089 = vrot.slane %v1088, 2
    %v1090 = vadd.f32 %v1088, %v1089
    %v1091 = vrot.slane %v1090, 1
    %v1092 = vadd.f32 %v1090, %v1091
    %v1093 = vmul.f32 %v1092, 0.004132231
    %v1094 = vld [vmem:[%s2] sm:$0x1]
    %v1095 = vadd.f32 %v1093, 1e-05
    %v1096 = vrsqrt.pop %v1095
    %v1097 = vmul.f32 %v1094, %v1096
    %v1098 = vld [vmem:[%s3] sm:$0x1]
    %v1099 = vmul.f32 %v963, %v1097
    %v1100 = vsub.f32 %v1098, %v1099
    %v1102 = vlaneseq
    %v1103 = vshrl.u32 %v1102, 7
    %v1104 = vsub.s32 0, %v1103
    %v1105 = vrot.slane %v1097, %v1104
    %v1107 = vmul.f32 %v865, %v1105
    %v1108 = vmul.f32 %v866, %v1105
    %v1109 = vmul.f32 %v867, %v1105
    %v1110 = vmul.f32 %v868, %v1105
    %v1111 = vmul.f32 %v869, %v1105
    %v1112 = vmul.f32 %v870, %v1105
    %v1113 = vmul.f32 %v871, %v1105
    %v1114 = vmul.f32 %v872, %v1105
    %v1115 = vmul.f32 %v873, %v1105
    %v1116 = vmul.f32 %v874, %v1105
    %v1117 = vmul.f32 %v875, %v1105
    %v1118 = vmul.f32 %v876, %v1105
    %v1119 = vmul.f32 %v877, %v1105
    %v1120 = vmul.f32 %v878, %v1105
    %v1121 = vmul.f32 %v879, %v1105
    %v1122 = vmul.f32 %v880, %v1105
    %v1123 = vmul.f32 %v881, %v1105
    %v1124 = vmul.f32 %v882, %v1105
    %v1125 = vmul.f32 %v883, %v1105
    %v1126 = vmul.f32 %v884, %v1105
    %v1127 = vmul.f32 %v885, %v1105
    %v1128 = vmul.f32 %v886, %v1105
    %v1129 = vmul.f32 %v887, %v1105
    %v1130 = vmul.f32 %v888, %v1105
    %v1131 = vmul.f32 %v889, %v1105
    %v1132 = vmul.f32 %v890, %v1105
    %v1133 = vmul.f32 %v891, %v1105
    %v1134 = vmul.f32 %v892, %v1105
    %v1135 = vmul.f32 %v893, %v1105
    %v1136 = vmul.f32 %v894, %v1105
    %v1137 = vmul.f32 %v895, %v1105
    %v1139 = vlaneseq
    %v1140 = vshrl.u32 %v1139, 7
    %v1141 = vsub.s32 0, %v1140
    %v1142 = vrot.slane %v1100, %v1141
    %v1144 = vadd.f32 %v1107, %v1142
    %v1145 = vadd.f32 %v1108, %v1142
    %v1146 = vadd.f32 %v1109, %v1142
    %v1147 = vadd.f32 %v1110, %v1142
    %v1148 = vadd.f32 %v1111, %v1142
    %v1149 = vadd.f32 %v1112, %v1142
    %v1150 = vadd.f32 %v1113, %v1142
    %v1151 = vadd.f32 %v1114, %v1142
    %v1152 = vadd.f32 %v1115, %v1142
    %v1153 = vadd.f32 %v1116, %v1142
    %v1154 = vadd.f32 %v1117, %v1142
    %v1155 = vadd.f32 %v1118, %v1142
    %v1156 = vadd.f32 %v1119, %v1142
    %v1157 = vadd.f32 %v1120, %v1142
    %v1158 = vadd.f32 %v1121, %v1142
    %v1159 = vadd.f32 %v1122, %v1142
    %v1160 = vadd.f32 %v1123, %v1142
    %v1161 = vadd.f32 %v1124, %v1142
    %v1162 = vadd.f32 %v1125, %v1142
    %v1163 = vadd.f32 %v1126, %v1142
    %v1164 = vadd.f32 %v1127, %v1142
    %v1165 = vadd.f32 %v1128, %v1142
    %v1166 = vadd.f32 %v1129, %v1142
    %v1167 = vadd.f32 %v1130, %v1142
    %v1168 = vadd.f32 %v1131, %v1142
    %v1169 = vadd.f32 %v1132, %v1142
    %v1170 = vadd.f32 %v1133, %v1142
    %v1171 = vadd.f32 %v1134, %v1142
    %v1172 = vadd.f32 %v1135, %v1142
    %v1173 = vadd.f32 %v1136, %v1142
    %v1174 = vadd.f32 %v1137, %v1142
    %vm1175 = vcmp.ge.f32.partialorder %v1144, 0.0
    %vm1176 = vcmp.ge.f32.partialorder %v1145, 0.0
    %vm1177 = vcmp.ge.f32.partialorder %v1146, 0.0
    %vm1178 = vcmp.ge.f32.partialorder %v1147, 0.0
    %vm1179 = vcmp.ge.f32.partialorder %v1148, 0.0
    %vm1180 = vcmp.ge.f32.partialorder %v1149, 0.0
    %vm1181 = vcmp.ge.f32.partialorder %v1150, 0.0
    %vm1182 = vcmp.ge.f32.partialorder %v1151, 0.0
    %vm1183 = vcmp.ge.f32.partialorder %v1152, 0.0
    %vm1184 = vcmp.ge.f32.partialorder %v1153, 0.0
    %vm1185 = vcmp.ge.f32.partialorder %v1154, 0.0
    %vm1186 = vcmp.ge.f32.partialorder %v1155, 0.0
    %vm1187 = vcmp.ge.f32.partialorder %v1156, 0.0
    %vm1188 = vcmp.ge.f32.partialorder %v1157, 0.0
    %vm1189 = vcmp.ge.f32.partialorder %v1158, 0.0
    %vm1190 = vcmp.ge.f32.partialorder %v1159, 0.0
    %vm1191 = vcmp.ge.f32.partialorder %v1160, 0.0
    %vm1192 = vcmp.ge.f32.partialorder %v1161, 0.0
    %vm1193 = vcmp.ge.f32.partialorder %v1162, 0.0
    %vm1194 = vcmp.ge.f32.partialorder %v1163, 0.0
    %vm1195 = vcmp.ge.f32.partialorder %v1164, 0.0
    %vm1196 = vcmp.ge.f32.partialorder %v1165, 0.0
    %vm1197 = vcmp.ge.f32.partialorder %v1166, 0.0
    %vm1198 = vcmp.ge.f32.partialorder %v1167, 0.0
    %vm1199 = vcmp.ge.f32.partialorder %v1168, 0.0
    %vm1200 = vcmp.ge.f32.partialorder %v1169, 0.0
    %vm1201 = vcmp.ge.f32.partialorder %v1170, 0.0
    %vm1202 = vcmp.ge.f32.partialorder %v1171, 0.0
    %vm1203 = vcmp.ge.f32.partialorder %v1172, 0.0
    %vm1204 = vcmp.ge.f32.partialorder %v1173, 0.0
    %vm1205 = vcmp.ge.f32.partialorder %v1174, 0.0
    %v1206 = vmul.f32 %v1144, 0.2
    %v1207 = vmul.f32 %v1145, 0.2
    %v1208 = vmul.f32 %v1146, 0.2
    %v1209 = vmul.f32 %v1147, 0.2
    %v1210 = vmul.f32 %v1148, 0.2
    %v1211 = vmul.f32 %v1149, 0.2
    %v1212 = vmul.f32 %v1150, 0.2
    %v1213 = vmul.f32 %v1151, 0.2
    %v1214 = vmul.f32 %v1152, 0.2
    %v1215 = vmul.f32 %v1153, 0.2
    %v1216 = vmul.f32 %v1154, 0.2
    %v1217 = vmul.f32 %v1155, 0.2
    %v1218 = vmul.f32 %v1156, 0.2
    %v1219 = vmul.f32 %v1157, 0.2
    %v1220 = vmul.f32 %v1158, 0.2
    %v1221 = vmul.f32 %v1159, 0.2
    %v1222 = vmul.f32 %v1160, 0.2
    %v1223 = vmul.f32 %v1161, 0.2
    %v1224 = vmul.f32 %v1162, 0.2
    %v1225 = vmul.f32 %v1163, 0.2
    %v1226 = vmul.f32 %v1164, 0.2
    %v1227 = vmul.f32 %v1165, 0.2
    %v1228 = vmul.f32 %v1166, 0.2
    %v1229 = vmul.f32 %v1167, 0.2
    %v1230 = vmul.f32 %v1168, 0.2
    %v1231 = vmul.f32 %v1169, 0.2
    %v1232 = vmul.f32 %v1170, 0.2
    %v1233 = vmul.f32 %v1171, 0.2
    %v1234 = vmul.f32 %v1172, 0.2
    %v1235 = vmul.f32 %v1173, 0.2
    %v1236 = vmul.f32 %v1174, 0.2
    %v1237 = vsel %vm1175, %v1144, %v1206
    %v1238 = vsel %vm1176, %v1145, %v1207
    %v1239 = vsel %vm1177, %v1146, %v1208
    %v1240 = vsel %vm1178, %v1147, %v1209
    %v1241 = vsel %vm1179, %v1148, %v1210
    %v1242 = vsel %vm1180, %v1149, %v1211
    %v1243 = vsel %vm1181, %v1150, %v1212
    %v1244 = vsel %vm1182, %v1151, %v1213
    %v1245 = vsel %vm1183, %v1152, %v1214
    %v1246 = vsel %vm1184, %v1153, %v1215
    %v1247 = vsel %vm1185, %v1154, %v1216
    %v1248 = vsel %vm1186, %v1155, %v1217
    %v1249 = vsel %vm1187, %v1156, %v1218
    %v1250 = vsel %vm1188, %v1157, %v1219
    %v1251 = vsel %vm1189, %v1158, %v1220
    %v1252 = vsel %vm1190, %v1159, %v1221
    %v1253 = vsel %vm1191, %v1160, %v1222
    %v1254 = vsel %vm1192, %v1161, %v1223
    %v1255 = vsel %vm1193, %v1162, %v1224
    %v1256 = vsel %vm1194, %v1163, %v1225
    %v1257 = vsel %vm1195, %v1164, %v1226
    %v1258 = vsel %vm1196, %v1165, %v1227
    %v1259 = vsel %vm1197, %v1166, %v1228
    %v1260 = vsel %vm1198, %v1167, %v1229
    %v1261 = vsel %vm1199, %v1168, %v1230
    %v1262 = vsel %vm1200, %v1169, %v1231
    %v1263 = vsel %vm1201, %v1170, %v1232
    %v1264 = vsel %vm1202, %v1171, %v1233
    %v1265 = vsel %vm1203, %v1172, %v1234
    %v1266 = vsel %vm1204, %v1173, %v1235
    %v1267 = vsel %vm1205, %v1174, %v1236
    %v1268 = vpack.c.bf16 %v1238, %v1237
    %v1269 = vpack.c.bf16 %v1240, %v1239
    %v1270 = vpack.c.bf16 %v1242, %v1241
    %v1271 = vpack.c.bf16 %v1244, %v1243
    %v1272 = vpack.c.bf16 %v1246, %v1245
    %v1273 = vpack.c.bf16 %v1248, %v1247
    %v1274 = vpack.c.bf16 %v1250, %v1249
    %v1275 = vpack.c.bf16 %v1252, %v1251
    %v1276 = vpack.c.bf16 %v1254, %v1253
    %v1277 = vpack.c.bf16 %v1256, %v1255
    %v1278 = vpack.c.bf16 %v1258, %v1257
    %v1279 = vpack.c.bf16 %v1260, %v1259
    %v1280 = vpack.c.bf16 %v1262, %v1261
    %v1281 = vpack.c.bf16 %v1264, %v1263
    %v1282 = vpack.c.bf16 %v1266, %v1265
    %v1283 = vpack.c.bf16 %v1267, %v1267
    %v1300 = vunpack.c.l.b16 %v1268
    %v1301 = vunpack.c.h.b16 %v1268
    %v1302 = vunpack.c.l.b16 %v1269
    %v1303 = vunpack.c.h.b16 %v1269
    %v1304 = vunpack.c.l.b16 %v1270
    %v1305 = vunpack.c.h.b16 %v1270
    %v1306 = vunpack.c.l.b16 %v1271
    %v1307 = vunpack.c.h.b16 %v1271
    %v1308 = vunpack.c.l.b16 %v1272
    %v1309 = vunpack.c.h.b16 %v1272
    %v1310 = vunpack.c.l.b16 %v1273
    %v1311 = vunpack.c.h.b16 %v1273
    %v1312 = vunpack.c.l.b16 %v1274
    %v1313 = vunpack.c.h.b16 %v1274
    %v1314 = vunpack.c.l.b16 %v1275
    %v1315 = vunpack.c.h.b16 %v1275
    %v1316 = vunpack.c.l.b16 %v1276
    %v1317 = vunpack.c.h.b16 %v1276
    %v1318 = vunpack.c.l.b16 %v1277
    %v1319 = vunpack.c.h.b16 %v1277
    %v1320 = vunpack.c.l.b16 %v1278
    %v1321 = vunpack.c.h.b16 %v1278
    %v1322 = vunpack.c.l.b16 %v1279
    %v1323 = vunpack.c.h.b16 %v1279
    %v1324 = vunpack.c.l.b16 %v1280
    %v1325 = vunpack.c.h.b16 %v1280
    %v1326 = vunpack.c.l.b16 %v1281
    %v1327 = vunpack.c.h.b16 %v1281
    %v1328 = vunpack.c.l.b16 %v1282
    %v1329 = vunpack.c.h.b16 %v1282
    %v1330 = vunpack.c.l.b16 %v1283
    %v1331 = vpack.c.b16 %v1300, %v1300
    %v1332 = vpack.c.b16 %v1301, %v1301
    %v1333 = vpack.c.b16 %v1302, %v1302
    %v1334 = vpack.c.b16 %v1303, %v1303
    %v1335 = vpack.c.b16 %v1304, %v1304
    %v1336 = vpack.c.b16 %v1305, %v1305
    %v1337 = vpack.c.b16 %v1306, %v1306
    %v1338 = vpack.c.b16 %v1307, %v1307
    %v1339 = vpack.c.b16 %v1308, %v1308
    %v1340 = vpack.c.b16 %v1309, %v1309
    %v1341 = vpack.c.b16 %v1310, %v1310
    %v1342 = vpack.c.b16 %v1311, %v1311
    %v1343 = vpack.c.b16 %v1312, %v1312
    %v1344 = vpack.c.b16 %v1313, %v1313
    %v1345 = vpack.c.b16 %v1314, %v1314
    %v1346 = vpack.c.b16 %v1315, %v1315
    %v1347 = vpack.c.b16 %v1316, %v1316
    %v1348 = vpack.c.b16 %v1317, %v1317
    %v1349 = vpack.c.b16 %v1318, %v1318
    %v1350 = vpack.c.b16 %v1319, %v1319
    %v1351 = vpack.c.b16 %v1320, %v1320
    %v1352 = vpack.c.b16 %v1321, %v1321
    %v1353 = vpack.c.b16 %v1322, %v1322
    %v1354 = vpack.c.b16 %v1323, %v1323
    %v1355 = vpack.c.b16 %v1324, %v1324
    %v1356 = vpack.c.b16 %v1325, %v1325
    %v1357 = vpack.c.b16 %v1326, %v1326
    %v1358 = vpack.c.b16 %v1327, %v1327
    %v1359 = vpack.c.b16 %v1328, %v1328
    %v1360 = vpack.c.b16 %v1329, %v1329
    %v1361 = vpack.c.b16 %v1330, %v1330
    %vm1393 = vcmask 519168
    %1394 = vst.msk [vmem:[%s4] sm:$0xf] %vm1393, %v1331
    %1395 = vst.msk [vmem:[%s4 + $0x4] sm:$0xf] %vm1393, %v1332
    %1396 = vst.msk [vmem:[%s4 + $0x8] sm:$0xf] %vm1393, %v1333
    %1397 = vst.msk [vmem:[%s4 + $0xc] sm:$0xf] %vm1393, %v1334
    %1398 = vst.msk [vmem:[%s4 + $0x10] sm:$0xf] %vm1393, %v1335
    %1399 = vst.msk [vmem:[%s4 + $0x14] sm:$0xf] %vm1393, %v1336
    %1400 = vst.msk [vmem:[%s4 + $0x18] sm:$0xf] %vm1393, %v1337
    %1401 = vst.msk [vmem:[%s4 + $0x1c] sm:$0xf] %vm1393, %v1338
    %1402 = vst.msk [vmem:[%s4 + $0x20] sm:$0xf] %vm1393, %v1339
    %1403 = vst.msk [vmem:[%s4 + $0x24] sm:$0xf] %vm1393, %v1340
    %1404 = vst.msk [vmem:[%s4 + $0x28] sm:$0xf] %vm1393, %v1341
    %1405 = vst.msk [vmem:[%s4 + $0x2c] sm:$0xf] %vm1393, %v1342
    %1406 = vst.msk [vmem:[%s4 + $0x30] sm:$0xf] %vm1393, %v1343
    %1407 = vst.msk [vmem:[%s4 + $0x34] sm:$0xf] %vm1393, %v1344
    %1408 = vst.msk [vmem:[%s4 + $0x38] sm:$0xf] %vm1393, %v1345
    %1409 = vst.msk [vmem:[%s4 + $0x3c] sm:$0xf] %vm1393, %v1346
    %1410 = vst.msk [vmem:[%s4 + $0x40] sm:$0xf] %vm1393, %v1347
    %1411 = vst.msk [vmem:[%s4 + $0x44] sm:$0xf] %vm1393, %v1348
    %1412 = vst.msk [vmem:[%s4 + $0x48] sm:$0xf] %vm1393, %v1349
    %1413 = vst.msk [vmem:[%s4 + $0x4c] sm:$0xf] %vm1393, %v1350
    %1414 = vst.msk [vmem:[%s4 + $0x50] sm:$0xf] %vm1393, %v1351
    %1415 = vst.msk [vmem:[%s4 + $0x54] sm:$0xf] %vm1393, %v1352
    %1416 = vst.msk [vmem:[%s4 + $0x58] sm:$0xf] %vm1393, %v1353
    %1417 = vst.msk [vmem:[%s4 + $0x5c] sm:$0xf] %vm1393, %v1354
    %1418 = vst.msk [vmem:[%s4 + $0x60] sm:$0xf] %vm1393, %v1355
    %1419 = vst.msk [vmem:[%s4 + $0x64] sm:$0xf] %vm1393, %v1356
    %1420 = vst.msk [vmem:[%s4 + $0x68] sm:$0xf] %vm1393, %v1357
    %1421 = vst.msk [vmem:[%s4 + $0x6c] sm:$0xf] %vm1393, %v1358
    %1422 = vst.msk [vmem:[%s4 + $0x70] sm:$0xf] %vm1393, %v1359
    %1423 = vst.msk [vmem:[%s4 + $0x74] sm:$0xf] %vm1393, %v1360
    %vm1424 = vcmask 516096
    %1425 = vst.msk [vmem:[%s4 + $0x78] sm:$0x1] %vm1424, %v1361
  $region21: #{discriminator_forward.8} parent=0 // pred_fallthru
    _
  // Predicated region
  $region22: #{discriminator_forward.8} parent=0 // pred_check
    _
  $region23: #{discriminator_forward.8} parent=0 // pred_check_branch
    %1427 = sbr.rel (0) target = $region25
  $region24: #{discriminator_forward.8} parent=0 // pred_region
    _
  $region25: #{discriminator_forward.8} parent=0 // pred_fallthru
    _
  // Predicated region
  $region26: #{discriminator_forward.8} parent=0 // pred_check
    _
  $region27: #{discriminator_forward.8} parent=0 // pred_check_branch
    %1429 = sbr.rel (0) target = $region29
  $region28: #{discriminator_forward.8} parent=0 // pred_region
    _
  $region29: #{discriminator_forward.8} parent=0 // pred_fallthru
    _

// kernel: discriminator_forward.9
$region0: #{discriminator_forward.9}
  #allocation0 [shape = 'u32[]', space=smem, size = 0x4, offset = 0x4, fixed_abs, tag = 'smem constant byte address 0x4 - core index']
  #allocation1 [shape = 'u32[144,128]{1,0:T(1,128)}', space=vmem, size = 0x12000, scoped, tag = 'internal scratch']
  %s0 = inlined_call_operand.vmem [shape: bf16[32,1024], index: 0, kind: input, shape index: {}]
  %s1 = inlined_call_operand.vmem [shape: bf16[1024,64], index: 1, kind: input, shape index: {}]
  %s2 = inlined_call_operand.vmem [shape: f32[1,64], index: 2, kind: input, shape index: {}]
  %s3 = inlined_call_operand.vmem [shape: bf16[32,64], index: 3, kind: output, shape index: {}]
  %s4 = sld [smem:[#allocation0]]
  $region22: #{discriminator_forward.9} parent=0
    _
  %s6 = ssub.s32 1, %s4
  %s7 = scalar_select 0, %s6, %s4
  // Predicated region
  $region2: #{discriminator_forward.9} parent=0 // pred_check
    _
  $region3: #{discriminator_forward.9} parent=0 // pred_check_branch
    %9 = sbr.rel (0) target = $region5
  $region4: #{discriminator_forward.9} parent=0 // pred_region
    _
  $region5: #{discriminator_forward.9} parent=0 // pred_fallthru
    _
  // Predicated region
  $region6: #{discriminator_forward.9} parent=0 // pred_check
    _
  $region7: #{discriminator_forward.9} parent=0 // pred_check_branch
    %11 = sbr.rel (0) target = $region9
  $region8: #{discriminator_forward.9} parent=0 // pred_region
    _
  $region9: #{discriminator_forward.9} parent=0 // pred_fallthru
    _
  // Predicated region
  $region10: #{discriminator_forward.9} parent=0 // pred_check
    _
  $region11: #{discriminator_forward.9} parent=0 // pred_check_branch
    %13 = sbr.rel (0) target = $region13
  $region12: #{discriminator_forward.9} parent=0 // pred_region
    _
  $region13: #{discriminator_forward.9} parent=0 // pred_fallthru
    _
  %v15 = vld [vmem:[%s0] sm:$0xff]
  %v16 = vld [vmem:[%s0 + $0x8] sm:$0xff]
  %v17 = vld [vmem:[%s0 + $0x10] sm:$0xff]
  %v18 = vld [vmem:[%s0 + $0x18] sm:$0xff]
  %v19 = vld [vmem:[%s0 + $0x20] sm:$0xff]
  %v20 = vld [vmem:[%s0 + $0x28] sm:$0xff]
  %v21 = vld [vmem:[%s0 + $0x30] sm:$0xff]
  %v22 = vld [vmem:[%s0 + $0x38] sm:$0xff]
  %v23 = vld [vmem:[%s0 + $0x40] sm:$0xff]
  %v24 = vld [vmem:[%s0 + $0x48] sm:$0xff]
  %v25 = vld [vmem:[%s0 + $0x50] sm:$0xff]
  %v26 = vld [vmem:[%s0 + $0x58] sm:$0xff]
  %v27 = vld [vmem:[%s0 + $0x60] sm:$0xff]
  %v28 = vld [vmem:[%s0 + $0x68] sm:$0xff]
  %v29 = vld [vmem:[%s0 + $0x70] sm:$0xff]
  %v30 = vld [vmem:[%s0 + $0x78] sm:$0xff]
  %v31 = vld [vmem:[%s1] sm:$0xf]
  %v32 = vld [vmem:[%s1 + $0x4] sm:$0xf]
  %v33 = vld [vmem:[%s1 + $0x8] sm:$0xf]
  %v34 = vld [vmem:[%s1 + $0xc] sm:$0xf]
  %v35 = vld [vmem:[%s1 + $0x10] sm:$0xf]
  %v36 = vld [vmem:[%s1 + $0x14] sm:$0xf]
  %v37 = vld [vmem:[%s1 + $0x18] sm:$0xf]
  %v38 = vld [vmem:[%s1 + $0x1c] sm:$0xf]
  %v39 = vld [vmem:[%s1 + $0x20] sm:$0xf]
  %v40 = vld [vmem:[%s1 + $0x24] sm:$0xf]
  %v41 = vld [vmem:[%s1 + $0x28] sm:$0xf]
  %v42 = vld [vmem:[%s1 + $0x2c] sm:$0xf]
  %v43 = vld [vmem:[%s1 + $0x30] sm:$0xf]
  %v44 = vld [vmem:[%s1 + $0x34] sm:$0xf]
  %v45 = vld [vmem:[%s1 + $0x38] sm:$0xf]
  %v46 = vld [vmem:[%s1 + $0x3c] sm:$0xf]
  %v47 = vld [vmem:[%s1 + $0x40] sm:$0xf]
  %v48 = vld [vmem:[%s1 + $0x44] sm:$0xf]
  %v49 = vld [vmem:[%s1 + $0x48] sm:$0xf]
  %v50 = vld [vmem:[%s1 + $0x4c] sm:$0xf]
  %v51 = vld [vmem:[%s1 + $0x50] sm:$0xf]
  %v52 = vld [vmem:[%s1 + $0x54] sm:$0xf]
  %v53 = vld [vmem:[%s1 + $0x58] sm:$0xf]
  %v54 = vld [vmem:[%s1 + $0x5c] sm:$0xf]
  %v55 = vld [vmem:[%s1 + $0x60] sm:$0xf]
  %v56 = vld [vmem:[%s1 + $0x64] sm:$0xf]
  %v57 = vld [vmem:[%s1 + $0x68] sm:$0xf]
  %v58 = vld [vmem:[%s1 + $0x6c] sm:$0xf]
  %v59 = vld [vmem:[%s1 + $0x70] sm:$0xf]
  %v60 = vld [vmem:[%s1 + $0x74] sm:$0xf]
  %v61 = vld [vmem:[%s1 + $0x78] sm:$0xf]
  %v62 = vld [vmem:[%s1 + $0x7c] sm:$0xf]
  %v63 = vld [vmem:[%s1 + $0x80] sm:$0xf]
  %v64 = vld [vmem:[%s1 + $0x84] sm:$0xf]
  %v65 = vld [vmem:[%s1 + $0x88] sm:$0xf]
  %v66 = vld [vmem:[%s1 + $0x8c] sm:$0xf]
  %v67 = vld [vmem:[%s1 + $0x90] sm:$0xf]
  %v68 = vld [vmem:[%s1 + $0x94] sm:$0xf]
  %v69 = vld [vmem:[%s1 + $0x98] sm:$0xf]
  %v70 = vld [vmem:[%s1 + $0x9c] sm:$0xf]
  %v71 = vld [vmem:[%s1 + $0xa0] sm:$0xf]
  %v72 = vld [vmem:[%s1 + $0xa4] sm:$0xf]
  %v73 = vld [vmem:[%s1 + $0xa8] sm:$0xf]
  %v74 = vld [vmem:[%s1 + $0xac] sm:$0xf]
  %v75 = vld [vmem:[%s1 + $0xb0] sm:$0xf]
  %v76 = vld [vmem:[%s1 + $0xb4] sm:$0xf]
  %v77 = vld [vmem:[%s1 + $0xb8] sm:$0xf]
  %v78 = vld [vmem:[%s1 + $0xbc] sm:$0xf]
  %v79 = vld [vmem:[%s1 + $0xc0] sm:$0xf]
  %v80 = vld [vmem:[%s1 + $0xc4] sm:$0xf]
  %v81 = vld [vmem:[%s1 + $0xc8] sm:$0xf]
  %v82 = vld [vmem:[%s1 + $0xcc] sm:$0xf]
  %v83 = vld [vmem:[%s1 + $0xd0] sm:$0xf]
  %v84 = vld [vmem:[%s1 + $0xd4] sm:$0xf]
  %v85 = vld [vmem:[%s1 + $0xd8] sm:$0xf]
  %v86 = vld [vmem:[%s1 + $0xdc] sm:$0xf]
  %v87 = vld [vmem:[%s1 + $0xe0] sm:$0xf]
  %v88 = vld [vmem:[%s1 + $0xe4] sm:$0xf]
  %v89 = vld [vmem:[%s1 + $0xe8] sm:$0xf]
  %v90 = vld [vmem:[%s1 + $0xec] sm:$0xf]
  %v91 = vld [vmem:[%s1 + $0xf0] sm:$0xf]
  %v92 = vld [vmem:[%s1 + $0xf4] sm:$0xf]
  %v93 = vld [vmem:[%s1 + $0xf8] sm:$0xf]
  %v94 = vld [vmem:[%s1 + $0xfc] sm:$0xf]
  %v95 = vld [vmem:[%s1 + $0x100] sm:$0xf]
  %v96 = vld [vmem:[%s1 + $0x104] sm:$0xf]
  %v97 = vld [vmem:[%s1 + $0x108] sm:$0xf]
  %v98 = vld [vmem:[%s1 + $0x10c] sm:$0xf]
  %v99 = vld [vmem:[%s1 + $0x110] sm:$0xf]
  %v100 = vld [vmem:[%s1 + $0x114] sm:$0xf]
  %v101 = vld [vmem:[%s1 + $0x118] sm:$0xf]
  %v102 = vld [vmem:[%s1 + $0x11c] sm:$0xf]
  %v103 = vld [vmem:[%s1 + $0x120] sm:$0xf]
  %v104 = vld [vmem:[%s1 + $0x124] sm:$0xf]
  %v105 = vld [vmem:[%s1 + $0x128] sm:$0xf]
  %v106 = vld [vmem:[%s1 + $0x12c] sm:$0xf]
  %v107 = vld [vmem:[%s1 + $0x130] sm:$0xf]
  %v108 = vld [vmem:[%s1 + $0x134] sm:$0xf]
  %v109 = vld [vmem:[%s1 + $0x138] sm:$0xf]
  %v110 = vld [vmem:[%s1 + $0x13c] sm:$0xf]
  %v111 = vld [vmem:[%s1 + $0x140] sm:$0xf]
  %v112 = vld [vmem:[%s1 + $0x144] sm:$0xf]
  %v113 = vld [vmem:[%s1 + $0x148] sm:$0xf]
  %v114 = vld [vmem:[%s1 + $0x14c] sm:$0xf]
  %v115 = vld [vmem:[%s1 + $0x150] sm:$0xf]
  %v116 = vld [vmem:[%s1 + $0x154] sm:$0xf]
  %v117 = vld [vmem:[%s1 + $0x158] sm:$0xf]
  %v118 = vld [vmem:[%s1 + $0x15c] sm:$0xf]
  %v119 = vld [vmem:[%s1 + $0x160] sm:$0xf]
  %v120 = vld [vmem:[%s1 + $0x164] sm:$0xf]
  %v121 = vld [vmem:[%s1 + $0x168] sm:$0xf]
  %v122 = vld [vmem:[%s1 + $0x16c] sm:$0xf]
  %v123 = vld [vmem:[%s1 + $0x170] sm:$0xf]
  %v124 = vld [vmem:[%s1 + $0x174] sm:$0xf]
  %v125 = vld [vmem:[%s1 + $0x178] sm:$0xf]
  %v126 = vld [vmem:[%s1 + $0x17c] sm:$0xf]
  %v127 = vld [vmem:[%s1 + $0x180] sm:$0xf]
  %v128 = vld [vmem:[%s1 + $0x184] sm:$0xf]
  %v129 = vld [vmem:[%s1 + $0x188] sm:$0xf]
  %v130 = vld [vmem:[%s1 + $0x18c] sm:$0xf]
  %v131 = vld [vmem:[%s1 + $0x190] sm:$0xf]
  %v132 = vld [vmem:[%s1 + $0x194] sm:$0xf]
  %v133 = vld [vmem:[%s1 + $0x198] sm:$0xf]
  %v134 = vld [vmem:[%s1 + $0x19c] sm:$0xf]
  %v135 = vld [vmem:[%s1 + $0x1a0] sm:$0xf]
  %v136 = vld [vmem:[%s1 + $0x1a4] sm:$0xf]
  %v137 = vld [vmem:[%s1 + $0x1a8] sm:$0xf]
  %v138 = vld [vmem:[%s1 + $0x1ac] sm:$0xf]
  %v139 = vld [vmem:[%s1 + $0x1b0] sm:$0xf]
  %v140 = vld [vmem:[%s1 + $0x1b4] sm:$0xf]
  %v141 = vld [vmem:[%s1 + $0x1b8] sm:$0xf]
  %v142 = vld [vmem:[%s1 + $0x1bc] sm:$0xf]
  %v143 = vld [vmem:[%s1 + $0x1c0] sm:$0xf]
  %v144 = vld [vmem:[%s1 + $0x1c4] sm:$0xf]
  %v145 = vld [vmem:[%s1 + $0x1c8] sm:$0xf]
  %v146 = vld [vmem:[%s1 + $0x1cc] sm:$0xf]
  %v147 = vld [vmem:[%s1 + $0x1d0] sm:$0xf]
  %v148 = vld [vmem:[%s1 + $0x1d4] sm:$0xf]
  %v149 = vld [vmem:[%s1 + $0x1d8] sm:$0xf]
  %v150 = vld [vmem:[%s1 + $0x1dc] sm:$0xf]
  %v151 = vld [vmem:[%s1 + $0x1e0] sm:$0xf]
  %v152 = vld [vmem:[%s1 + $0x1e4] sm:$0xf]
  %v153 = vld [vmem:[%s1 + $0x1e8] sm:$0xf]
  %v154 = vld [vmem:[%s1 + $0x1ec] sm:$0xf]
  %v155 = vld [vmem:[%s1 + $0x1f0] sm:$0xf]
  %v156 = vld [vmem:[%s1 + $0x1f4] sm:$0xf]
  %v157 = vld [vmem:[%s1 + $0x1f8] sm:$0xf]
  %v158 = vld [vmem:[%s1 + $0x1fc] sm:$0xf]
  %v159 = vld [vmem:[%s2] sm:$0x1]
  %v161 = vlaneseq
  %v162 = vshrl.u32 %v161, 7
  %v163 = vsub.s32 0, %v162
  %v164 = vrot.slane %v159, %v163
  %v182 = vunpack.c.l.b16 %v15
  %v183 = vunpack.c.h.b16 %v15
  %v184 = vunpack.c.l.b16 %v16
  %v185 = vunpack.c.h.b16 %v16
  %v186 = vunpack.c.l.b16 %v17
  %v187 = vunpack.c.h.b16 %v17
  %v188 = vunpack.c.l.b16 %v18
  %v189 = vunpack.c.h.b16 %v18
  %v190 = vunpack.c.l.b16 %v19
  %v191 = vunpack.c.h.b16 %v19
  %v192 = vunpack.c.l.b16 %v20
  %v193 = vunpack.c.h.b16 %v20
  %v194 = vunpack.c.l.b16 %v21
  %v195 = vunpack.c.h.b16 %v21
  %v196 = vunpack.c.l.b16 %v22
  %v197 = vunpack.c.h.b16 %v22
  %v198 = vunpack.c.l.b16 %v23
  %v199 = vunpack.c.h.b16 %v23
  %v200 = vunpack.c.l.b16 %v24
  %v201 = vunpack.c.h.b16 %v24
  %v202 = vunpack.c.l.b16 %v25
  %v203 = vunpack.c.h.b16 %v25
  %v204 = vunpack.c.l.b16 %v26
  %v205 = vunpack.c.h.b16 %v26
  %v206 = vunpack.c.l.b16 %v27
  %v207 = vunpack.c.h.b16 %v27
  %v208 = vunpack.c.l.b16 %v28
  %v209 = vunpack.c.h.b16 %v28
  %v210 = vunpack.c.l.b16 %v29
  %v211 = vunpack.c.h.b16 %v29
  %v212 = vunpack.c.l.b16 %v30
  %v213 = vunpack.c.h.b16 %v30
  %v214 = vpack.c.b16 %v190, %v182
  %v215 = vpack.c.b16 %v191, %v183
  %v216 = vpack.c.b16 %v192, %v184
  %v217 = vpack.c.b16 %v193, %v185
  %v218 = vpack.c.b16 %v194, %v186
  %v219 = vpack.c.b16 %v195, %v187
  %v220 = vpack.c.b16 %v196, %v188
  %v221 = vpack.c.b16 %v197, %v189
  %v222 = vpack.c.b16 %v206, %v198
  %v223 = vpack.c.b16 %v207, %v199
  %v224 = vpack.c.b16 %v208, %v200
  %v225 = vpack.c.b16 %v209, %v201
  %v226 = vpack.c.b16 %v210, %v202
  %v227 = vpack.c.b16 %v211, %v203
  %v228 = vpack.c.b16 %v212, %v204
  %v229 = vpack.c.b16 %v213, %v205
  %v374 = vunpack.c.l.b16 %v31
  %v375 = vunpack.c.l.b16 %v32
  %v376 = vunpack.c.l.b16 %v33
  %v377 = vunpack.c.l.b16 %v34
  %v378 = vunpack.c.l.b16 %v35
  %v379 = vunpack.c.l.b16 %v36
  %v380 = vunpack.c.l.b16 %v37
  %v381 = vunpack.c.l.b16 %v38
  %v382 = vunpack.c.l.b16 %v39
  %v383 = vunpack.c.l.b16 %v40
  %v384 = vunpack.c.l.b16 %v41
  %v385 = vunpack.c.l.b16 %v42
  %v386 = vunpack.c.l.b16 %v43
  %v387 = vunpack.c.l.b16 %v44
  %v388 = vunpack.c.l.b16 %v45
  %v389 = vunpack.c.l.b16 %v46
  %v390 = vunpack.c.l.b16 %v47
  %v391 = vunpack.c.l.b16 %v48
  %v392 = vunpack.c.l.b16 %v49
  %v393 = vunpack.c.l.b16 %v50
  %v394 = vunpack.c.l.b16 %v51
  %v395 = vunpack.c.l.b16 %v52
  %v396 = vunpack.c.l.b16 %v53
  %v397 = vunpack.c.l.b16 %v54
  %v398 = vunpack.c.l.b16 %v55
  %v399 = vunpack.c.l.b16 %v56
  %v400 = vunpack.c.l.b16 %v57
  %v401 = vunpack.c.l.b16 %v58
  %v402 = vunpack.c.l.b16 %v59
  %v403 = vunpack.c.l.b16 %v60
  %v404 = vunpack.c.l.b16 %v61
  %v405 = vunpack.c.l.b16 %v62
  %v406 = vunpack.c.l.b16 %v63
  %v407 = vunpack.c.l.b16 %v64
  %v408 = vunpack.c.l.b16 %v65
  %v409 = vunpack.c.l.b16 %v66
  %v410 = vunpack.c.l.b16 %v67
  %v411 = vunpack.c.l.b16 %v68
  %v412 = vunpack.c.l.b16 %v69
  %v413 = vunpack.c.l.b16 %v70
  %v414 = vunpack.c.l.b16 %v71
  %v415 = vunpack.c.l.b16 %v72
  %v416 = vunpack.c.l.b16 %v73
  %v417 = vunpack.c.l.b16 %v74
  %v418 = vunpack.c.l.b16 %v75
  %v419 = vunpack.c.l.b16 %v76
  %v420 = vunpack.c.l.b16 %v77
  %v421 = vunpack.c.l.b16 %v78
  %v422 = vunpack.c.l.b16 %v79
  %v423 = vunpack.c.l.b16 %v80
  %v424 = vunpack.c.l.b16 %v81
  %v425 = vunpack.c.l.b16 %v82
  %v426 = vunpack.c.l.b16 %v83
  %v427 = vunpack.c.l.b16 %v84
  %v428 = vunpack.c.l.b16 %v85
  %v429 = vunpack.c.l.b16 %v86
  %v430 = vunpack.c.l.b16 %v87
  %v431 = vunpack.c.l.b16 %v88
  %v432 = vunpack.c.l.b16 %v89
  %v433 = vunpack.c.l.b16 %v90
  %v434 = vunpack.c.l.b16 %v91
  %v435 = vunpack.c.l.b16 %v92
  %v436 = vunpack.c.l.b16 %v93
  %v437 = vunpack.c.l.b16 %v94
  %v438 = vunpack.c.l.b16 %v95
  %v439 = vunpack.c.l.b16 %v96
  %v440 = vunpack.c.l.b16 %v97
  %v441 = vunpack.c.l.b16 %v98
  %v442 = vunpack.c.l.b16 %v99
  %v443 = vunpack.c.l.b16 %v100
  %v444 = vunpack.c.l.b16 %v101
  %v445 = vunpack.c.l.b16 %v102
  %v446 = vunpack.c.l.b16 %v103
  %v447 = vunpack.c.l.b16 %v104
  %v448 = vunpack.c.l.b16 %v105
  %v449 = vunpack.c.l.b16 %v106
  %v450 = vunpack.c.l.b16 %v107
  %v451 = vunpack.c.l.b16 %v108
  %v452 = vunpack.c.l.b16 %v109
  %v453 = vunpack.c.l.b16 %v110
  %v454 = vunpack.c.l.b16 %v111
  %v455 = vunpack.c.l.b16 %v112
  %v456 = vunpack.c.l.b16 %v113
  %v457 = vunpack.c.l.b16 %v114
  %v458 = vunpack.c.l.b16 %v115
  %v459 = vunpack.c.l.b16 %v116
  %v460 = vunpack.c.l.b16 %v117
  %v461 = vunpack.c.l.b16 %v118
  %v462 = vunpack.c.l.b16 %v119
  %v463 = vunpack.c.l.b16 %v120
  %v464 = vunpack.c.l.b16 %v121
  %v465 = vunpack.c.l.b16 %v122
  %v466 = vunpack.c.l.b16 %v123
  %v467 = vunpack.c.l.b16 %v124
  %v468 = vunpack.c.l.b16 %v125
  %v469 = vunpack.c.l.b16 %v126
  %v470 = vunpack.c.l.b16 %v127
  %v471 = vunpack.c.l.b16 %v128
  %v472 = vunpack.c.l.b16 %v129
  %v473 = vunpack.c.l.b16 %v130
  %v474 = vunpack.c.l.b16 %v131
  %v475 = vunpack.c.l.b16 %v132
  %v476 = vunpack.c.l.b16 %v133
  %v477 = vunpack.c.l.b16 %v134
  %v478 = vunpack.c.l.b16 %v135
  %v479 = vunpack.c.l.b16 %v136
  %v480 = vunpack.c.l.b16 %v137
  %v481 = vunpack.c.l.b16 %v138
  %v482 = vunpack.c.l.b16 %v139
  %v483 = vunpack.c.l.b16 %v140
  %v484 = vunpack.c.l.b16 %v141
  %v485 = vunpack.c.l.b16 %v142
  %v486 = vunpack.c.l.b16 %v143
  %v487 = vunpack.c.l.b16 %v144
  %v488 = vunpack.c.l.b16 %v145
  %v489 = vunpack.c.l.b16 %v146
  %v490 = vunpack.c.l.b16 %v147
  %v491 = vunpack.c.l.b16 %v148
  %v492 = vunpack.c.l.b16 %v149
  %v493 = vunpack.c.l.b16 %v150
  %v494 = vunpack.c.l.b16 %v151
  %v495 = vunpack.c.l.b16 %v152
  %v496 = vunpack.c.l.b16 %v153
  %v497 = vunpack.c.l.b16 %v154
  %v498 = vunpack.c.l.b16 %v155
  %v499 = vunpack.c.l.b16 %v156
  %v500 = vunpack.c.l.b16 %v157
  %v501 = vunpack.c.l.b16 %v158
  %v502 = vpack.c.b16 %v375, %v374
  %v503 = vpack.c.b16 %v377, %v376
  %v504 = vpack.c.b16 %v379, %v378
  %v505 = vpack.c.b16 %v381, %v380
  %v506 = vpack.c.b16 %v383, %v382
  %v507 = vpack.c.b16 %v385, %v384
  %v508 = vpack.c.b16 %v387, %v386
  %v509 = vpack.c.b16 %v389, %v388
  %v510 = vpack.c.b16 %v391, %v390
  %v511 = vpack.c.b16 %v393, %v392
  %v512 = vpack.c.b16 %v395, %v394
  %v513 = vpack.c.b16 %v397, %v396
  %v514 = vpack.c.b16 %v399, %v398
  %v515 = vpack.c.b16 %v401, %v400
  %v516 = vpack.c.b16 %v403, %v402
  %v517 = vpack.c.b16 %v405, %v404
  %v518 = vpack.c.b16 %v407, %v406
  %v519 = vpack.c.b16 %v409, %v408
  %v520 = vpack.c.b16 %v411, %v410
  %v521 = vpack.c.b16 %v413, %v412
  %v522 = vpack.c.b16 %v415, %v414
  %v523 = vpack.c.b16 %v417, %v416
  %v524 = vpack.c.b16 %v419, %v418
  %v525 = vpack.c.b16 %v421, %v420
  %v526 = vpack.c.b16 %v423, %v422
  %v527 = vpack.c.b16 %v425, %v424
  %v528 = vpack.c.b16 %v427, %v426
  %v529 = vpack.c.b16 %v429, %v428
  %v530 = vpack.c.b16 %v431, %v430
  %v531 = vpack.c.b16 %v433, %v432
  %v532 = vpack.c.b16 %v435, %v434
  %v533 = vpack.c.b16 %v437, %v436
  %v534 = vpack.c.b16 %v439, %v438
  %v535 = vpack.c.b16 %v441, %v440
  %v536 = vpack.c.b16 %v443, %v442
  %v537 = vpack.c.b16 %v445, %v444
  %v538 = vpack.c.b16 %v447, %v446
  %v539 = vpack.c.b16 %v449, %v448
  %v540 = vpack.c.b16 %v451, %v450
  %v541 = vpack.c.b16 %v453, %v452
  %v542 = vpack.c.b16 %v455, %v454
  %v543 = vpack.c.b16 %v457, %v456
  %v544 = vpack.c.b16 %v459, %v458
  %v545 = vpack.c.b16 %v461, %v460
  %v546 = vpack.c.b16 %v463, %v462
  %v547 = vpack.c.b16 %v465, %v464
  %v548 = vpack.c.b16 %v467, %v466
  %v549 = vpack.c.b16 %v469, %v468
  %v550 = vpack.c.b16 %v471, %v470
  %v551 = vpack.c.b16 %v473, %v472
  %v552 = vpack.c.b16 %v475, %v474
  %v553 = vpack.c.b16 %v477, %v476
  %v554 = vpack.c.b16 %v479, %v478
  %v555 = vpack.c.b16 %v481, %v480
  %v556 = vpack.c.b16 %v483, %v482
  %v557 = vpack.c.b16 %v485, %v484
  %v558 = vpack.c.b16 %v487, %v486
  %v559 = vpack.c.b16 %v489, %v488
  %v560 = vpack.c.b16 %v491, %v490
  %v561 = vpack.c.b16 %v493, %v492
  %v562 = vpack.c.b16 %v495, %v494
  %v563 = vpack.c.b16 %v497, %v496
  %v564 = vpack.c.b16 %v499, %v498
  %v565 = vpack.c.b16 %v501, %v500
  %630 = vmatprep.subr.bf16.mxu0 0
  %631 = vmatpush1.bf16.msra.mxu0 %v502
  %632 = vmatprep.subr.bf16.mxu0 0
  %633 = vmatpush1.bf16.msra.mxu0 %v503
  %634 = vmatprep.subr.bf16.mxu0 0
  %635 = vmatpush1.bf16.msra.mxu0 %v504
  %636 = vmatprep.subr.bf16.mxu0 0
  %637 = vmatpush1.bf16.msra.mxu0 %v505
  %638 = vmatprep.subr.bf16.mxu0 0
  %639 = vmatpush1.bf16.msra.mxu0 %v506
  %640 = vmatprep.subr.bf16.mxu0 0
  %641 = vmatpush1.bf16.msra.mxu0 %v507
  %642 = vmatprep.subr.bf16.mxu0 0
  %643 = vmatpush1.bf16.msra.mxu0 %v508
  %644 = vmatprep.subr.bf16.mxu0 0
  %645 = vmatpush1.bf16.msra.mxu0 %v509
  %646 = vmatprep.subr.bf16.mxu0 0
  %647 = vmatpush1.bf16.msra.mxu0 %v510
  %648 = vmatprep.subr.bf16.mxu0 0
  %649 = vmatpush1.bf16.msra.mxu0 %v511
  %650 = vmatprep.subr.bf16.mxu0 0
  %651 = vmatpush1.bf16.msra.mxu0 %v512
  %652 = vmatprep.subr.bf16.mxu0 0
  %653 = vmatpush1.bf16.msra.mxu0 %v513
  %654 = vmatprep.subr.bf16.mxu0 0
  %655 = vmatpush1.bf16.msra.mxu0 %v514
  %656 = vmatprep.subr.bf16.mxu0 0
  %657 = vmatpush1.bf16.msra.mxu0 %v515
  %658 = vmatprep.subr.bf16.mxu0 0
  %659 = vmatpush1.bf16.msra.mxu0 %v516
  %660 = vmatprep.subr.bf16.mxu0 0
  %661 = vmatpush1.bf16.msra.mxu0 %v517
  %662 = vmatprep.mubr.bf16.mxu0 %v215
  %663 = vmatmul.mubr.bf16.gmra.mrb[0].mxu0 %v214
  %v664 = vpop.f32.mrb[0].mxu0
  %v665 = vadd.f32 %v164, %v664
  %v666 = vpop.f32.mrb[0].mxu0
  %v667 = vpop.f32.mrb[0].mxu0
  %v668 = vadd.f32 %v164, %v667
  %v669 = vpop.f32.mrb[0].mxu0
  %670 = vmatprep.mubr.bf16.mxu0 %v223
  %671 = vmatmul.mubr.bf16.gmra.mrb[0].mxu0 %v222
  %v672 = vpop.f32.mrb[0].mxu0
  %v673 = vadd.f32 %v164, %v672
  %v674 = vpop.f32.mrb[0].mxu0
  %v675 = vpop.f32.mrb[0].mxu0
  %v676 = vadd.f32 %v164, %v675
  %v677 = vpop.f32.mrb[0].mxu0
  %678 = vdwg.mxu0
  %679 = vmatprep.subr.bf16.mxu0 0
  %680 = vmatpush1.bf16.msra.mxu0 %v518
  %681 = vmatprep.subr.bf16.mxu0 0
  %682 = vmatpush1.bf16.msra.mxu0 %v519
  %683 = vmatprep.subr.bf16.mxu0 0
  %684 = vmatpush1.bf16.msra.mxu0 %v520
  %685 = vmatprep.subr.bf16.mxu0 0
  %686 = vmatpush1.bf16.msra.mxu0 %v521
  %687 = vmatprep.subr.bf16.mxu0 0
  %688 = vmatpush1.bf16.msra.mxu0 %v522
  %689 = vmatprep.subr.bf16.mxu0 0
  %690 = vmatpush1.bf16.msra.mxu0 %v523
  %691 = vmatprep.subr.bf16.mxu0 0
  %692 = vmatpush1.bf16.msra.mxu0 %v524
  %693 = vmatprep.subr.bf16.mxu0 0
  %694 = vmatpush1.bf16.msra.mxu0 %v525
  %695 = vmatprep.subr.bf16.mxu0 0
  %696 = vmatpush1.bf16.msra.mxu0 %v526
  %697 = vmatprep.subr.bf16.mxu0 0
  %698 = vmatpush1.bf16.msra.mxu0 %v527
  %699 = vmatprep.subr.bf16.mxu0 0
  %700 = vmatpush1.bf16.msra.mxu0 %v528
  %701 = vmatprep.subr.bf16.mxu0 0
  %702 = vmatpush1.bf16.msra.mxu0 %v529
  %703 = vmatprep.subr.bf16.mxu0 0
  %704 = vmatpush1.bf16.msra.mxu0 %v530
  %705 = vmatprep.subr.bf16.mxu0 0
  %706 = vmatpush1.bf16.msra.mxu0 %v531
  %707 = vmatprep.subr.bf16.mxu0 0
  %708 = vmatpush1.bf16.msra.mxu0 %v532
  %709 = vmatprep.subr.bf16.mxu0 0
  %710 = vmatpush1.bf16.msra.mxu0 %v533
  %711 = vmatprep.mubr.bf16.mxu0 %v217
  %712 = vmatmul.mubr.bf16.gmra.mrb[0].mxu0 %v216
  %v713 = vpop.f32.mrb[0].mxu0
  %v714 = vadd.f32 %v665, %v713
  %v715 = vpop.f32.mrb[0].mxu0
  %v716 = vpop.f32.mrb[0].mxu0
  %v717 = vadd.f32 %v668, %v716
  %v718 = vpop.f32.mrb[0].mxu0
  %719 = vmatprep.mubr.bf16.mxu0 %v225
  %720 = vmatmul.mubr.bf16.gmra.mrb[0].mxu0 %v224
  %v721 = vpop.f32.mrb[0].mxu0
  %v722 = vadd.f32 %v673, %v721
  %v723 = vpop.f32.mrb[0].mxu0
  %v724 = vpop.f32.mrb[0].mxu0
  %v725 = vadd.f32 %v676, %v724
  %v726 = vpop.f32.mrb[0].mxu0
  %727 = vdwg.mxu0
  %728 = vmatprep.subr.bf16.mxu0 0
  %729 = vmatpush1.bf16.msra.mxu0 %v534
  %730 = vmatprep.subr.bf16.mxu0 0
  %731 = vmatpush1.bf16.msra.mxu0 %v535
  %732 = vmatprep.subr.bf16.mxu0 0
  %733 = vmatpush1.bf16.msra.mxu0 %v536
  %734 = vmatprep.subr.bf16.mxu0 0
  %735 = vmatpush1.bf16.msra.mxu0 %v537
  %736 = vmatprep.subr.bf16.mxu0 0
  %737 = vmatpush1.bf16.msra.mxu0 %v538
  %738 = vmatprep.subr.bf16.mxu0 0
  %739 = vmatpush1.bf16.msra.mxu0 %v539
  %740 = vmatprep.subr.bf16.mxu0 0
  %741 = vmatpush1.bf16.msra.mxu0 %v540
  %742 = vmatprep.subr.bf16.mxu0 0
  %743 = vmatpush1.bf16.msra.mxu0 %v541
  %744 = vmatprep.subr.bf16.mxu0 0
  %745 = vmatpush1.bf16.msra.mxu0 %v542
  %746 = vmatprep.subr.bf16.mxu0 0
  %747 = vmatpush1.bf16.msra.mxu0 %v543
  %748 = vmatprep.subr.bf16.mxu0 0
  %749 = vmatpush1.bf16.msra.mxu0 %v544
  %750 = vmatprep.subr.bf16.mxu0 0
  %751 = vmatpush1.bf16.msra.mxu0 %v545
  %752 = vmatprep.subr.bf16.mxu0 0
  %753 = vmatpush1.bf16.msra.mxu0 %v546
  %754 = vmatprep.subr.bf16.mxu0 0
  %755 = vmatpush1.bf16.msra.mxu0 %v547
  %756 = vmatprep.subr.bf16.mxu0 0
  %757 = vmatpush1.bf16.msra.mxu0 %v548
  %758 = vmatprep.subr.bf16.mxu0 0
  %759 = vmatpush1.bf16.msra.mxu0 %v549
  %760 = vmatprep.mubr.bf16.mxu0 %v219
  %761 = vmatmul.mubr.bf16.gmra.mrb[0].mxu0 %v218
  %v762 = vpop.f32.mrb[0].mxu0
  %v763 = vadd.f32 %v714, %v762
  %v764 = vpop.f32.mrb[0].mxu0
  %v765 = vpop.f32.mrb[0].mxu0
  %v766 = vadd.f32 %v717, %v765
  %v767 = vpop.f32.mrb[0].mxu0
  %768 = vmatprep.mubr.bf16.mxu0 %v227
  %769 = vmatmul.mubr.bf16.gmra.mrb[0].mxu0 %v226
  %v770 = vpop.f32.mrb[0].mxu0
  %v771 = vadd.f32 %v722, %v770
  %v772 = vpop.f32.mrb[0].mxu0
  %v773 = vpop.f32.mrb[0].mxu0
  %v774 = vadd.f32 %v725, %v773
  %v775 = vpop.f32.mrb[0].mxu0
  %776 = vdwg.mxu0
  %777 = vmatprep.subr.bf16.mxu0 0
  %778 = vmatpush1.bf16.msra.mxu0 %v550
  %779 = vmatprep.subr.bf16.mxu0 0
  %780 = vmatpush1.bf16.msra.mxu0 %v551
  %781 = vmatprep.subr.bf16.mxu0 0
  %782 = vmatpush1.bf16.msra.mxu0 %v552
  %783 = vmatprep.subr.bf16.mxu0 0
  %784 = vmatpush1.bf16.msra.mxu0 %v553
  %785 = vmatprep.subr.bf16.mxu0 0
  %786 = vmatpush1.bf16.msra.mxu0 %v554
  %787 = vmatprep.subr.bf16.mxu0 0
  %788 = vmatpush1.bf16.msra.mxu0 %v555
  %789 = vmatprep.subr.bf16.mxu0 0
  %790 = vmatpush1.bf16.msra.mxu0 %v556
  %791 = vmatprep.subr.bf16.mxu0 0
  %792 = vmatpush1.bf16.msra.mxu0 %v557
  %793 = vmatprep.subr.bf16.mxu0 0
  %794 = vmatpush1.bf16.msra.mxu0 %v558
  %795 = vmatprep.subr.bf16.mxu0 0
  %796 = vmatpush1.bf16.msra.mxu0 %v559
  %797 = vmatprep.subr.bf16.mxu0 0
  %798 = vmatpush1.bf16.msra.mxu0 %v560
  %799 = vmatprep.subr.bf16.mxu0 0
  %800 = vmatpush1.bf16.msra.mxu0 %v561
  %801 = vmatprep.subr.bf16.mxu0 0
  %802 = vmatpush1.bf16.msra.mxu0 %v562
  %803 = vmatprep.subr.bf16.mxu0 0
  %804 = vmatpush1.bf16.msra.mxu0 %v563
  %805 = vmatprep.subr.bf16.mxu0 0
  %806 = vmatpush1.bf16.msra.mxu0 %v564
  %807 = vmatprep.subr.bf16.mxu0 0
  %808 = vmatpush1.bf16.msra.mxu0 %v565
  %809 = vmatprep.mubr.bf16.mxu0 %v221
  %810 = vmatmul.mubr.bf16.gmra.mrb[0].mxu0 %v220
  %v811 = vpop.f32.mrb[0].mxu0
  %v812 = vadd.f32 %v763, %v811
  %v813 = vpop.f32.mrb[0].mxu0
  %v814 = vpop.f32.mrb[0].mxu0
  %v815 = vadd.f32 %v766, %v814
  %v816 = vpop.f32.mrb[0].mxu0
  %817 = vmatprep.mubr.bf16.mxu0 %v229
  %818 = vmatmul.mubr.bf16.gmra.mrb[0].mxu0 %v228
  %v819 = vpop.f32.mrb[0].mxu0
  %v820 = vadd.f32 %v771, %v819
  %v821 = vpop.f32.mrb[0].mxu0
  %v822 = vpop.f32.mrb[0].mxu0
  %v823 = vadd.f32 %v774, %v822
  %v824 = vpop.f32.mrb[0].mxu0
  %825 = vdwg.mxu0
  %v826 = vpack.c.bf16 %v815, %v812
  %v827 = vpack.c.bf16 %v823, %v820
  %v830 = vunpack.c.l.b16 %v826
  %v831 = vunpack.c.h.b16 %v826
  %v832 = vunpack.c.l.b16 %v827
  %v833 = vunpack.c.h.b16 %v827
  %v834 = vpack.c.b16 %v830, %v830
  %v835 = vpack.c.b16 %v831, %v831
  %v836 = vpack.c.b16 %v832, %v832
  %v837 = vpack.c.b16 %v833, %v833
  %vm842 = vcmask 519168
  %843 = vst.msk [vmem:[%s3] sm:$0xf] %vm842, %v834
  %844 = vst.msk [vmem:[%s3 + $0x4] sm:$0xf] %vm842, %v835
  %845 = vst.msk [vmem:[%s3 + $0x8] sm:$0xf] %vm842, %v836
  %846 = vst.msk [vmem:[%s3 + $0xc] sm:$0xf] %vm842, %v837
  // Predicated region
  $region14: #{discriminator_forward.9} parent=0 // pred_check
    _
  $region15: #{discriminator_forward.9} parent=0 // pred_check_branch
    %848 = sbr.rel (0) target = $region17
  $region16: #{discriminator_forward.9} parent=0 // pred_region
    _
  $region17: #{discriminator_forward.9} parent=0 // pred_fallthru
    _
  // Predicated region
  $region18: #{discriminator_forward.9} parent=0 // pred_check
    _
  $region19: #{discriminator_forward.9} parent=0 // pred_check_branch
    %850 = sbr.rel (0) target = $region21
  $region20: #{discriminator_forward.9} parent=0 // pred_region
    _
  $region21: #{discriminator_forward.9} parent=0 // pred_fallthru
    _

// kernel: discriminator_forward.10
$region0: #{discriminator_forward.10}
  #allocation0 [shape = 'u32[]', space=smem, size = 0x4, offset = 0x4, fixed_abs, tag = 'smem constant byte address 0x4 - core index']
  #allocation1 [shape = 'u32[144,128]{1,0:T(1,128)}', space=vmem, size = 0x12000, scoped, tag = 'internal scratch']
  #allocation2 [shape = 'f32[32,128]{1,0:T(8,128)}', space=vmem, size = 0x4000, scoped, tag = 'scratch operand']
  %s0 = inlined_call_operand.vmem [shape: bf16[32,576], index: 0, kind: input, shape index: {}]
  %s1 = inlined_call_operand.vmem [shape: bf16[576,128], index: 1, kind: input, shape index: {}]
  %s2 = inlined_call_operand.vmem [shape: f32[1,128], index: 2, kind: input, shape index: {}]
  %s3 = inlined_call_operand.vmem [shape: f32[1,128], index: 3, kind: input, shape index: {}]
  %s4 = inlined_call_operand.vmem [shape: bf16[32,128], index: 4, kind: output, shape index: {}]
  %s5 = sld [smem:[#allocation0]]
  $region30: #{discriminator_forward.10} parent=0
    _
  %s7 = ssub.s32 1, %s5
  %s8 = scalar_select 0, %s7, %s5
  // Predicated region
  $region2: #{discriminator_forward.10} parent=0 // pred_check
    _
  $region3: #{discriminator_forward.10} parent=0 // pred_check_branch
    %10 = sbr.rel (0) target = $region5
  $region4: #{discriminator_forward.10} parent=0 // pred_region
    _
  $region5: #{discriminator_forward.10} parent=0 // pred_fallthru
    _
  // Predicated region
  $region6: #{discriminator_forward.10} parent=0 // pred_check
    _
  $region7: #{discriminator_forward.10} parent=0 // pred_check_branch
    %12 = sbr.rel (0) target = $region9
  $region8: #{discriminator_forward.10} parent=0 // pred_region
    _
  $region9: #{discriminator_forward.10} parent=0 // pred_fallthru
    _
  // Predicated region
  $region10: #{discriminator_forward.10} parent=0 // pred_check
    _
  $region11: #{discriminator_forward.10} parent=0 // pred_check_branch
    %14 = sbr.rel (0) target = $region13
  $region12: #{discriminator_forward.10} parent=0 // pred_region
    _
  $region13: #{discriminator_forward.10} parent=0 // pred_fallthru
    _
  // Predicated region
  $region14: #{discriminator_forward.10} parent=0 // pred_check
    _
  $region15: #{discriminator_forward.10} parent=0 // pred_check_branch
    %16 = sbr.rel (0) target = $region17
  $region16: #{discriminator_forward.10} parent=0 // pred_region
    _
  $region17: #{discriminator_forward.10} parent=0 // pred_fallthru
    _
  %v18 = vld [vmem:[%s0] sm:$0xff]
  %v19 = vld [vmem:[%s0 + $0x8] sm:$0xff]
  %v20 = vld [vmem:[%s0 + $0x10] sm:$0xf]
  %v21 = vld [vmem:[%s0 + $0x14] sm:$0xff]
  %v22 = vld [vmem:[%s0 + $0x1c] sm:$0xff]
  %v23 = vld [vmem:[%s0 + $0x24] sm:$0xf]
  %v24 = vld [vmem:[%s0 + $0x28] sm:$0xff]
  %v25 = vld [vmem:[%s0 + $0x30] sm:$0xff]
  %v26 = vld [vmem:[%s0 + $0x38] sm:$0xf]
  %v27 = vld [vmem:[%s0 + $0x3c] sm:$0xff]
  %v28 = vld [vmem:[%s0 + $0x44] sm:$0xff]
  %v29 = vld [vmem:[%s0 + $0x4c] sm:$0xf]
  %v30 = vld [vmem:[%s1] sm:$0xf]
  %v31 = vld [vmem:[%s1 + $0x4] sm:$0xf]
  %v32 = vld [vmem:[%s1 + $0x8] sm:$0xf]
  %v33 = vld [vmem:[%s1 + $0xc] sm:$0xf]
  %v34 = vld [vmem:[%s1 + $0x10] sm:$0xf]
  %v35 = vld [vmem:[%s1 + $0x14] sm:$0xf]
  %v36 = vld [vmem:[%s1 + $0x18] sm:$0xf]
  %v37 = vld [vmem:[%s1 + $0x1c] sm:$0xf]
  %v38 = vld [vmem:[%s1 + $0x20] sm:$0xf]
  %v39 = vld [vmem:[%s1 + $0x24] sm:$0xf]
  %v40 = vld [vmem:[%s1 + $0x28] sm:$0xf]
  %v41 = vld [vmem:[%s1 + $0x2c] sm:$0xf]
  %v42 = vld [vmem:[%s1 + $0x30] sm:$0xf]
  %v43 = vld [vmem:[%s1 + $0x34] sm:$0xf]
  %v44 = vld [vmem:[%s1 + $0x38] sm:$0xf]
  %v45 = vld [vmem:[%s1 + $0x3c] sm:$0xf]
  %v46 = vld [vmem:[%s1 + $0x40] sm:$0xf]
  %v47 = vld [vmem:[%s1 + $0x44] sm:$0xf]
  %v48 = vld [vmem:[%s1 + $0x48] sm:$0xf]
  %v49 = vld [vmem:[%s1 + $0x4c] sm:$0xf]
  %v50 = vld [vmem:[%s1 + $0x50] sm:$0xf]
  %v51 = vld [vmem:[%s1 + $0x54] sm:$0xf]
  %v52 = vld [vmem:[%s1 + $0x58] sm:$0xf]
  %v53 = vld [vmem:[%s1 + $0x5c] sm:$0xf]
  %v54 = vld [vmem:[%s1 + $0x60] sm:$0xf]
  %v55 = vld [vmem:[%s1 + $0x64] sm:$0xf]
  %v56 = vld [vmem:[%s1 + $0x68] sm:$0xf]
  %v57 = vld [vmem:[%s1 + $0x6c] sm:$0xf]
  %v58 = vld [vmem:[%s1 + $0x70] sm:$0xf]
  %v59 = vld [vmem:[%s1 + $0x74] sm:$0xf]
  %v60 = vld [vmem:[%s1 + $0x78] sm:$0xf]
  %v61 = vld [vmem:[%s1 + $0x7c] sm:$0xf]
  %v62 = vld [vmem:[%s1 + $0x80] sm:$0xf]
  %v63 = vld [vmem:[%s1 + $0x84] sm:$0xf]
  %v64 = vld [vmem:[%s1 + $0x88] sm:$0xf]
  %v65 = vld [vmem:[%s1 + $0x8c] sm:$0xf]
  %v66 = vld [vmem:[%s1 + $0x90] sm:$0xf]
  %v67 = vld [vmem:[%s1 + $0x94] sm:$0xf]
  %v68 = vld [vmem:[%s1 + $0x98] sm:$0xf]
  %v69 = vld [vmem:[%s1 + $0x9c] sm:$0xf]
  %v70 = vld [vmem:[%s1 + $0xa0] sm:$0xf]
  %v71 = vld [vmem:[%s1 + $0xa4] sm:$0xf]
  %v72 = vld [vmem:[%s1 + $0xa8] sm:$0xf]
  %v73 = vld [vmem:[%s1 + $0xac] sm:$0xf]
  %v74 = vld [vmem:[%s1 + $0xb0] sm:$0xf]
  %v75 = vld [vmem:[%s1 + $0xb4] sm:$0xf]
  %v76 = vld [vmem:[%s1 + $0xb8] sm:$0xf]
  %v77 = vld [vmem:[%s1 + $0xbc] sm:$0xf]
  %v78 = vld [vmem:[%s1 + $0xc0] sm:$0xf]
  %v79 = vld [vmem:[%s1 + $0xc4] sm:$0xf]
  %v80 = vld [vmem:[%s1 + $0xc8] sm:$0xf]
  %v81 = vld [vmem:[%s1 + $0xcc] sm:$0xf]
  %v82 = vld [vmem:[%s1 + $0xd0] sm:$0xf]
  %v83 = vld [vmem:[%s1 + $0xd4] sm:$0xf]
  %v84 = vld [vmem:[%s1 + $0xd8] sm:$0xf]
  %v85 = vld [vmem:[%s1 + $0xdc] sm:$0xf]
  %v86 = vld [vmem:[%s1 + $0xe0] sm:$0xf]
  %v87 = vld [vmem:[%s1 + $0xe4] sm:$0xf]
  %v88 = vld [vmem:[%s1 + $0xe8] sm:$0xf]
  %v89 = vld [vmem:[%s1 + $0xec] sm:$0xf]
  %v90 = vld [vmem:[%s1 + $0xf0] sm:$0xf]
  %v91 = vld [vmem:[%s1 + $0xf4] sm:$0xf]
  %v92 = vld [vmem:[%s1 + $0xf8] sm:$0xf]
  %v93 = vld [vmem:[%s1 + $0xfc] sm:$0xf]
  %v94 = vld [vmem:[%s1 + $0x100] sm:$0xf]
  %v95 = vld [vmem:[%s1 + $0x104] sm:$0xf]
  %v96 = vld [vmem:[%s1 + $0x108] sm:$0xf]
  %v97 = vld [vmem:[%s1 + $0x10c] sm:$0xf]
  %v98 = vld [vmem:[%s1 + $0x110] sm:$0xf]
  %v99 = vld [vmem:[%s1 + $0x114] sm:$0xf]
  %v100 = vld [vmem:[%s1 + $0x118] sm:$0xf]
  %v101 = vld [vmem:[%s1 + $0x11c] sm:$0xf]
  %v114 = vunpack.c.l.b16 %v18
  %v115 = vunpack.c.h.b16 %v18
  %v116 = vunpack.c.l.b16 %v19
  %v117 = vunpack.c.h.b16 %v19
  %v118 = vunpack.c.l.b16 %v20
  %v119 = vunpack.c.l.b16 %v21
  %v120 = vunpack.c.h.b16 %v21
  %v121 = vunpack.c.l.b16 %v22
  %v122 = vunpack.c.h.b16 %v22
  %v123 = vunpack.c.l.b16 %v23
  %v124 = vunpack.c.l.b16 %v24
  %v125 = vunpack.c.h.b16 %v24
  %v126 = vunpack.c.l.b16 %v25
  %v127 = vunpack.c.h.b16 %v25
  %v128 = vunpack.c.l.b16 %v26
  %v129 = vunpack.c.l.b16 %v27
  %v130 = vunpack.c.h.b16 %v27
  %v131 = vunpack.c.l.b16 %v28
  %v132 = vunpack.c.h.b16 %v28
  %v133 = vunpack.c.l.b16 %v29
  %v134 = vpack.c.b16 %v119, %v114
  %v135 = vpack.c.b16 %v120, %v115
  %v136 = vpack.c.b16 %v121, %v116
  %v137 = vpack.c.b16 %v122, %v117
  %v138 = vpack.c.b16 %v123, %v118
  %v139 = vpack.c.b16 %v129, %v124
  %v140 = vpack.c.b16 %v130, %v125
  %v141 = vpack.c.b16 %v131, %v126
  %v142 = vpack.c.b16 %v132, %v127
  %v143 = vpack.c.b16 %v133, %v128
  %v224 = vunpack.c.l.b16 %v30
  %v225 = vunpack.c.l.b16 %v31
  %v226 = vunpack.c.l.b16 %v32
  %v227 = vunpack.c.l.b16 %v33
  %v228 = vunpack.c.l.b16 %v34
  %v229 = vunpack.c.l.b16 %v35
  %v230 = vunpack.c.l.b16 %v36
  %v231 = vunpack.c.l.b16 %v37
  %v232 = vunpack.c.l.b16 %v38
  %v233 = vunpack.c.l.b16 %v39
  %v234 = vunpack.c.l.b16 %v40
  %v235 = vunpack.c.l.b16 %v41
  %v236 = vunpack.c.l.b16 %v42
  %v237 = vunpack.c.l.b16 %v43
  %v238 = vunpack.c.l.b16 %v44
  %v239 = vunpack.c.l.b16 %v45
  %v240 = vunpack.c.l.b16 %v46
  %v241 = vunpack.c.l.b16 %v47
  %v242 = vunpack.c.l.b16 %v48
  %v243 = vunpack.c.l.b16 %v49
  %v244 = vunpack.c.l.b16 %v50
  %v245 = vunpack.c.l.b16 %v51
  %v246 = vunpack.c.l.b16 %v52
  %v247 = vunpack.c.l.b16 %v53
  %v248 = vunpack.c.l.b16 %v54
  %v249 = vunpack.c.l.b16 %v55
  %v250 = vunpack.c.l.b16 %v56
  %v251 = vunpack.c.l.b16 %v57
  %v252 = vunpack.c.l.b16 %v58
  %v253 = vunpack.c.l.b16 %v59
  %v254 = vunpack.c.l.b16 %v60
  %v255 = vunpack.c.l.b16 %v61
  %v256 = vunpack.c.l.b16 %v62
  %v257 = vunpack.c.l.b16 %v63
  %v258 = vunpack.c.l.b16 %v64
  %v259 = vunpack.c.l.b16 %v65
  %v260 = vunpack.c.l.b16 %v66
  %v261 = vunpack.c.l.b16 %v67
  %v262 = vunpack.c.l.b16 %v68
  %v263 = vunpack.c.l.b16 %v69
  %v264 = vunpack.c.l.b16 %v70
  %v265 = vunpack.c.l.b16 %v71
  %v266 = vunpack.c.l.b16 %v72
  %v267 = vunpack.c.l.b16 %v73
  %v268 = vunpack.c.l.b16 %v74
  %v269 = vunpack.c.l.b16 %v75
  %v270 = vunpack.c.l.b16 %v76
  %v271 = vunpack.c.l.b16 %v77
  %v272 = vunpack.c.l.b16 %v78
  %v273 = vunpack.c.l.b16 %v79
  %v274 = vunpack.c.l.b16 %v80
  %v275 = vunpack.c.l.b16 %v81
  %v276 = vunpack.c.l.b16 %v82
  %v277 = vunpack.c.l.b16 %v83
  %v278 = vunpack.c.l.b16 %v84
  %v279 = vunpack.c.l.b16 %v85
  %v280 = vunpack.c.l.b16 %v86
  %v281 = vunpack.c.l.b16 %v87
  %v282 = vunpack.c.l.b16 %v88
  %v283 = vunpack.c.l.b16 %v89
  %v284 = vunpack.c.l.b16 %v90
  %v285 = vunpack.c.l.b16 %v91
  %v286 = vunpack.c.l.b16 %v92
  %v287 = vunpack.c.l.b16 %v93
  %v288 = vunpack.c.l.b16 %v94
  %v289 = vunpack.c.l.b16 %v95
  %v290 = vunpack.c.l.b16 %v96
  %v291 = vunpack.c.l.b16 %v97
  %v292 = vunpack.c.l.b16 %v98
  %v293 = vunpack.c.l.b16 %v99
  %v294 = vunpack.c.l.b16 %v100
  %v295 = vunpack.c.l.b16 %v101
  %v296 = vpack.c.b16 %v225, %v224
  %v297 = vpack.c.b16 %v227, %v226
  %v298 = vpack.c.b16 %v229, %v228
  %v299 = vpack.c.b16 %v231, %v230
  %v300 = vpack.c.b16 %v233, %v232
  %v301 = vpack.c.b16 %v235, %v234
  %v302 = vpack.c.b16 %v237, %v236
  %v303 = vpack.c.b16 %v239, %v238
  %v304 = vpack.c.b16 %v241, %v240
  %v305 = vpack.c.b16 %v243, %v242
  %v306 = vpack.c.b16 %v245, %v244
  %v307 = vpack.c.b16 %v247, %v246
  %v308 = vpack.c.b16 %v249, %v248
  %v309 = vpack.c.b16 %v251, %v250
  %v310 = vpack.c.b16 %v253, %v252
  %v311 = vpack.c.b16 %v255, %v254
  %v312 = vpack.c.b16 %v257, %v256
  %v313 = vpack.c.b16 %v259, %v258
  %v314 = vpack.c.b16 %v261, %v260
  %v315 = vpack.c.b16 %v263, %v262
  %v316 = vpack.c.b16 %v265, %v264
  %v317 = vpack.c.b16 %v267, %v266
  %v318 = vpack.c.b16 %v269, %v268
  %v319 = vpack.c.b16 %v271, %v270
  %v320 = vpack.c.b16 %v273, %v272
  %v321 = vpack.c.b16 %v275, %v274
  %v322 = vpack.c.b16 %v277, %v276
  %v323 = vpack.c.b16 %v279, %v278
  %v324 = vpack.c.b16 %v281, %v280
  %v325 = vpack.c.b16 %v283, %v282
  %v326 = vpack.c.b16 %v285, %v284
  %v327 = vpack.c.b16 %v287, %v286
  %v328 = vpack.c.b16 %v289, %v288
  %v329 = vpack.c.b16 %v291, %v290
  %v330 = vpack.c.b16 %v293, %v292
  %v331 = vpack.c.b16 %v295, %v294
  %vm368 = vcmask 523264
  %v370 = vsel %vm368, %v138, 0
  %v373 = vsel %vm368, %v143, 0
  %375 = vmatprep.subr.bf16.mxu0 0
  %376 = vmatpush1.bf16.msra.mxu0 %v296
  %377 = vmatprep.subr.bf16.mxu0 0
  %378 = vmatpush1.bf16.msra.mxu0 %v297
  %379 = vmatprep.subr.bf16.mxu0 0
  %380 = vmatpush1.bf16.msra.mxu0 %v298
  %381 = vmatprep.subr.bf16.mxu0 0
  %382 = vmatpush1.bf16.msra.mxu0 %v299
  %383 = vmatprep.subr.bf16.mxu0 0
  %384 = vmatpush1.bf16.msra.mxu0 %v300
  %385 = vmatprep.subr.bf16.mxu0 0
  %386 = vmatpush1.bf16.msra.mxu0 %v301
  %387 = vmatprep.subr.bf16.mxu0 0
  %388 = vmatpush1.bf16.msra.mxu0 %v302
  %389 = vmatprep.subr.bf16.mxu0 0
  %390 = vmatpush1.bf16.msra.mxu0 %v303
  %391 = vmatprep.subr.bf16.mxu0 0
  %392 = vmatpush1.bf16.msra.mxu0 %v304
  %393 = vmatprep.subr.bf16.mxu0 0
  %394 = vmatpush1.bf16.msra.mxu0 %v305
  %395 = vmatprep.subr.bf16.mxu0 0
  %396 = vmatpush1.bf16.msra.mxu0 %v306
  %397 = vmatprep.subr.bf16.mxu0 0
  %398 = vmatpush1.bf16.msra.mxu0 %v307
  %399 = vmatprep.subr.bf16.mxu0 0
  %400 = vmatpush1.bf16.msra.mxu0 %v308
  %401 = vmatprep.subr.bf16.mxu0 0
  %402 = vmatpush1.bf16.msra.mxu0 %v309
  %403 = vmatprep.subr.bf16.mxu0 0
  %404 = vmatpush1.bf16.msra.mxu0 %v310
  %405 = vmatprep.subr.bf16.mxu0 0
  %406 = vmatpush1.bf16.msra.mxu0 %v311
  %407 = vmatprep.mubr.bf16.mxu0 %v135
  %408 = vmatmul.mubr.bf16.gmra.mrb[0].mxu0 %v134
  %v409 = vpop.f32.mrb[0].mxu0
  %v410 = vadd.f32 0.0, %v409
  %v411 = vpop.f32.mrb[0].mxu0
  %v412 = vpop.f32.mrb[0].mxu0
  %v413 = vadd.f32 0.0, %v412
  %v414 = vpop.f32.mrb[0].mxu0
  %415 = vmatprep.mubr.bf16.mxu0 %v140
  %416 = vmatmul.mubr.bf16.gmra.mrb[0].mxu0 %v139
  %v417 = vpop.f32.mrb[0].mxu0
  %v418 = vadd.f32 0.0, %v417
  %v419 = vpop.f32.mrb[0].mxu0
  %v420 = vpop.f32.mrb[0].mxu0
  %v421 = vadd.f32 0.0, %v420
  %v422 = vpop.f32.mrb[0].mxu0
  %423 = vdwg.mxu0
  %424 = vmatprep.subr.bf16.mxu0 0
  %425 = vmatpush1.bf16.msra.mxu0 %v312
  %426 = vmatprep.subr.bf16.mxu0 0
  %427 = vmatpush1.bf16.msra.mxu0 %v313
  %428 = vmatprep.subr.bf16.mxu0 0
  %429 = vmatpush1.bf16.msra.mxu0 %v314
  %430 = vmatprep.subr.bf16.mxu0 0
  %431 = vmatpush1.bf16.msra.mxu0 %v315
  %432 = vmatprep.subr.bf16.mxu0 0
  %433 = vmatpush1.bf16.msra.mxu0 %v316
  %434 = vmatprep.subr.bf16.mxu0 0
  %435 = vmatpush1.bf16.msra.mxu0 %v317
  %436 = vmatprep.subr.bf16.mxu0 0
  %437 = vmatpush1.bf16.msra.mxu0 %v318
  %438 = vmatprep.subr.bf16.mxu0 0
  %439 = vmatpush1.bf16.msra.mxu0 %v319
  %440 = vmatprep.subr.bf16.mxu0 0
  %441 = vmatpush1.bf16.msra.mxu0 %v320
  %442 = vmatprep.subr.bf16.mxu0 0
  %443 = vmatpush1.bf16.msra.mxu0 %v321
  %444 = vmatprep.subr.bf16.mxu0 0
  %445 = vmatpush1.bf16.msra.mxu0 %v322
  %446 = vmatprep.subr.bf16.mxu0 0
  %447 = vmatpush1.bf16.msra.mxu0 %v323
  %448 = vmatprep.subr.bf16.mxu0 0
  %449 = vmatpush1.bf16.msra.mxu0 %v324
  %450 = vmatprep.subr.bf16.mxu0 0
  %451 = vmatpush1.bf16.msra.mxu0 %v325
  %452 = vmatprep.subr.bf16.mxu0 0
  %453 = vmatpush1.bf16.msra.mxu0 %v326
  %454 = vmatprep.subr.bf16.mxu0 0
  %455 = vmatpush1.bf16.msra.mxu0 %v327
  %456 = vmatprep.mubr.bf16.mxu0 %v137
  %457 = vmatmul.mubr.bf16.gmra.mrb[0].mxu0 %v136
  %v458 = vpop.f32.mrb[0].mxu0
  %v459 = vadd.f32 %v410, %v458
  %v460 = vpop.f32.mrb[0].mxu0
  %v461 = vpop.f32.mrb[0].mxu0
  %v462 = vadd.f32 %v413, %v461
  %v463 = vpop.f32.mrb[0].mxu0
  %464 = vmatprep.mubr.bf16.mxu0 %v142
  %465 = vmatmul.mubr.bf16.gmra.mrb[0].mxu0 %v141
  %v466 = vpop.f32.mrb[0].mxu0
  %v467 = vadd.f32 %v418, %v466
  %v468 = vpop.f32.mrb[0].mxu0
  %v469 = vpop.f32.mrb[0].mxu0
  %v470 = vadd.f32 %v421, %v469
  %v471 = vpop.f32.mrb[0].mxu0
  %472 = vdwg.mxu0
  %473 = vmatprep.subr.bf16.mxu0 0
  %474 = vmatpush1.bf16.msra.mxu0 %v328
  %475 = vmatprep.subr.bf16.mxu0 0
  %476 = vmatpush1.bf16.msra.mxu0 %v329
  %477 = vmatprep.subr.bf16.mxu0 0
  %478 = vmatpush1.bf16.msra.mxu0 %v330
  %479 = vmatprep.subr.bf16.mxu0 0
  %480 = vmatpush1.bf16.msra.mxu0 %v331
  %481 = vmatprep.subr.bf16.mxu0 0
  %482 = vmatpush1.bf16.msra.mxu0 0
  %483 = vmatprep.subr.bf16.mxu0 0
  %484 = vmatpush1.bf16.msra.mxu0 0
  %485 = vmatprep.subr.bf16.mxu0 0
  %486 = vmatpush1.bf16.msra.mxu0 0
  %487 = vmatprep.subr.bf16.mxu0 0
  %488 = vmatpush1.bf16.msra.mxu0 0
  %489 = vmatprep.subr.bf16.mxu0 0
  %490 = vmatpush1.bf16.msra.mxu0 0
  %491 = vmatprep.subr.bf16.mxu0 0
  %492 = vmatpush1.bf16.msra.mxu0 0
  %493 = vmatprep.subr.bf16.mxu0 0
  %494 = vmatpush1.bf16.msra.mxu0 0
  %495 = vmatprep.subr.bf16.mxu0 0
  %496 = vmatpush1.bf16.msra.mxu0 0
  %497 = vmatprep.subr.bf16.mxu0 0
  %498 = vmatpush1.bf16.msra.mxu0 0
  %499 = vmatprep.subr.bf16.mxu0 0
  %500 = vmatpush1.bf16.msra.mxu0 0
  %501 = vmatprep.subr.bf16.mxu0 0
  %502 = vmatpush1.bf16.msra.mxu0 0
  %503 = vmatprep.subr.bf16.mxu0 0
  %504 = vmatpush1.bf16.msra.mxu0 0
  %505 = vmatprep.mubr.bf16.mxu0 0
  %506 = vmatmul.mubr.bf16.gmra.mrb[0].mxu0 %v370
  %v507 = vpop.f32.mrb[0].mxu0
  %v508 = vadd.f32 %v459, %v507
  %v509 = vpop.f32.mrb[0].mxu0
  %v510 = vpop.f32.mrb[0].mxu0
  %v511 = vadd.f32 %v462, %v510
  %v512 = vpop.f32.mrb[0].mxu0
  %513 = vmatprep.mubr.bf16.mxu0 0
  %514 = vmatmul.mubr.bf16.gmra.mrb[0].mxu0 %v373
  %v515 = vpop.f32.mrb[0].mxu0
  %v516 = vadd.f32 %v467, %v515
  %v517 = vpop.f32.mrb[0].mxu0
  %v518 = vpop.f32.mrb[0].mxu0
  %v519 = vadd.f32 %v470, %v518
  %v520 = vpop.f32.mrb[0].mxu0
  %521 = vdwg.mxu0
  %522 = vst [vmem:[#allocation2] sm:$0xff] %v508
  %523 = vst [vmem:[#allocation2 + $0x8] sm:$0xff] %v511
  %524 = vst [vmem:[#allocation2 + $0x10] sm:$0xff] %v516
  %525 = vst [vmem:[#allocation2 + $0x18] sm:$0xff] %v519
  %p526 = scmp.eq.s32.totalorder 0, 0
  // Predicated region
  $region18: #{discriminator_forward.10} parent=0 // pred_check
    %p527 = pneg %p526
  $region19: #{discriminator_forward.10} parent=0 // pred_check_branch
    %529 = sbr.rel (%p527) target = $region21
  $region20: #{discriminator_forward.10} parent=0 // pred_region
    %v530 = vld [vmem:[#allocation2] sm:$0xff]
    %v531 = vld [vmem:[#allocation2 + $0x8] sm:$0xff]
    %v532 = vld [vmem:[#allocation2 + $0x10] sm:$0xff]
    %v533 = vld [vmem:[#allocation2 + $0x18] sm:$0xff]
    %v534 = vadd.f32 %v530, %v531
    %v535 = vadd.f32 %v534, %v532
    %v536 = vadd.f32 %v535, %v533
    %v537 = vrot.slane %v536, 4
    %v538 = vadd.f32 %v536, %v537
    %v539 = vrot.slane %v538, 2
    %v540 = vadd.f32 %v538, %v539
    %v541 = vrot.slane %v540, 1
    %v542 = vadd.f32 %v540, %v541
    %v543 = vmul.f32 %v542, 0.03125
    %v544 = vsub.f32 %v530, %v543
    %v545 = vsub.f32 %v531, %v543
    %v546 = vsub.f32 %v532, %v543
    %v547 = vsub.f32 %v533, %v543
    %v548 = vmul.f32 %v544, %v544
    %v549 = vmul.f32 %v545, %v545
    %v550 = vmul.f32 %v546, %v546
    %v551 = vmul.f32 %v547, %v547
    %v552 = vadd.f32 %v548, %v549
    %v553 = vadd.f32 %v552, %v550
    %v554 = vadd.f32 %v553, %v551
    %v555 = vrot.slane %v554, 4
    %v556 = vadd.f32 %v554, %v555
    %v557 = vrot.slane %v556, 2
    %v558 = vadd.f32 %v556, %v557
    %v559 = vrot.slane %v558, 1
    %v560 = vadd.f32 %v558, %v559
    %v561 = vmul.f32 %v560, 0.03125
    %v562 = vld [vmem:[%s2] sm:$0x1]
    %v563 = vadd.f32 %v561, 1e-05
    %v564 = vrsqrt.pop %v563
    %v565 = vmul.f32 %v562, %v564
    %v566 = vld [vmem:[%s3] sm:$0x1]
    %v567 = vmul.f32 %v543, %v565
    %v568 = vsub.f32 %v566, %v567
    %v570 = vlaneseq
    %v571 = vshrl.u32 %v570, 7
    %v572 = vsub.s32 0, %v571
    %v573 = vrot.slane %v565, %v572
    %v575 = vmul.f32 %v530, %v573
    %v576 = vmul.f32 %v531, %v573
    %v577 = vmul.f32 %v532, %v573
    %v578 = vmul.f32 %v533, %v573
    %v580 = vlaneseq
    %v581 = vshrl.u32 %v580, 7
    %v582 = vsub.s32 0, %v581
    %v583 = vrot.slane %v568, %v582
    %v585 = vadd.f32 %v575, %v583
    %v586 = vadd.f32 %v576, %v583
    %v587 = vadd.f32 %v577, %v583
    %v588 = vadd.f32 %v578, %v583
    %vm589 = vcmp.ge.f32.partialorder %v585, 0.0
    %vm590 = vcmp.ge.f32.partialorder %v586, 0.0
    %vm591 = vcmp.ge.f32.partialorder %v587, 0.0
    %vm592 = vcmp.ge.f32.partialorder %v588, 0.0
    %v593 = vmul.f32 %v585, 0.2
    %v594 = vmul.f32 %v586, 0.2
    %v595 = vmul.f32 %v587, 0.2
    %v596 = vmul.f32 %v588, 0.2
    %v597 = vsel %vm589, %v585, %v593
    %v598 = vsel %vm590, %v586, %v594
    %v599 = vsel %vm591, %v587, %v595
    %v600 = vsel %vm592, %v588, %v596
    %v601 = vpack.c.bf16 %v598, %v597
    %v602 = vpack.c.bf16 %v600, %v599
    %v605 = vunpack.c.l.b16 %v601
    %v606 = vunpack.c.h.b16 %v601
    %v607 = vunpack.c.l.b16 %v602
    %v608 = vunpack.c.h.b16 %v602
    %v609 = vpack.c.b16 %v605, %v605
    %v610 = vpack.c.b16 %v606, %v606
    %v611 = vpack.c.b16 %v607, %v607
    %v612 = vpack.c.b16 %v608, %v608
    %617 = vst [vmem:[%s4] sm:$0xf] %v609
    %618 = vst [vmem:[%s4 + $0x4] sm:$0xf] %v610
    %619 = vst [vmem:[%s4 + $0x8] sm:$0xf] %v611
    %620 = vst [vmem:[%s4 + $0xc] sm:$0xf] %v612
  $region21: #{discriminator_forward.10} parent=0 // pred_fallthru
    _
  // Predicated region
  $region22: #{discriminator_forward.10} parent=0 // pred_check
    _
  $region23: #{discriminator_forward.10} parent=0 // pred_check_branch
    %622 = sbr.rel (0) target = $region25
  $region24: #{discriminator_forward.10} parent=0 // pred_region
    _
  $region25: #{discriminator_forward.10} parent=0 // pred_fallthru
    _
  // Predicated region
  $region26: #{discriminator_forward.10} parent=0 // pred_check
    _
  $region27: #{discriminator_forward.10} parent=0 // pred_check_branch
    %624 = sbr.rel (0) target = $region29
  $region28: #{discriminator_forward.10} parent=0 // pred_region
    _
  $region29: #{discriminator_forward.10} parent=0 // pred_fallthru
    _

// kernel: discriminator_forward.11
$region0: #{discriminator_forward.11}
  #allocation0 [shape = 'u32[]', space=smem, size = 0x4, offset = 0x4, fixed_abs, tag = 'smem constant byte address 0x4 - core index']
  #allocation1 [shape = 'u32[144,128]{1,0:T(1,128)}', space=vmem, size = 0x12000, scoped, tag = 'internal scratch']
  #allocation2 [shape = 'f32[1,1]{1,0:T(1,128)S(1)}', space=vmem, size = 0x200, scoped, tag = 'scoped memory for discriminator_forward.11']
  %s0 = inlined_call_operand.vmem [shape: bf16[2,4,1152], index: 0, kind: input, shape index: {}]
  %s1 = inlined_call_operand.vmem [shape: bf16[1152,1], index: 1, kind: input, shape index: {}]
  %s2 = inlined_call_operand.<no memory space> [shape: f32[1,1], index: 2, kind: input, shape index: {}]
  %s3 = inlined_call_operand.vmem [shape: f32[2,1], index: 3, kind: output, shape index: {}]
  %s4 = sld [smem:[#allocation0]]
  $region22: #{discriminator_forward.11} parent=0
    _
  %s6 = ssub.s32 1, %s4
  %s7 = scalar_select 0, %s6, %s4
  %v8 = vstv %s2
  %9 = vst [vmem:[#allocation2] sm:$0x1] %v8
  // Predicated region
  $region2: #{discriminator_forward.11} parent=0 // pred_check
    _
  $region3: #{discriminator_forward.11} parent=0 // pred_check_branch
    %11 = sbr.rel (0) target = $region5
  $region4: #{discriminator_forward.11} parent=0 // pred_region
    _
  $region5: #{discriminator_forward.11} parent=0 // pred_fallthru
    _
  // Predicated region
  $region6: #{discriminator_forward.11} parent=0 // pred_check
    _
  $region7: #{discriminator_forward.11} parent=0 // pred_check_branch
    %13 = sbr.rel (0) target = $region9
  $region8: #{discriminator_forward.11} parent=0 // pred_region
    _
  $region9: #{discriminator_forward.11} parent=0 // pred_fallthru
    _
  // Predicated region
  $region10: #{discriminator_forward.11} parent=0 // pred_check
    _
  $region11: #{discriminator_forward.11} parent=0 // pred_check_branch
    %15 = sbr.rel (0) target = $region13
  $region12: #{discriminator_forward.11} parent=0 // pred_region
    _
  $region13: #{discriminator_forward.11} parent=0 // pred_fallthru
    _
  %v16 = vld [vmem:[%s0] sm:$0xff]
  %v17 = vld [vmem:[%s0 + $0x8] sm:$0xff]
  %v18 = vld [vmem:[%s0 + $0x10] sm:$0x3]
  %v19 = vld [vmem:[%s0 + $0x12] sm:$0xff]
  %v20 = vld [vmem:[%s0 + $0x1a] sm:$0xff]
  %v21 = vld [vmem:[%s0 + $0x22] sm:$0x3]
  %v22 = vunpack.c.l.bf16 %v16
  %v23 = vunpack.c.h.bf16 %v16
  %v24 = vunpack.c.l.bf16 %v17
  %v25 = vunpack.c.h.bf16 %v17
  %v26 = vunpack.c.l.bf16 %v18
  %v27 = vunpack.c.l.bf16 %v19
  %v28 = vunpack.c.h.bf16 %v19
  %v29 = vunpack.c.l.bf16 %v20
  %v30 = vunpack.c.h.bf16 %v20
  %v31 = vunpack.c.l.bf16 %v21
  %v40 = vcombine.high %v22, %v22
  %v41 = vcombine.high %v23, %v23
  %v42 = vcombine.high %v24, %v24
  %v43 = vcombine.high %v25, %v25
  %v44 = vcombine.high %v27, %v27
  %v45 = vcombine.high %v28, %v28
  %v46 = vcombine.high %v29, %v29
  %v47 = vcombine.high %v30, %v30
  %vm56 = vcmask 1043456
  %v57 = vsel %vm56, %v22, 0.0
  %v58 = vrot.slane %v57, 4
  %v59 = vadd.f32 %v57, %v58
  %v60 = vrot.slane %v59, 2
  %v61 = vadd.f32 %v59, %v60
  %v62 = vrot.slane %v61, 1
  %v63 = vadd.f32 %v61, %v62
  %v64 = vsel %vm56, %v40, 0.0
  %v65 = vrot.slane %v64, 4
  %v66 = vadd.f32 %v64, %v65
  %v67 = vrot.slane %v66, 2
  %v68 = vadd.f32 %v66, %v67
  %v69 = vrot.slane %v68, 1
  %v70 = vadd.f32 %v68, %v69
  %v71 = vsel %vm56, %v23, 0.0
  %v72 = vrot.slane %v71, 4
  %v73 = vadd.f32 %v71, %v72
  %v74 = vrot.slane %v73, 2
  %v75 = vadd.f32 %v73, %v74
  %v76 = vrot.slane %v75, 1
  %v77 = vadd.f32 %v75, %v76
  %v78 = vsel %vm56, %v41, 0.0
  %v79 = vrot.slane %v78, 4
  %v80 = vadd.f32 %v78, %v79
  %v81 = vrot.slane %v80, 2
  %v82 = vadd.f32 %v80, %v81
  %v83 = vrot.slane %v82, 1
  %v84 = vadd.f32 %v82, %v83
  %v85 = vsel %vm56, %v24, 0.0
  %v86 = vrot.slane %v85, 4
  %v87 = vadd.f32 %v85, %v86
  %v88 = vrot.slane %v87, 2
  %v89 = vadd.f32 %v87, %v88
  %v90 = vrot.slane %v89, 1
  %v91 = vadd.f32 %v89, %v90
  %v92 = vsel %vm56, %v42, 0.0
  %v93 = vrot.slane %v92, 4
  %v94 = vadd.f32 %v92, %v93
  %v95 = vrot.slane %v94, 2
  %v96 = vadd.f32 %v94, %v95
  %v97 = vrot.slane %v96, 1
  %v98 = vadd.f32 %v96, %v97
  %v99 = vsel %vm56, %v25, 0.0
  %v100 = vrot.slane %v99, 4
  %v101 = vadd.f32 %v99, %v100
  %v102 = vrot.slane %v101, 2
  %v103 = vadd.f32 %v101, %v102
  %v104 = vrot.slane %v103, 1
  %v105 = vadd.f32 %v103, %v104
  %v106 = vsel %vm56, %v43, 0.0
  %v107 = vrot.slane %v106, 4
  %v108 = vadd.f32 %v106, %v107
  %v109 = vrot.slane %v108, 2
  %v110 = vadd.f32 %v108, %v109
  %v111 = vrot.slane %v110, 1
  %v112 = vadd.f32 %v110, %v111
  %v113 = vsel %vm56, %v26, 0.0
  %v114 = vrot.slane %v113, 4
  %v115 = vadd.f32 %v113, %v114
  %v116 = vrot.slane %v115, 2
  %v117 = vadd.f32 %v115, %v116
  %v118 = vrot.slane %v117, 1
  %v119 = vadd.f32 %v117, %v118
  %v120 = vsel %vm56, %v27, 0.0
  %v121 = vrot.slane %v120, 4
  %v122 = vadd.f32 %v120, %v121
  %v123 = vrot.slane %v122, 2
  %v124 = vadd.f32 %v122, %v123
  %v125 = vrot.slane %v124, 1
  %v126 = vadd.f32 %v124, %v125
  %v127 = vsel %vm56, %v44, 0.0
  %v128 = vrot.slane %v127, 4
  %v129 = vadd.f32 %v127, %v128
  %v130 = vrot.slane %v129, 2
  %v131 = vadd.f32 %v129, %v130
  %v132 = vrot.slane %v131, 1
  %v133 = vadd.f32 %v131, %v132
  %v134 = vsel %vm56, %v28, 0.0
  %v135 = vrot.slane %v134, 4
  %v136 = vadd.f32 %v134, %v135
  %v137 = vrot.slane %v136, 2
  %v138 = vadd.f32 %v136, %v137
  %v139 = vrot.slane %v138, 1
  %v140 = vadd.f32 %v138, %v139
  %v141 = vsel %vm56, %v45, 0.0
  %v142 = vrot.slane %v141, 4
  %v143 = vadd.f32 %v141, %v142
  %v144 = vrot.slane %v143, 2
  %v145 = vadd.f32 %v143, %v144
  %v146 = vrot.slane %v145, 1
  %v147 = vadd.f32 %v145, %v146
  %v148 = vsel %vm56, %v29, 0.0
  %v149 = vrot.slane %v148, 4
  %v150 = vadd.f32 %v148, %v149
  %v151 = vrot.slane %v150, 2
  %v152 = vadd.f32 %v150, %v151
  %v153 = vrot.slane %v152, 1
  %v154 = vadd.f32 %v152, %v153
  %v155 = vsel %vm56, %v46, 0.0
  %v156 = vrot.slane %v155, 4
  %v157 = vadd.f32 %v155, %v156
  %v158 = vrot.slane %v157, 2
  %v159 = vadd.f32 %v157, %v158
  %v160 = vrot.slane %v159, 1
  %v161 = vadd.f32 %v159, %v160
  %v162 = vsel %vm56, %v30, 0.0
  %v163 = vrot.slane %v162, 4
  %v164 = vadd.f32 %v162, %v163
  %v165 = vrot.slane %v164, 2
  %v166 = vadd.f32 %v164, %v165
  %v167 = vrot.slane %v166, 1
  %v168 = vadd.f32 %v166, %v167
  %v169 = vsel %vm56, %v47, 0.0
  %v170 = vrot.slane %v169, 4
  %v171 = vadd.f32 %v169, %v170
  %v172 = vrot.slane %v171, 2
  %v173 = vadd.f32 %v171, %v172
  %v174 = vrot.slane %v173, 1
  %v175 = vadd.f32 %v173, %v174
  %v176 = vsel %vm56, %v31, 0.0
  %v177 = vrot.slane %v176, 4
  %v178 = vadd.f32 %v176, %v177
  %v179 = vrot.slane %v178, 2
  %v180 = vadd.f32 %v178, %v179
  %v181 = vrot.slane %v180, 1
  %v182 = vadd.f32 %v180, %v181
  %v183 = vld [vmem:[%s1] sm:$0xf]
  %v184 = vld [vmem:[%s1 + $0x4] sm:$0xf]
  %v185 = vld [vmem:[%s1 + $0x8] sm:$0xf]
  %v186 = vld [vmem:[%s1 + $0xc] sm:$0xf]
  %v187 = vld [vmem:[%s1 + $0x10] sm:$0xf]
  %v188 = vld [vmem:[%s1 + $0x14] sm:$0xf]
  %v189 = vld [vmem:[%s1 + $0x18] sm:$0xf]
  %v190 = vld [vmem:[%s1 + $0x1c] sm:$0xf]
  %v191 = vld [vmem:[%s1 + $0x20] sm:$0xf]
  %v192 = vld [vmem:[%s1 + $0x24] sm:$0xf]
  %v193 = vld [vmem:[%s1 + $0x28] sm:$0xf]
  %v194 = vld [vmem:[%s1 + $0x2c] sm:$0xf]
  %v195 = vld [vmem:[%s1 + $0x30] sm:$0xf]
  %v196 = vld [vmem:[%s1 + $0x34] sm:$0xf]
  %v197 = vld [vmem:[%s1 + $0x38] sm:$0xf]
  %v198 = vld [vmem:[%s1 + $0x3c] sm:$0xf]
  %v199 = vld [vmem:[%s1 + $0x40] sm:$0xf]
  %v200 = vld [vmem:[%s1 + $0x44] sm:$0xf]
  %v201 = vld [vmem:[%s1 + $0x48] sm:$0xf]
  %v202 = vld [vmem:[%s1 + $0x4c] sm:$0xf]
  %v203 = vld [vmem:[%s1 + $0x50] sm:$0xf]
  %v204 = vld [vmem:[%s1 + $0x54] sm:$0xf]
  %v205 = vld [vmem:[%s1 + $0x58] sm:$0xf]
  %v206 = vld [vmem:[%s1 + $0x5c] sm:$0xf]
  %v207 = vld [vmem:[%s1 + $0x60] sm:$0xf]
  %v208 = vld [vmem:[%s1 + $0x64] sm:$0xf]
  %v209 = vld [vmem:[%s1 + $0x68] sm:$0xf]
  %v210 = vld [vmem:[%s1 + $0x6c] sm:$0xf]
  %v211 = vld [vmem:[%s1 + $0x70] sm:$0xf]
  %v212 = vld [vmem:[%s1 + $0x74] sm:$0xf]
  %v213 = vld [vmem:[%s1 + $0x78] sm:$0xf]
  %v214 = vld [vmem:[%s1 + $0x7c] sm:$0xf]
  %v215 = vld [vmem:[%s1 + $0x80] sm:$0xf]
  %v216 = vld [vmem:[%s1 + $0x84] sm:$0xf]
  %v217 = vld [vmem:[%s1 + $0x88] sm:$0xf]
  %v218 = vld [vmem:[%s1 + $0x8c] sm:$0xf]
  %v219 = vld [vmem:[%s1 + $0x90] sm:$0xf]
  %v220 = vld [vmem:[%s1 + $0x94] sm:$0xf]
  %v221 = vld [vmem:[%s1 + $0x98] sm:$0xf]
  %v222 = vld [vmem:[%s1 + $0x9c] sm:$0xf]
  %v223 = vld [vmem:[%s1 + $0xa0] sm:$0xf]
  %v224 = vld [vmem:[%s1 + $0xa4] sm:$0xf]
  %v225 = vld [vmem:[%s1 + $0xa8] sm:$0xf]
  %v226 = vld [vmem:[%s1 + $0xac] sm:$0xf]
  %v227 = vld [vmem:[%s1 + $0xb0] sm:$0xf]
  %v228 = vld [vmem:[%s1 + $0xb4] sm:$0xf]
  %v229 = vld [vmem:[%s1 + $0xb8] sm:$0xf]
  %v230 = vld [vmem:[%s1 + $0xbc] sm:$0xf]
  %v231 = vld [vmem:[%s1 + $0xc0] sm:$0xf]
  %v232 = vld [vmem:[%s1 + $0xc4] sm:$0xf]
  %v233 = vld [vmem:[%s1 + $0xc8] sm:$0xf]
  %v234 = vld [vmem:[%s1 + $0xcc] sm:$0xf]
  %v235 = vld [vmem:[%s1 + $0xd0] sm:$0xf]
  %v236 = vld [vmem:[%s1 + $0xd4] sm:$0xf]
  %v237 = vld [vmem:[%s1 + $0xd8] sm:$0xf]
  %v238 = vld [vmem:[%s1 + $0xdc] sm:$0xf]
  %v239 = vld [vmem:[%s1 + $0xe0] sm:$0xf]
  %v240 = vld [vmem:[%s1 + $0xe4] sm:$0xf]
  %v241 = vld [vmem:[%s1 + $0xe8] sm:$0xf]
  %v242 = vld [vmem:[%s1 + $0xec] sm:$0xf]
  %v243 = vld [vmem:[%s1 + $0xf0] sm:$0xf]
  %v244 = vld [vmem:[%s1 + $0xf4] sm:$0xf]
  %v245 = vld [vmem:[%s1 + $0xf8] sm:$0xf]
  %v246 = vld [vmem:[%s1 + $0xfc] sm:$0xf]
  %v247 = vld [vmem:[%s1 + $0x100] sm:$0xf]
  %v248 = vld [vmem:[%s1 + $0x104] sm:$0xf]
  %v249 = vld [vmem:[%s1 + $0x108] sm:$0xf]
  %v250 = vld [vmem:[%s1 + $0x10c] sm:$0xf]
  %v251 = vld [vmem:[%s1 + $0x110] sm:$0xf]
  %v252 = vld [vmem:[%s1 + $0x114] sm:$0xf]
  %v253 = vld [vmem:[%s1 + $0x118] sm:$0xf]
  %v254 = vld [vmem:[%s1 + $0x11c] sm:$0xf]
  %v255 = vld [vmem:[%s1 + $0x120] sm:$0xf]
  %v256 = vld [vmem:[%s1 + $0x124] sm:$0xf]
  %v257 = vld [vmem:[%s1 + $0x128] sm:$0xf]
  %v258 = vld [vmem:[%s1 + $0x12c] sm:$0xf]
  %v259 = vld [vmem:[%s1 + $0x130] sm:$0xf]
  %v260 = vld [vmem:[%s1 + $0x134] sm:$0xf]
  %v261 = vld [vmem:[%s1 + $0x138] sm:$0xf]
  %v262 = vld [vmem:[%s1 + $0x13c] sm:$0xf]
  %v263 = vld [vmem:[%s1 + $0x140] sm:$0xf]
  %v264 = vld [vmem:[%s1 + $0x144] sm:$0xf]
  %v265 = vld [vmem:[%s1 + $0x148] sm:$0xf]
  %v266 = vld [vmem:[%s1 + $0x14c] sm:$0xf]
  %v267 = vld [vmem:[%s1 + $0x150] sm:$0xf]
  %v268 = vld [vmem:[%s1 + $0x154] sm:$0xf]
  %v269 = vld [vmem:[%s1 + $0x158] sm:$0xf]
  %v270 = vld [vmem:[%s1 + $0x15c] sm:$0xf]
  %v271 = vld [vmem:[%s1 + $0x160] sm:$0xf]
  %v272 = vld [vmem:[%s1 + $0x164] sm:$0xf]
  %v273 = vld [vmem:[%s1 + $0x168] sm:$0xf]
  %v274 = vld [vmem:[%s1 + $0x16c] sm:$0xf]
  %v275 = vld [vmem:[%s1 + $0x170] sm:$0xf]
  %v276 = vld [vmem:[%s1 + $0x174] sm:$0xf]
  %v277 = vld [vmem:[%s1 + $0x178] sm:$0xf]
  %v278 = vld [vmem:[%s1 + $0x17c] sm:$0xf]
  %v279 = vld [vmem:[%s1 + $0x180] sm:$0xf]
  %v280 = vld [vmem:[%s1 + $0x184] sm:$0xf]
  %v281 = vld [vmem:[%s1 + $0x188] sm:$0xf]
  %v282 = vld [vmem:[%s1 + $0x18c] sm:$0xf]
  %v283 = vld [vmem:[%s1 + $0x190] sm:$0xf]
  %v284 = vld [vmem:[%s1 + $0x194] sm:$0xf]
  %v285 = vld [vmem:[%s1 + $0x198] sm:$0xf]
  %v286 = vld [vmem:[%s1 + $0x19c] sm:$0xf]
  %v287 = vld [vmem:[%s1 + $0x1a0] sm:$0xf]
  %v288 = vld [vmem:[%s1 + $0x1a4] sm:$0xf]
  %v289 = vld [vmem:[%s1 + $0x1a8] sm:$0xf]
  %v290 = vld [vmem:[%s1 + $0x1ac] sm:$0xf]
  %v291 = vld [vmem:[%s1 + $0x1b0] sm:$0xf]
  %v292 = vld [vmem:[%s1 + $0x1b4] sm:$0xf]
  %v293 = vld [vmem:[%s1 + $0x1b8] sm:$0xf]
  %v294 = vld [vmem:[%s1 + $0x1bc] sm:$0xf]
  %v295 = vld [vmem:[%s1 + $0x1c0] sm:$0xf]
  %v296 = vld [vmem:[%s1 + $0x1c4] sm:$0xf]
  %v297 = vld [vmem:[%s1 + $0x1c8] sm:$0xf]
  %v298 = vld [vmem:[%s1 + $0x1cc] sm:$0xf]
  %v299 = vld [vmem:[%s1 + $0x1d0] sm:$0xf]
  %v300 = vld [vmem:[%s1 + $0x1d4] sm:$0xf]
  %v301 = vld [vmem:[%s1 + $0x1d8] sm:$0xf]
  %v302 = vld [vmem:[%s1 + $0x1dc] sm:$0xf]
  %v303 = vld [vmem:[%s1 + $0x1e0] sm:$0xf]
  %v304 = vld [vmem:[%s1 + $0x1e4] sm:$0xf]
  %v305 = vld [vmem:[%s1 + $0x1e8] sm:$0xf]
  %v306 = vld [vmem:[%s1 + $0x1ec] sm:$0xf]
  %v307 = vld [vmem:[%s1 + $0x1f0] sm:$0xf]
  %v308 = vld [vmem:[%s1 + $0x1f4] sm:$0xf]
  %v309 = vld [vmem:[%s1 + $0x1f8] sm:$0xf]
  %v310 = vld [vmem:[%s1 + $0x1fc] sm:$0xf]
  %v311 = vld [vmem:[%s1 + $0x200] sm:$0xf]
  %v312 = vld [vmem:[%s1 + $0x204] sm:$0xf]
  %v313 = vld [vmem:[%s1 + $0x208] sm:$0xf]
  %v314 = vld [vmem:[%s1 + $0x20c] sm:$0xf]
  %v315 = vld [vmem:[%s1 + $0x210] sm:$0xf]
  %v316 = vld [vmem:[%s1 + $0x214] sm:$0xf]
  %v317 = vld [vmem:[%s1 + $0x218] sm:$0xf]
  %v318 = vld [vmem:[%s1 + $0x21c] sm:$0xf]
  %v319 = vld [vmem:[%s1 + $0x220] sm:$0xf]
  %v320 = vld [vmem:[%s1 + $0x224] sm:$0xf]
  %v321 = vld [vmem:[%s1 + $0x228] sm:$0xf]
  %v322 = vld [vmem:[%s1 + $0x22c] sm:$0xf]
  %v323 = vld [vmem:[%s1 + $0x230] sm:$0xf]
  %v324 = vld [vmem:[%s1 + $0x234] sm:$0xf]
  %v325 = vld [vmem:[%s1 + $0x238] sm:$0xf]
  %v326 = vld [vmem:[%s1 + $0x23c] sm:$0xf]
  %v327 = vunpack.c.l.bf16 %v183
  %v328 = vunpack.c.l.bf16 %v184
  %v329 = vunpack.c.l.bf16 %v185
  %v330 = vunpack.c.l.bf16 %v186
  %v331 = vunpack.c.l.bf16 %v187
  %v332 = vunpack.c.l.bf16 %v188
  %v333 = vunpack.c.l.bf16 %v189
  %v334 = vunpack.c.l.bf16 %v190
  %v335 = vunpack.c.l.bf16 %v191
  %v336 = vunpack.c.l.bf16 %v192
  %v337 = vunpack.c.l.bf16 %v193
  %v338 = vunpack.c.l.bf16 %v194
  %v339 = vunpack.c.l.bf16 %v195
  %v340 = vunpack.c.l.bf16 %v196
  %v341 = vunpack.c.l.bf16 %v197
  %v342 = vunpack.c.l.bf16 %v198
  %v343 = vunpack.c.l.bf16 %v199
  %v344 = vunpack.c.l.bf16 %v200
  %v345 = vunpack.c.l.bf16 %v201
  %v346 = vunpack.c.l.bf16 %v202
  %v347 = vunpack.c.l.bf16 %v203
  %v348 = vunpack.c.l.bf16 %v204
  %v349 = vunpack.c.l.bf16 %v205
  %v350 = vunpack.c.l.bf16 %v206
  %v351 = vunpack.c.l.bf16 %v207
  %v352 = vunpack.c.l.bf16 %v208
  %v353 = vunpack.c.l.bf16 %v209
  %v354 = vunpack.c.l.bf16 %v210
  %v355 = vunpack.c.l.bf16 %v211
  %v356 = vunpack.c.l.bf16 %v212
  %v357 = vunpack.c.l.bf16 %v213
  %v358 = vunpack.c.l.bf16 %v214
  %v359 = vunpack.c.l.bf16 %v215
  %v360 = vunpack.c.l.bf16 %v216
  %v361 = vunpack.c.l.bf16 %v217
  %v362 = vunpack.c.l.bf16 %v218
  %v363 = vunpack.c.l.bf16 %v219
  %v364 = vunpack.c.l.bf16 %v220
  %v365 = vunpack.c.l.bf16 %v221
  %v366 = vunpack.c.l.bf16 %v222
  %v367 = vunpack.c.l.bf16 %v223
  %v368 = vunpack.c.l.bf16 %v224
  %v369 = vunpack.c.l.bf16 %v225
  %v370 = vunpack.c.l.bf16 %v226
  %v371 = vunpack.c.l.bf16 %v227
  %v372 = vunpack.c.l.bf16 %v228
  %v373 = vunpack.c.l.bf16 %v229
  %v374 = vunpack.c.l.bf16 %v230
  %v375 = vunpack.c.l.bf16 %v231
  %v376 = vunpack.c.l.bf16 %v232
  %v377 = vunpack.c.l.bf16 %v233
  %v378 = vunpack.c.l.bf16 %v234
  %v379 = vunpack.c.l.bf16 %v235
  %v380 = vunpack.c.l.bf16 %v236
  %v381 = vunpack.c.l.bf16 %v237
  %v382 = vunpack.c.l.bf16 %v238
  %v383 = vunpack.c.l.bf16 %v239
  %v384 = vunpack.c.l.bf16 %v240
  %v385 = vunpack.c.l.bf16 %v241
  %v386 = vunpack.c.l.bf16 %v242
  %v387 = vunpack.c.l.bf16 %v243
  %v388 = vunpack.c.l.bf16 %v244
  %v389 = vunpack.c.l.bf16 %v245
  %v390 = vunpack.c.l.bf16 %v246
  %v391 = vunpack.c.l.bf16 %v247
  %v392 = vunpack.c.l.bf16 %v248
  %v393 = vunpack.c.l.bf16 %v249
  %v394 = vunpack.c.l.bf16 %v250
  %v395 = vunpack.c.l.bf16 %v251
  %v396 = vunpack.c.l.bf16 %v252
  %v397 = vunpack.c.l.bf16 %v253
  %v398 = vunpack.c.l.bf16 %v254
  %v399 = vunpack.c.l.bf16 %v255
  %v400 = vunpack.c.l.bf16 %v256
  %v401 = vunpack.c.l.bf16 %v257
  %v402 = vunpack.c.l.bf16 %v258
  %v403 = vunpack.c.l.bf16 %v259
  %v404 = vunpack.c.l.bf16 %v260
  %v405 = vunpack.c.l.bf16 %v261
  %v406 = vunpack.c.l.bf16 %v262
  %v407 = vunpack.c.l.bf16 %v263
  %v408 = vunpack.c.l.bf16 %v264
  %v409 = vunpack.c.l.bf16 %v265
  %v410 = vunpack.c.l.bf16 %v266
  %v411 = vunpack.c.l.bf16 %v267
  %v412 = vunpack.c.l.bf16 %v268
  %v413 = vunpack.c.l.bf16 %v269
  %v414 = vunpack.c.l.bf16 %v270
  %v415 = vunpack.c.l.bf16 %v271
  %v416 = vunpack.c.l.bf16 %v272
  %v417 = vunpack.c.l.bf16 %v273
  %v418 = vunpack.c.l.bf16 %v274
  %v419 = vunpack.c.l.bf16 %v275
  %v420 = vunpack.c.l.bf16 %v276
  %v421 = vunpack.c.l.bf16 %v277
  %v422 = vunpack.c.l.bf16 %v278
  %v423 = vunpack.c.l.bf16 %v279
  %v424 = vunpack.c.l.bf16 %v280
  %v425 = vunpack.c.l.bf16 %v281
  %v426 = vunpack.c.l.bf16 %v282
  %v427 = vunpack.c.l.bf16 %v283
  %v428 = vunpack.c.l.bf16 %v284
  %v429 = vunpack.c.l.bf16 %v285
  %v430 = vunpack.c.l.bf16 %v286
  %v431 = vunpack.c.l.bf16 %v287
  %v432 = vunpack.c.l.bf16 %v288
  %v433 = vunpack.c.l.bf16 %v289
  %v434 = vunpack.c.l.bf16 %v290
  %v435 = vunpack.c.l.bf16 %v291
  %v436 = vunpack.c.l.bf16 %v292
  %v437 = vunpack.c.l.bf16 %v293
  %v438 = vunpack.c.l.bf16 %v294
  %v439 = vunpack.c.l.bf16 %v295
  %v440 = vunpack.c.l.bf16 %v296
  %v441 = vunpack.c.l.bf16 %v297
  %v442 = vunpack.c.l.bf16 %v298
  %v443 = vunpack.c.l.bf16 %v299
  %v444 = vunpack.c.l.bf16 %v300
  %v445 = vunpack.c.l.bf16 %v301
  %v446 = vunpack.c.l.bf16 %v302
  %v447 = vunpack.c.l.bf16 %v303
  %v448 = vunpack.c.l.bf16 %v304
  %v449 = vunpack.c.l.bf16 %v305
  %v450 = vunpack.c.l.bf16 %v306
  %v451 = vunpack.c.l.bf16 %v307
  %v452 = vunpack.c.l.bf16 %v308
  %v453 = vunpack.c.l.bf16 %v309
  %v454 = vunpack.c.l.bf16 %v310
  %v455 = vunpack.c.l.bf16 %v311
  %v456 = vunpack.c.l.bf16 %v312
  %v457 = vunpack.c.l.bf16 %v313
  %v458 = vunpack.c.l.bf16 %v314
  %v459 = vunpack.c.l.bf16 %v315
  %v460 = vunpack.c.l.bf16 %v316
  %v461 = vunpack.c.l.bf16 %v317
  %v462 = vunpack.c.l.bf16 %v318
  %v463 = vunpack.c.l.bf16 %v319
  %v464 = vunpack.c.l.bf16 %v320
  %v465 = vunpack.c.l.bf16 %v321
  %v466 = vunpack.c.l.bf16 %v322
  %v467 = vunpack.c.l.bf16 %v323
  %v468 = vunpack.c.l.bf16 %v324
  %v469 = vunpack.c.l.bf16 %v325
  %v470 = vunpack.c.l.bf16 %v326
  %vm489 = vcmask 1041409
  %v490 = vsel %vm489, %v126, %v63
  %v491 = vsel %vm489, %v133, %v70
  %v492 = vsel %vm489, %v140, %v77
  %v493 = vsel %vm489, %v147, %v84
  %v494 = vsel %vm489, %v154, %v91
  %v495 = vsel %vm489, %v161, %v98
  %v496 = vsel %vm489, %v168, %v105
  %v497 = vsel %vm489, %v175, %v112
  %v498 = vsel %vm489, %v182, %v119
  %508 = vmatprep.subr.mxu0 0.0
  %509 = vmatpush1.msra.mxu0 %v327
  %510 = vmatprep.subr.mxu0 0.0
  %511 = vmatpush1.msra.mxu0 %v328
  %512 = vmatprep.subr.mxu0 0.0
  %513 = vmatpush1.msra.mxu0 %v329
  %514 = vmatprep.subr.mxu0 0.0
  %515 = vmatpush1.msra.mxu0 %v330
  %516 = vmatprep.subr.mxu0 0.0
  %517 = vmatpush1.msra.mxu0 %v331
  %518 = vmatprep.subr.mxu0 0.0
  %519 = vmatpush1.msra.mxu0 %v332
  %520 = vmatprep.subr.mxu0 0.0
  %521 = vmatpush1.msra.mxu0 %v333
  %522 = vmatprep.subr.mxu0 0.0
  %523 = vmatpush1.msra.mxu0 %v334
  %524 = vmatprep.subr.mxu0 0.0
  %525 = vmatpush1.msra.mxu0 %v335
  %526 = vmatprep.subr.mxu0 0.0
  %527 = vmatpush1.msra.mxu0 %v336
  %528 = vmatprep.subr.mxu0 0.0
  %529 = vmatpush1.msra.mxu0 %v337
  %530 = vmatprep.subr.mxu0 0.0
  %531 = vmatpush1.msra.mxu0 %v338
  %532 = vmatprep.subr.mxu0 0.0
  %533 = vmatpush1.msra.mxu0 %v339
  %534 = vmatprep.subr.mxu0 0.0
  %535 = vmatpush1.msra.mxu0 %v340
  %536 = vmatprep.subr.mxu0 0.0
  %537 = vmatpush1.msra.mxu0 %v341
  %538 = vmatprep.subr.mxu0 0.0
  %539 = vmatpush1.msra.mxu0 %v342
  %540 = vmatprep.subr.mxu0 0.0
  %541 = vmatpush1.msra.mxu0 %v343
  %542 = vmatprep.subr.mxu0 0.0
  %543 = vmatpush1.msra.mxu0 %v344
  %544 = vmatprep.subr.mxu0 0.0
  %545 = vmatpush1.msra.mxu0 %v345
  %546 = vmatprep.subr.mxu0 0.0
  %547 = vmatpush1.msra.mxu0 %v346
  %548 = vmatprep.subr.mxu0 0.0
  %549 = vmatpush1.msra.mxu0 %v347
  %550 = vmatprep.subr.mxu0 0.0
  %551 = vmatpush1.msra.mxu0 %v348
  %552 = vmatprep.subr.mxu0 0.0
  %553 = vmatpush1.msra.mxu0 %v349
  %554 = vmatprep.subr.mxu0 0.0
  %555 = vmatpush1.msra.mxu0 %v350
  %556 = vmatprep.subr.mxu0 0.0
  %557 = vmatpush1.msra.mxu0 %v351
  %558 = vmatprep.subr.mxu0 0.0
  %559 = vmatpush1.msra.mxu0 %v352
  %560 = vmatprep.subr.mxu0 0.0
  %561 = vmatpush1.msra.mxu0 %v353
  %562 = vmatprep.subr.mxu0 0.0
  %563 = vmatpush1.msra.mxu0 %v354
  %564 = vmatprep.subr.mxu0 0.0
  %565 = vmatpush1.msra.mxu0 %v355
  %566 = vmatprep.subr.mxu0 0.0
  %567 = vmatpush1.msra.mxu0 %v356
  %568 = vmatprep.subr.mxu0 0.0
  %569 = vmatpush1.msra.mxu0 %v357
  %570 = vmatprep.subr.mxu0 0.0
  %571 = vmatpush1.msra.mxu0 %v358
  %572 = vmatprep.mubr.f32.mxu0 %v491
  %573 = vmatmul.mubr.f32.gmra.mrb[0].mxu0 %v490
  %v574 = vpop.f32.mrb[0].mxu0
  %v575 = vadd.f32 0.0, %v574
  %v576 = vpop.f32.mrb[0].mxu0
  %577 = vdwg.mxu0
  %578 = vmatprep.subr.mxu0 0.0
  %579 = vmatpush1.msra.mxu0 %v359
  %580 = vmatprep.subr.mxu0 0.0
  %581 = vmatpush1.msra.mxu0 %v360
  %582 = vmatprep.subr.mxu0 0.0
  %583 = vmatpush1.msra.mxu0 %v361
  %584 = vmatprep.subr.mxu0 0.0
  %585 = vmatpush1.msra.mxu0 %v362
  %586 = vmatprep.subr.mxu0 0.0
  %587 = vmatpush1.msra.mxu0 %v363
  %588 = vmatprep.subr.mxu0 0.0
  %589 = vmatpush1.msra.mxu0 %v364
  %590 = vmatprep.subr.mxu0 0.0
  %591 = vmatpush1.msra.mxu0 %v365
  %592 = vmatprep.subr.mxu0 0.0
  %593 = vmatpush1.msra.mxu0 %v366
  %594 = vmatprep.subr.mxu0 0.0
  %595 = vmatpush1.msra.mxu0 %v367
  %596 = vmatprep.subr.mxu0 0.0
  %597 = vmatpush1.msra.mxu0 %v368
  %598 = vmatprep.subr.mxu0 0.0
  %599 = vmatpush1.msra.mxu0 %v369
  %600 = vmatprep.subr.mxu0 0.0
  %601 = vmatpush1.msra.mxu0 %v370
  %602 = vmatprep.subr.mxu0 0.0
  %603 = vmatpush1.msra.mxu0 %v371
  %604 = vmatprep.subr.mxu0 0.0
  %605 = vmatpush1.msra.mxu0 %v372
  %606 = vmatprep.subr.mxu0 0.0
  %607 = vmatpush1.msra.mxu0 %v373
  %608 = vmatprep.subr.mxu0 0.0
  %609 = vmatpush1.msra.mxu0 %v374
  %610 = vmatprep.subr.mxu0 0.0
  %611 = vmatpush1.msra.mxu0 %v375
  %612 = vmatprep.subr.mxu0 0.0
  %613 = vmatpush1.msra.mxu0 %v376
  %614 = vmatprep.subr.mxu0 0.0
  %615 = vmatpush1.msra.mxu0 %v377
  %616 = vmatprep.subr.mxu0 0.0
  %617 = vmatpush1.msra.mxu0 %v378
  %618 = vmatprep.subr.mxu0 0.0
  %619 = vmatpush1.msra.mxu0 %v379
  %620 = vmatprep.subr.mxu0 0.0
  %621 = vmatpush1.msra.mxu0 %v380
  %622 = vmatprep.subr.mxu0 0.0
  %623 = vmatpush1.msra.mxu0 %v381
  %624 = vmatprep.subr.mxu0 0.0
  %625 = vmatpush1.msra.mxu0 %v382
  %626 = vmatprep.subr.mxu0 0.0
  %627 = vmatpush1.msra.mxu0 %v383
  %628 = vmatprep.subr.mxu0 0.0
  %629 = vmatpush1.msra.mxu0 %v384
  %630 = vmatprep.subr.mxu0 0.0
  %631 = vmatpush1.msra.mxu0 %v385
  %632 = vmatprep.subr.mxu0 0.0
  %633 = vmatpush1.msra.mxu0 %v386
  %634 = vmatprep.subr.mxu0 0.0
  %635 = vmatpush1.msra.mxu0 %v387
  %636 = vmatprep.subr.mxu0 0.0
  %637 = vmatpush1.msra.mxu0 %v388
  %638 = vmatprep.subr.mxu0 0.0
  %639 = vmatpush1.msra.mxu0 %v389
  %640 = vmatprep.subr.mxu0 0.0
  %641 = vmatpush1.msra.mxu0 %v390
  %642 = vmatprep.mubr.f32.mxu0 %v493
  %643 = vmatmul.mubr.f32.gmra.mrb[0].mxu0 %v492
  %v644 = vpop.f32.mrb[0].mxu0
  %v645 = vadd.f32 %v575, %v644
  %v646 = vpop.f32.mrb[0].mxu0
  %647 = vdwg.mxu0
  %648 = vmatprep.subr.mxu0 0.0
  %649 = vmatpush1.msra.mxu0 %v391
  %650 = vmatprep.subr.mxu0 0.0
  %651 = vmatpush1.msra.mxu0 %v392
  %652 = vmatprep.subr.mxu0 0.0
  %653 = vmatpush1.msra.mxu0 %v393
  %654 = vmatprep.subr.mxu0 0.0
  %655 = vmatpush1.msra.mxu0 %v394
  %656 = vmatprep.subr.mxu0 0.0
  %657 = vmatpush1.msra.mxu0 %v395
  %658 = vmatprep.subr.mxu0 0.0
  %659 = vmatpush1.msra.mxu0 %v396
  %660 = vmatprep.subr.mxu0 0.0
  %661 = vmatpush1.msra.mxu0 %v397
  %662 = vmatprep.subr.mxu0 0.0
  %663 = vmatpush1.msra.mxu0 %v398
  %664 = vmatprep.subr.mxu0 0.0
  %665 = vmatpush1.msra.mxu0 %v399
  %666 = vmatprep.subr.mxu0 0.0
  %667 = vmatpush1.msra.mxu0 %v400
  %668 = vmatprep.subr.mxu0 0.0
  %669 = vmatpush1.msra.mxu0 %v401
  %670 = vmatprep.subr.mxu0 0.0
  %671 = vmatpush1.msra.mxu0 %v402
  %672 = vmatprep.subr.mxu0 0.0
  %673 = vmatpush1.msra.mxu0 %v403
  %674 = vmatprep.subr.mxu0 0.0
  %675 = vmatpush1.msra.mxu0 %v404
  %676 = vmatprep.subr.mxu0 0.0
  %677 = vmatpush1.msra.mxu0 %v405
  %678 = vmatprep.subr.mxu0 0.0
  %679 = vmatpush1.msra.mxu0 %v406
  %680 = vmatprep.subr.mxu0 0.0
  %681 = vmatpush1.msra.mxu0 %v407
  %682 = vmatprep.subr.mxu0 0.0
  %683 = vmatpush1.msra.mxu0 %v408
  %684 = vmatprep.subr.mxu0 0.0
  %685 = vmatpush1.msra.mxu0 %v409
  %686 = vmatprep.subr.mxu0 0.0
  %687 = vmatpush1.msra.mxu0 %v410
  %688 = vmatprep.subr.mxu0 0.0
  %689 = vmatpush1.msra.mxu0 %v411
  %690 = vmatprep.subr.mxu0 0.0
  %691 = vmatpush1.msra.mxu0 %v412
  %692 = vmatprep.subr.mxu0 0.0
  %693 = vmatpush1.msra.mxu0 %v413
  %694 = vmatprep.subr.mxu0 0.0
  %695 = vmatpush1.msra.mxu0 %v414
  %696 = vmatprep.subr.mxu0 0.0
  %697 = vmatpush1.msra.mxu0 %v415
  %698 = vmatprep.subr.mxu0 0.0
  %699 = vmatpush1.msra.mxu0 %v416
  %700 = vmatprep.subr.mxu0 0.0
  %701 = vmatpush1.msra.mxu0 %v417
  %702 = vmatprep.subr.mxu0 0.0
  %703 = vmatpush1.msra.mxu0 %v418
  %704 = vmatprep.subr.mxu0 0.0
  %705 = vmatpush1.msra.mxu0 %v419
  %706 = vmatprep.subr.mxu0 0.0
  %707 = vmatpush1.msra.mxu0 %v420
  %708 = vmatprep.subr.mxu0 0.0
  %709 = vmatpush1.msra.mxu0 %v421
  %710 = vmatprep.subr.mxu0 0.0
  %711 = vmatpush1.msra.mxu0 %v422
  %712 = vmatprep.mubr.f32.mxu0 %v495
  %713 = vmatmul.mubr.f32.gmra.mrb[0].mxu0 %v494
  %v714 = vpop.f32.mrb[0].mxu0
  %v715 = vadd.f32 %v645, %v714
  %v716 = vpop.f32.mrb[0].mxu0
  %717 = vdwg.mxu0
  %718 = vmatprep.subr.mxu0 0.0
  %719 = vmatpush1.msra.mxu0 %v423
  %720 = vmatprep.subr.mxu0 0.0
  %721 = vmatpush1.msra.mxu0 %v424
  %722 = vmatprep.subr.mxu0 0.0
  %723 = vmatpush1.msra.mxu0 %v425
  %724 = vmatprep.subr.mxu0 0.0
  %725 = vmatpush1.msra.mxu0 %v426
  %726 = vmatprep.subr.mxu0 0.0
  %727 = vmatpush1.msra.mxu0 %v427
  %728 = vmatprep.subr.mxu0 0.0
  %729 = vmatpush1.msra.mxu0 %v428
  %730 = vmatprep.subr.mxu0 0.0
  %731 = vmatpush1.msra.mxu0 %v429
  %732 = vmatprep.subr.mxu0 0.0
  %733 = vmatpush1.msra.mxu0 %v430
  %734 = vmatprep.subr.mxu0 0.0
  %735 = vmatpush1.msra.mxu0 %v431
  %736 = vmatprep.subr.mxu0 0.0
  %737 = vmatpush1.msra.mxu0 %v432
  %738 = vmatprep.subr.mxu0 0.0
  %739 = vmatpush1.msra.mxu0 %v433
  %740 = vmatprep.subr.mxu0 0.0
  %741 = vmatpush1.msra.mxu0 %v434
  %742 = vmatprep.subr.mxu0 0.0
  %743 = vmatpush1.msra.mxu0 %v435
  %744 = vmatprep.subr.mxu0 0.0
  %745 = vmatpush1.msra.mxu0 %v436
  %746 = vmatprep.subr.mxu0 0.0
  %747 = vmatpush1.msra.mxu0 %v437
  %748 = vmatprep.subr.mxu0 0.0
  %749 = vmatpush1.msra.mxu0 %v438
  %750 = vmatprep.subr.mxu0 0.0
  %751 = vmatpush1.msra.mxu0 %v439
  %752 = vmatprep.subr.mxu0 0.0
  %753 = vmatpush1.msra.mxu0 %v440
  %754 = vmatprep.subr.mxu0 0.0
  %755 = vmatpush1.msra.mxu0 %v441
  %756 = vmatprep.subr.mxu0 0.0
  %757 = vmatpush1.msra.mxu0 %v442
  %758 = vmatprep.subr.mxu0 0.0
  %759 = vmatpush1.msra.mxu0 %v443
  %760 = vmatprep.subr.mxu0 0.0
  %761 = vmatpush1.msra.mxu0 %v444
  %762 = vmatprep.subr.mxu0 0.0
  %763 = vmatpush1.msra.mxu0 %v445
  %764 = vmatprep.subr.mxu0 0.0
  %765 = vmatpush1.msra.mxu0 %v446
  %766 = vmatprep.subr.mxu0 0.0
  %767 = vmatpush1.msra.mxu0 %v447
  %768 = vmatprep.subr.mxu0 0.0
  %769 = vmatpush1.msra.mxu0 %v448
  %770 = vmatprep.subr.mxu0 0.0
  %771 = vmatpush1.msra.mxu0 %v449
  %772 = vmatprep.subr.mxu0 0.0
  %773 = vmatpush1.msra.mxu0 %v450
  %774 = vmatprep.subr.mxu0 0.0
  %775 = vmatpush1.msra.mxu0 %v451
  %776 = vmatprep.subr.mxu0 0.0
  %777 = vmatpush1.msra.mxu0 %v452
  %778 = vmatprep.subr.mxu0 0.0
  %779 = vmatpush1.msra.mxu0 %v453
  %780 = vmatprep.subr.mxu0 0.0
  %781 = vmatpush1.msra.mxu0 %v454
  %782 = vmatprep.mubr.f32.mxu0 %v497
  %783 = vmatmul.mubr.f32.gmra.mrb[0].mxu0 %v496
  %v784 = vpop.f32.mrb[0].mxu0
  %v785 = vadd.f32 %v715, %v784
  %v786 = vpop.f32.mrb[0].mxu0
  %787 = vdwg.mxu0
  %788 = vmatprep.subr.mxu0 0.0
  %789 = vmatpush1.msra.mxu0 %v455
  %790 = vmatprep.subr.mxu0 0.0
  %791 = vmatpush1.msra.mxu0 %v456
  %792 = vmatprep.subr.mxu0 0.0
  %793 = vmatpush1.msra.mxu0 %v457
  %794 = vmatprep.subr.mxu0 0.0
  %795 = vmatpush1.msra.mxu0 %v458
  %796 = vmatprep.subr.mxu0 0.0
  %797 = vmatpush1.msra.mxu0 %v459
  %798 = vmatprep.subr.mxu0 0.0
  %799 = vmatpush1.msra.mxu0 %v460
  %800 = vmatprep.subr.mxu0 0.0
  %801 = vmatpush1.msra.mxu0 %v461
  %802 = vmatprep.subr.mxu0 0.0
  %803 = vmatpush1.msra.mxu0 %v462
  %804 = vmatprep.subr.mxu0 0.0
  %805 = vmatpush1.msra.mxu0 %v463
  %806 = vmatprep.subr.mxu0 0.0
  %807 = vmatpush1.msra.mxu0 %v464
  %808 = vmatprep.subr.mxu0 0.0
  %809 = vmatpush1.msra.mxu0 %v465
  %810 = vmatprep.subr.mxu0 0.0
  %811 = vmatpush1.msra.mxu0 %v466
  %812 = vmatprep.subr.mxu0 0.0
  %813 = vmatpush1.msra.mxu0 %v467
  %814 = vmatprep.subr.mxu0 0.0
  %815 = vmatpush1.msra.mxu0 %v468
  %816 = vmatprep.subr.mxu0 0.0
  %817 = vmatpush1.msra.mxu0 %v469
  %818 = vmatprep.subr.mxu0 0.0
  %819 = vmatpush1.msra.mxu0 %v470
  %820 = vmatprep.subr.mxu0 0.0
  %821 = vmatpush1.msra.mxu0 0.0
  %822 = vmatprep.subr.mxu0 0.0
  %823 = vmatpush1.msra.mxu0 0.0
  %824 = vmatprep.subr.mxu0 0.0
  %825 = vmatpush1.msra.mxu0 0.0
  %826 = vmatprep.subr.mxu0 0.0
  %827 = vmatpush1.msra.mxu0 0.0
  %828 = vmatprep.subr.mxu0 0.0
  %829 = vmatpush1.msra.mxu0 0.0
  %830 = vmatprep.subr.mxu0 0.0
  %831 = vmatpush1.msra.mxu0 0.0
  %832 = vmatprep.subr.mxu0 0.0
  %833 = vmatpush1.msra.mxu0 0.0
  %834 = vmatprep.subr.mxu0 0.0
  %835 = vmatpush1.msra.mxu0 0.0
  %836 = vmatprep.subr.mxu0 0.0
  %837 = vmatpush1.msra.mxu0 0.0
  %838 = vmatprep.subr.mxu0 0.0
  %839 = vmatpush1.msra.mxu0 0.0
  %840 = vmatprep.subr.mxu0 0.0
  %841 = vmatpush1.msra.mxu0 0.0
  %842 = vmatprep.subr.mxu0 0.0
  %843 = vmatpush1.msra.mxu0 0.0
  %844 = vmatprep.subr.mxu0 0.0
  %845 = vmatpush1.msra.mxu0 0.0
  %846 = vmatprep.subr.mxu0 0.0
  %847 = vmatpush1.msra.mxu0 0.0
  %848 = vmatprep.subr.mxu0 0.0
  %849 = vmatpush1.msra.mxu0 0.0
  %850 = vmatprep.subr.mxu0 0.0
  %851 = vmatpush1.msra.mxu0 0.0
  %852 = vmatprep.mubr.f32.mxu0 0.0
  %853 = vmatmul.mubr.f32.gmra.mrb[0].mxu0 %v498
  %v854 = vpop.f32.mrb[0].mxu0
  %v855 = vadd.f32 %v785, %v854
  %v856 = vpop.f32.mrb[0].mxu0
  %857 = vdwg.mxu0
  %v858 = vmul.f32 %v855, 0.25
  %v859 = vld [vmem:[#allocation2] sm:$0x1]
  %v861 = vlaneseq
  %v862 = vshrl.u32 %v861, 7
  %v863 = vsub.s32 0, %v862
  %v864 = vrot.slane %v859, %v863
  %v866 = vadd.f32 %v858, %v864
  %vm867 = vcmask 1024
  %868 = vst.msk [vmem:[%s3] sm:$0x3] %vm867, %v866
  // Predicated region
  $region14: #{discriminator_forward.11} parent=0 // pred_check
    _
  $region15: #{discriminator_forward.11} parent=0 // pred_check_branch
    %870 = sbr.rel (0) target = $region17
  $region16: #{discriminator_forward.11} parent=0 // pred_region
    _
  $region17: #{discriminator_forward.11} parent=0 // pred_fallthru
    _
  // Predicated region
  $region18: #{discriminator_forward.11} parent=0 // pred_check
    _
  $region19: #{discriminator_forward.11} parent=0 // pred_check_branch
    %872 = sbr.rel (0) target = $region21
  $region20: #{discriminator_forward.11} parent=0 // pred_region
    _
  $region21: #{discriminator_forward.11} parent=0 // pred_fallthru
    _

</llo_original>
